<compile_context>
chip_gen: v6e
topology: v6e:2x2x1
jax: 0.10.0
libtpu: 0.0.40
codegen_flags: <defaults>
</compile_context>

<pallas_src>
import functools

import jax
import jax.numpy as jnp
from jax.experimental import pallas as pl
from jax.experimental.pallas import tpu as pltpu


def _shift_lanes(x, off):
    """y[:, i] = x[:, i + off], zero-filled out of range.  `off` is static.

    Static lane slices + concat give unambiguous zero-fill semantics at the
    array ends (pltpu.roll would wrap and need extra row masking).
    """
    if off == 0:
        return x
    if off > 0:
        return jnp.concatenate([x[:, off:], jnp.zeros_like(x[:, :off])], axis=1)
    return jnp.concatenate([jnp.zeros_like(x[:, off:]), x[:, :off]], axis=1)


# --------------------------------------------------------------------------- #
# Kernel 1: magnitude + encoder (3x3, ReLU, 3x3, ReLU, 1x1) + row softmax.     #
# One grid step per batch element.  Channel-major (E, HW) activations, conv2   #
# fused into a single K=9E MXU matmul, lane-dense (1, HW) softmax output.      #
# --------------------------------------------------------------------------- #
def _make_encoder_kernel(H, W):
    HW = H * W

    def kernel(dr_ref, di_ref,           # (1, C, HW) f32 : dft.real / dft.imag
               w1_ref, b1_ref,           # (9, E, C) mm_dtype, (E, 1) f32
               w2_ref, b2_ref,           # (E, 9E)  mm_dtype, (E, 1) f32
               w3_ref, b3_ref,           # (1, E) f32, (1, 1) f32  (sparsity folded)
               sw_ref):                  # out (1, 1, HW) f32
        mm_dtype = w1_ref.dtype
        E = w2_ref.shape[0]

        # ---- magnitude in-kernel (no HBM round trip) ------------------------ #
        dr = dr_ref[0]
        di = di_ref[0]
        mag = jnp.sqrt(dr * dr + di * di)                     # (C, HW) f32

        # ---- per-lane column index & boundary masks ------------------------- #
        lane = jax.lax.broadcasted_iota(jnp.int32, (1, HW), 1)
        col = lane & (W - 1)                                  # W is a power of two
        keep_lo = col != 0                                    # may read w - 1
        keep_hi = col != (W - 1)                              # may read w + 1

        def tap_shift(x, dh, dw):
            # value at (h, w) -> x[h + dh, w + dw] with zero padding.
            v = _shift_lanes(x, dh * W + dw)
            if dw == 1:
                return jnp.where(keep_hi, v, 0.0)
            if dw == -1:
                return jnp.where(keep_lo, v, 0.0)
            return v

        taps = [(dh, dw) for dh in (-1, 0, 1) for dw in (-1, 0, 1)]  # kh*3+kw order

        # ---- conv1 (3x3, pad=1): 9 tiny K=C matmuls -------------------------- #
        # C is tiny and not sublane-aligned; stacking 9*C rows would need
        # misaligned sublane concats.  The matmul that matters (conv2) is fused.
        h1 = jnp.zeros((E, HW), jnp.float32)
        for t, (dh, dw) in enumerate(taps):
            h1 = h1 + jnp.dot(w1_ref[t],
                              tap_shift(mag, dh, dw).astype(mm_dtype),
                              preferred_element_type=jnp.float32)
        h1 = jnp.maximum(h1 + b1_ref[...], 0.0)               # (E, HW) f32

        # ---- conv2 (3x3, pad=1): single fused (E, 9E) @ (9E, HW) matmul ------ #
        x2 = jnp.concatenate([tap_shift(h1, dh, dw) for dh, dw in taps],
                             axis=0).astype(mm_dtype)         # (9E, HW)
        h2 = jnp.dot(w2_ref[...], x2, preferred_element_type=jnp.float32)
        h2 = jnp.maximum(h2 + b2_ref[...], 0.0)               # (E, HW) f32

        # ---- conv3 (1x1, E->1) matvec; sparsity folded into w3/b3 ------------ #
        logits = jnp.dot(w3_ref[...], h2,
                         preferred_element_type=jnp.float32) + b3_ref[...]  # (1, HW)

        # ---- row softmax (over W) on the flat lane axis ----------------------- #
        # Hypercube all-reduce inside each aligned W-lane segment: avoids any
        # (1, HW) -> (H, W) relayout; the shifted "partner" lane is always in
        # the same segment so the zero-fill is never selected.
        def seg_allreduce(v, combine):
            out = v
            k = 1
            while k < W:
                partner = jnp.where((col & k) == 0,
                                    _shift_lanes(out, k),      # out[i + k]
                                    _shift_lanes(out, -k))     # out[i - k]
                out = combine(out, partner)
                k *= 2
            return out

        m = seg_allreduce(logits, jnp.maximum)
        e = jnp.exp(logits - m)                                # f32 (EUP)
        denom = seg_allreduce(e, jnp.add)
        sw_ref[0] = e * pl.reciprocal(denom, approx=True)      # (1, HW)

    return kernel


def encoder_softmax(dft_real, dft_imag, params, *, matmul_dtype=jnp.bfloat16):
    """dft real/imag (B, C, HW) f32 -> sparse weights (B, HW) f32 (row softmax)."""
    B, C, HW = dft_real.shape
    E = params["w2"].shape[0]
    # Recover H, W: the module's softmax is over the last (W) axis.
    W = params["_W"]
    H = HW // W
    assert H * W == HW
    assert W > 0 and (W & (W - 1)) == 0, "in-kernel row softmax needs power-of-two W"

    s = params["sparsity"][0]
    # Weight re-layout (torch OIHW -> channel-major matmul layouts); tiny, jit'd.
    w1t = jnp.transpose(params["w1"], (2, 3, 0, 1)).reshape(9, E, C).astype(matmul_dtype)
    w2t = jnp.transpose(params["w2"], (0, 2, 3, 1)).reshape(E, 9 * E).astype(matmul_dtype)
    w3t = (params["w3"][:, :, 0, 0] * s).astype(jnp.float32)          # (1, E), f32 logits
    b1c = params["b1"].reshape(E, 1).astype(jnp.float32)
    b2c = params["b2"].reshape(E, 1).astype(jnp.float32)
    b3c = (params["b3"] * s).reshape(1, 1).astype(jnp.float32)

    sw = pl.pallas_call(
        _make_encoder_kernel(H, W),
        out_shape=jax.ShapeDtypeStruct((B, 1, HW), jnp.float32),
        grid=(B,),
        in_specs=[
            pl.BlockSpec((1, C, HW), lambda b: (b, 0, 0)),     # dft.real
            pl.BlockSpec((1, C, HW), lambda b: (b, 0, 0)),     # dft.imag
            pl.BlockSpec((9, E, C), lambda b: (0, 0, 0)),      # w1 (per-tap)
            pl.BlockSpec((E, 1), lambda b: (0, 0)),            # b1
            pl.BlockSpec((E, 9 * E), lambda b: (0, 0)),        # w2 (fused 9E)
            pl.BlockSpec((E, 1), lambda b: (0, 0)),            # b2
            pl.BlockSpec((1, E), lambda b: (0, 0)),            # w3 * sparsity
            pl.BlockSpec((1, 1), lambda b: (0, 0)),            # b3 * sparsity
        ],
        out_specs=pl.BlockSpec((1, 1, HW), lambda b: (b, 0, 0)),
        compiler_params=pltpu.CompilerParams(
            dimension_semantics=("parallel",),     # B=2 keeps both v7x cores busy
            vmem_limit_bytes=48 * 1024 * 1024),    # <= 48 MiB (v7x has 64 MiB)
    )(dft_real, dft_imag, w1t, b1c, w2t, b2c, w3t, b3c)
    return sw[:, 0, :]                                         # (B, HW)


# --------------------------------------------------------------------------- #
# Kernel 2: spectral filter.  filtered_dft = sw * dft (sw real, >= 0), so no   #
# angle/cos/sin; lane-dense per-batch blocks, sw VMEM-resident, outputs alias  #
# the inputs (no new HBM buffers for the filtered spectrum).                   #
# --------------------------------------------------------------------------- #
def _spectral_filter_kernel(dr_ref, di_ref, sw_ref, or_ref, oi_ref):
    s = sw_ref[...]                 # (B, HW) resident; row c pairs with channel c
    or_ref[0] = dr_ref[0] * s
    oi_ref[0] = di_ref[0] * s


def apply_spectral_filter(dft_real, dft_imag, sw):
    """Reproduces the PyTorch broadcast magnitude(B,C,H,W) * sw(B,H,W): channel c
    pairs with sw row c, which requires B == C (or B == 1)."""
    B, C, HW = dft_real.shape
    x_spec = pl.BlockSpec((1, C, HW), lambda b: (b, 0, 0))
    sw_spec = pl.BlockSpec((B, HW), lambda b: (0, 0))          # whole sw, VMEM-resident
    fr, fi = pl.pallas_call(
        _spectral_filter_kernel,
        out_shape=(jax.ShapeDtypeStruct((B, C, HW), jnp.float32),
                   jax.ShapeDtypeStruct((B, C, HW), jnp.float32)),
        grid=(B,),
        in_specs=[x_spec, x_spec, sw_spec],
        out_specs=(x_spec, x_spec),
        input_output_aliases={0: 0, 1: 1},                     # scale in place
        compiler_params=pltpu.CompilerParams(dimension_semantics=("parallel",)),
    )(dft_real, dft_imag, sw)
    return fr, fi


# --------------------------------------------------------------------------- #
# Full forward pass (FFT glue + Pallas kernels).                               #
# --------------------------------------------------------------------------- #
def frequency_filter_forward(img, params, *, matmul_dtype=jnp.bfloat16):
    B, C, H, W = img.shape
    # The module's broadcast (B,C,H,W)*(B,H,W) pairs channel c with sw row c.
    assert B == C or B == 1, "module broadcast needs B == C (or B == 1)"
    params = dict(params, _W=W)

    dft = jnp.fft.fft2(img, axes=(-2, -1))     # TODO(synk): no Pallas FFT primitive
    dr = jnp.real(dft).reshape(B, C, H * W)    # lane-dense: minor dim = H*W
    di = jnp.imag(dft).reshape(B, C, H * W)

    sw = encoder_softmax(dr, di, params, matmul_dtype=matmul_dtype)   # (B, HW)

    # mag * sw * exp(i*phase) == sw * dft  (exact; sw is real and >= 0).
    fr, fi = apply_spectral_filter(dr, di, sw)
    filtered = jax.lax.complex(fr, fi).reshape(B, C, H, W)
    return jnp.fft.ifft2(filtered, axes=(-2, -1)).real


# --------------------------------------------------------------------------- #
# Deterministic parameter init (PyTorch layouts: OIHW conv weights).           #
# --------------------------------------------------------------------------- #
def init_params(key, in_channels, embed_dim):
    k = jax.random.split(key, 6)
    w1 = jax.random.normal(k[0], (embed_dim, in_channels, 3, 3), jnp.float32)
    w1 = w1 * (1.0 / (3 * 3 * in_channels) ** 0.5)
    b1 = jax.random.normal(k[1], (embed_dim,), jnp.float32) * 0.01
    w2 = jax.random.normal(k[2], (embed_dim, embed_dim, 3, 3), jnp.float32)
    w2 = w2 * (1.0 / (3 * 3 * embed_dim) ** 0.5)
    b2 = jax.random.normal(k[3], (embed_dim,), jnp.float32) * 0.01
    w3 = jax.random.normal(k[4], (1, embed_dim, 1, 1), jnp.float32)
    w3 = w3 * (1.0 / embed_dim ** 0.5)
    b3 = jax.random.normal(k[5], (1,), jnp.float32) * 0.01
    return {"w1": w1, "b1": b1, "w2": w2, "b2": b2, "w3": w3, "b3": b3,
            "sparsity": jnp.array([10.0], jnp.float32)}


# --------------------------------------------------------------------------- #
# Pure-XLA reference mirroring the PyTorch module (for a correctness check).   #
# --------------------------------------------------------------------------- #
def reference_forward(img, params):
    dn = ("NCHW", "OIHW", "NCHW")
    dft = jnp.fft.fft2(img, axes=(-2, -1))
    mag = jnp.abs(dft)
    phase = jnp.angle(dft)
    y = jax.lax.conv_general_dilated(mag, params["w1"], (1, 1), "SAME",
                                     dimension_numbers=dn)
    y = jax.nn.relu(y + params["b1"][None, :, None, None])
    y = jax.lax.conv_general_dilated(y, params["w2"], (1, 1), "SAME",
                                     dimension_numbers=dn)
    y = jax.nn.relu(y + params["b2"][None, :, None, None])
    emb = jax.lax.conv_general_dilated(y, params["w3"], (1, 1), "SAME",
                                       dimension_numbers=dn)
    emb = emb + params["b3"][None, :, None, None]
    sw = jax.nn.softmax(emb * params["sparsity"][0], axis=-1)    # (B,1,H,W)
    fmag = mag * sw[:, 0]
    fdft = fmag * jnp.exp(1j * phase)
    return jnp.fft.ifft2(fdft, axes=(-2, -1)).real


if __name__ == "__main__":
    # Small shapes consistent with the module.  The PyTorch broadcast
    # magnitude(B,C,H,W) * sw(B,H,W) requires B == C, so use B = C = 2.
    B, C, H, W, E = 2, 2, 16, 16, 64   # E = embed_dim (module default 64)

    key = jax.random.PRNGKey(0)
    kx, kp = jax.random.split(key)
    x = jax.random.normal(kx, (B, C, H, W), jnp.float32)
    params = init_params(kp, C, E)

    # Performance configuration: bf16 MXU operands, f32 accumulation/softmax.
    out = jax.jit(frequency_filter_forward)(x, params)
    out = jax.block_until_ready(out)
    assert out.shape == (B, C, H, W), out.shape
    assert out.dtype == jnp.float32, out.dtype
    assert bool(jnp.all(jnp.isfinite(out)))

    # Tight numerical check in f32-matmul mode against the pure-XLA reference.
    # (sparsity=10 makes each softmax row nearly one-hot, so bf16 logit noise
    # can legitimately flip near-ties; the f32 mode isolates implementation
    # correctness from that quantization effect.)
    fwd_f32 = jax.jit(functools.partial(frequency_filter_forward,
                                        matmul_dtype=jnp.float32))
    out_f32 = jax.block_until_ready(fwd_f32(x, params))
    ref = jax.block_until_ready(jax.jit(reference_forward)(x, params))
    rel_err = float(jnp.max(jnp.abs(out_f32 - ref)) / (jnp.max(jnp.abs(ref)) + 1e-6))
    assert rel_err < 5e-2, rel_err

    print("KERNEL_OK")
</pallas_src>

<mosaic_0001>
module attributes {stable_mosaic.version = 11 : i64} {
  func.func @kernel(%arg0: i32, %arg1: memref<1x2x256xf32, #tpu.memory_space<vmem>>, %arg2: memref<1x2x256xf32, #tpu.memory_space<vmem>>, %arg3: memref<9x64x2xbf16, #tpu.memory_space<vmem>>, %arg4: memref<64x1xf32, #tpu.memory_space<vmem>>, %arg5: memref<64x576xbf16, #tpu.memory_space<vmem>>, %arg6: memref<64x1xf32, #tpu.memory_space<vmem>>, %arg7: memref<1x64xf32, #tpu.memory_space<vmem>>, %arg8: memref<1x1xf32, #tpu.memory_space<vmem>>, %arg9: memref<1x1x256xf32, #tpu.memory_space<vmem>>) attributes {dimension_semantics = [#tpu.dimension_semantics<parallel>], iteration_bounds = array<i64: 2>, scalar_prefetch = 0 : i64, scratch_operands = 0 : i64, tpu.core_type = #tpu.core_type<tc>, window_params = [{transform_indices = @transform_0, window_bounds = array<i64: 1, 2, 256>}, {transform_indices = @transform_1, window_bounds = array<i64: 1, 2, 256>}, {pipeline_mode = #tpu.pipeline_mode<synchronous>, transform_indices = @transform_2, window_bounds = array<i64: 9, 64, 2>}, {pipeline_mode = #tpu.pipeline_mode<synchronous>, transform_indices = @transform_3, window_bounds = array<i64: 64, 1>}, {pipeline_mode = #tpu.pipeline_mode<synchronous>, transform_indices = @transform_4, window_bounds = array<i64: 64, 576>}, {pipeline_mode = #tpu.pipeline_mode<synchronous>, transform_indices = @transform_5, window_bounds = array<i64: 64, 1>}, {pipeline_mode = #tpu.pipeline_mode<synchronous>, transform_indices = @transform_6, window_bounds = array<i64: 1, 64>}, {pipeline_mode = #tpu.pipeline_mode<synchronous>, transform_indices = @transform_7, window_bounds = array<i64: 1, 1>}, {transform_indices = @transform_8, window_bounds = array<i64: 1, 1, 256>}]} {
    %c0 = arith.constant 0 : index
    %c0_0 = arith.constant 0 : index
    %c0_1 = arith.constant 0 : index
    %0 = vector.load %arg1[%c0, %c0_0, %c0_1] : memref<1x2x256xf32, #tpu.memory_space<vmem>>, vector<1x2x256xf32>
    %1 = vector.shape_cast %0 : vector<1x2x256xf32> to vector<2x256xf32>
    %c0_2 = arith.constant 0 : index
    %c0_3 = arith.constant 0 : index
    %c0_4 = arith.constant 0 : index
    %2 = vector.load %arg2[%c0_2, %c0_3, %c0_4] : memref<1x2x256xf32, #tpu.memory_space<vmem>>, vector<1x2x256xf32>
    %3 = vector.shape_cast %2 : vector<1x2x256xf32> to vector<2x256xf32>
    %4 = arith.mulf %1, %1 : vector<2x256xf32>
    %5 = arith.mulf %3, %3 : vector<2x256xf32>
    %6 = arith.addf %4, %5 : vector<2x256xf32>
    %7 = math.sqrt %6 : vector<2x256xf32>
    %8 = tpu.iota {dimensions = array<i32: 1>} : vector<1x256xi32>
    %c15_i32 = arith.constant 15 : i32
    %9 = vector.broadcast %c15_i32 : i32 to vector<1x256xi32>
    %10 = arith.andi %8, %9 : vector<1x256xi32>
    %c0_i32 = arith.constant 0 : i32
    %11 = vector.broadcast %c0_i32 : i32 to vector<1x256xi32>
    %12 = arith.cmpi ne, %10, %11 : vector<1x256xi32>
    %c15_i32_5 = arith.constant 15 : i32
    %13 = vector.broadcast %c15_i32_5 : i32 to vector<1x256xi32>
    %14 = arith.cmpi ne, %10, %13 : vector<1x256xi32>
    %cst = arith.constant 0.000000e+00 : f32
    %15 = vector.broadcast %cst : f32 to vector<64x256xf32>
    %c0_6 = arith.constant 0 : index
    %c0_7 = arith.constant 0 : index
    %c0_8 = arith.constant 0 : index
    %16 = vector.load %arg3[%c0_6, %c0_7, %c0_8] : memref<9x64x2xbf16, #tpu.memory_space<vmem>>, vector<1x64x2xbf16>
    %17 = vector.shape_cast %16 : vector<1x64x2xbf16> to vector<64x2xbf16>
    %cst_9 = arith.constant 0.000000e+00 : f32
    %18 = vector.broadcast %cst_9 : f32 to vector<2x17xf32>
    %19 = vector.extract_strided_slice %7 {offsets = [0, 0], sizes = [2, 239], strides = [1, 1]} : vector<2x256xf32> to vector<2x239xf32>
    %20 = tpu.concatenate %18, %19 in 1 : vector<2x17xf32>, vector<2x239xf32> -> vector<2x256xf32>
    %cst_10 = arith.constant 0.000000e+00 : f32
    %21 = vector.shape_cast %12 : vector<1x256xi1> to vector<1x256xi1>
    %22 = vector.broadcast %21 : vector<1x256xi1> to vector<2x256xi1>
    %23 = vector.broadcast %cst_10 : f32 to vector<2x256xf32>
    %24 = arith.select %22, %20, %23 : vector<2x256xi1>, vector<2x256xf32>
    %25 = arith.truncf %24 : vector<2x256xf32> to vector<2x256xbf16>
    %cst_11 = arith.constant dense<0.000000e+00> : vector<64x256xf32>
    %26 = tpu.matmul %17, %25, %cst_11 {dimension_numbers = #tpu.dot_dimension_numbers<[1], [0], [0], [1], [0, 0, 1, 1], [], []>} : vector<64x2xbf16>, vector<2x256xbf16>, vector<64x256xf32> -> vector<64x256xf32>
    %27 = arith.addf %15, %26 : vector<64x256xf32>
    %c1 = arith.constant 1 : index
    %c0_12 = arith.constant 0 : index
    %c0_13 = arith.constant 0 : index
    %28 = vector.load %arg3[%c1, %c0_12, %c0_13] : memref<9x64x2xbf16, #tpu.memory_space<vmem>>, vector<1x64x2xbf16>
    %29 = vector.shape_cast %28 : vector<1x64x2xbf16> to vector<64x2xbf16>
    %cst_14 = arith.constant 0.000000e+00 : f32
    %30 = vector.broadcast %cst_14 : f32 to vector<2x16xf32>
    %31 = vector.extract_strided_slice %7 {offsets = [0, 0], sizes = [2, 240], strides = [1, 1]} : vector<2x256xf32> to vector<2x240xf32>
    %32 = tpu.concatenate %30, %31 in 1 : vector<2x16xf32>, vector<2x240xf32> -> vector<2x256xf32>
    %33 = arith.truncf %32 : vector<2x256xf32> to vector<2x256xbf16>
    %cst_15 = arith.constant dense<0.000000e+00> : vector<64x256xf32>
    %34 = tpu.matmul %29, %33, %cst_15 {dimension_numbers = #tpu.dot_dimension_numbers<[1], [0], [0], [1], [0, 0, 1, 1], [], []>} : vector<64x2xbf16>, vector<2x256xbf16>, vector<64x256xf32> -> vector<64x256xf32>
    %35 = arith.addf %27, %34 : vector<64x256xf32>
    %c2 = arith.constant 2 : index
    %c0_16 = arith.constant 0 : index
    %c0_17 = arith.constant 0 : index
    %36 = vector.load %arg3[%c2, %c0_16, %c0_17] : memref<9x64x2xbf16, #tpu.memory_space<vmem>>, vector<1x64x2xbf16>
    %37 = vector.shape_cast %36 : vector<1x64x2xbf16> to vector<64x2xbf16>
    %cst_18 = arith.constant 0.000000e+00 : f32
    %38 = vector.broadcast %cst_18 : f32 to vector<2x15xf32>
    %39 = vector.extract_strided_slice %7 {offsets = [0, 0], sizes = [2, 241], strides = [1, 1]} : vector<2x256xf32> to vector<2x241xf32>
    %40 = tpu.concatenate %38, %39 in 1 : vector<2x15xf32>, vector<2x241xf32> -> vector<2x256xf32>
    %cst_19 = arith.constant 0.000000e+00 : f32
    %41 = vector.shape_cast %14 : vector<1x256xi1> to vector<1x256xi1>
    %42 = vector.broadcast %41 : vector<1x256xi1> to vector<2x256xi1>
    %43 = vector.broadcast %cst_19 : f32 to vector<2x256xf32>
    %44 = arith.select %42, %40, %43 : vector<2x256xi1>, vector<2x256xf32>
    %45 = arith.truncf %44 : vector<2x256xf32> to vector<2x256xbf16>
    %cst_20 = arith.constant dense<0.000000e+00> : vector<64x256xf32>
    %46 = tpu.matmul %37, %45, %cst_20 {dimension_numbers = #tpu.dot_dimension_numbers<[1], [0], [0], [1], [0, 0, 1, 1], [], []>} : vector<64x2xbf16>, vector<2x256xbf16>, vector<64x256xf32> -> vector<64x256xf32>
    %47 = arith.addf %35, %46 : vector<64x256xf32>
    %c3 = arith.constant 3 : index
    %c0_21 = arith.constant 0 : index
    %c0_22 = arith.constant 0 : index
    %48 = vector.load %arg3[%c3, %c0_21, %c0_22] : memref<9x64x2xbf16, #tpu.memory_space<vmem>>, vector<1x64x2xbf16>
    %49 = vector.shape_cast %48 : vector<1x64x2xbf16> to vector<64x2xbf16>
    %cst_23 = arith.constant 0.000000e+00 : f32
    %50 = vector.broadcast %cst_23 : f32 to vector<2x1xf32>
    %51 = vector.extract_strided_slice %7 {offsets = [0, 0], sizes = [2, 255], strides = [1, 1]} : vector<2x256xf32> to vector<2x255xf32>
    %52 = tpu.concatenate %50, %51 in 1 : vector<2x1xf32>, vector<2x255xf32> -> vector<2x256xf32>
    %cst_24 = arith.constant 0.000000e+00 : f32
    %53 = vector.shape_cast %12 : vector<1x256xi1> to vector<1x256xi1>
    %54 = vector.broadcast %53 : vector<1x256xi1> to vector<2x256xi1>
    %55 = vector.broadcast %cst_24 : f32 to vector<2x256xf32>
    %56 = arith.select %54, %52, %55 : vector<2x256xi1>, vector<2x256xf32>
    %57 = arith.truncf %56 : vector<2x256xf32> to vector<2x256xbf16>
    %cst_25 = arith.constant dense<0.000000e+00> : vector<64x256xf32>
    %58 = tpu.matmul %49, %57, %cst_25 {dimension_numbers = #tpu.dot_dimension_numbers<[1], [0], [0], [1], [0, 0, 1, 1], [], []>} : vector<64x2xbf16>, vector<2x256xbf16>, vector<64x256xf32> -> vector<64x256xf32>
    %59 = arith.addf %47, %58 : vector<64x256xf32>
    %c4 = arith.constant 4 : index
    %c0_26 = arith.constant 0 : index
    %c0_27 = arith.constant 0 : index
    %60 = vector.load %arg3[%c4, %c0_26, %c0_27] : memref<9x64x2xbf16, #tpu.memory_space<vmem>>, vector<1x64x2xbf16>
    %61 = vector.shape_cast %60 : vector<1x64x2xbf16> to vector<64x2xbf16>
    %62 = arith.truncf %7 : vector<2x256xf32> to vector<2x256xbf16>
    %cst_28 = arith.constant dense<0.000000e+00> : vector<64x256xf32>
    %63 = tpu.matmul %61, %62, %cst_28 {dimension_numbers = #tpu.dot_dimension_numbers<[1], [0], [0], [1], [0, 0, 1, 1], [], []>} : vector<64x2xbf16>, vector<2x256xbf16>, vector<64x256xf32> -> vector<64x256xf32>
    %64 = arith.addf %59, %63 : vector<64x256xf32>
    %c5 = arith.constant 5 : index
    %c0_29 = arith.constant 0 : index
    %c0_30 = arith.constant 0 : index
    %65 = vector.load %arg3[%c5, %c0_29, %c0_30] : memref<9x64x2xbf16, #tpu.memory_space<vmem>>, vector<1x64x2xbf16>
    %66 = vector.shape_cast %65 : vector<1x64x2xbf16> to vector<64x2xbf16>
    %67 = vector.extract_strided_slice %7 {offsets = [0, 1], sizes = [2, 255], strides = [1, 1]} : vector<2x256xf32> to vector<2x255xf32>
    %cst_31 = arith.constant 0.000000e+00 : f32
    %68 = vector.broadcast %cst_31 : f32 to vector<2x1xf32>
    %69 = tpu.concatenate %67, %68 in 1 : vector<2x255xf32>, vector<2x1xf32> -> vector<2x256xf32>
    %cst_32 = arith.constant 0.000000e+00 : f32
    %70 = vector.shape_cast %14 : vector<1x256xi1> to vector<1x256xi1>
    %71 = vector.broadcast %70 : vector<1x256xi1> to vector<2x256xi1>
    %72 = vector.broadcast %cst_32 : f32 to vector<2x256xf32>
    %73 = arith.select %71, %69, %72 : vector<2x256xi1>, vector<2x256xf32>
    %74 = arith.truncf %73 : vector<2x256xf32> to vector<2x256xbf16>
    %cst_33 = arith.constant dense<0.000000e+00> : vector<64x256xf32>
    %75 = tpu.matmul %66, %74, %cst_33 {dimension_numbers = #tpu.dot_dimension_numbers<[1], [0], [0], [1], [0, 0, 1, 1], [], []>} : vector<64x2xbf16>, vector<2x256xbf16>, vector<64x256xf32> -> vector<64x256xf32>
    %76 = arith.addf %64, %75 : vector<64x256xf32>
    %c6 = arith.constant 6 : index
    %c0_34 = arith.constant 0 : index
    %c0_35 = arith.constant 0 : index
    %77 = vector.load %arg3[%c6, %c0_34, %c0_35] : memref<9x64x2xbf16, #tpu.memory_space<vmem>>, vector<1x64x2xbf16>
    %78 = vector.shape_cast %77 : vector<1x64x2xbf16> to vector<64x2xbf16>
    %79 = vector.extract_strided_slice %7 {offsets = [0, 15], sizes = [2, 241], strides = [1, 1]} : vector<2x256xf32> to vector<2x241xf32>
    %cst_36 = arith.constant 0.000000e+00 : f32
    %80 = vector.broadcast %cst_36 : f32 to vector<2x15xf32>
    %81 = tpu.concatenate %79, %80 in 1 : vector<2x241xf32>, vector<2x15xf32> -> vector<2x256xf32>
    %cst_37 = arith.constant 0.000000e+00 : f32
    %82 = vector.shape_cast %12 : vector<1x256xi1> to vector<1x256xi1>
    %83 = vector.broadcast %82 : vector<1x256xi1> to vector<2x256xi1>
    %84 = vector.broadcast %cst_37 : f32 to vector<2x256xf32>
    %85 = arith.select %83, %81, %84 : vector<2x256xi1>, vector<2x256xf32>
    %86 = arith.truncf %85 : vector<2x256xf32> to vector<2x256xbf16>
    %cst_38 = arith.constant dense<0.000000e+00> : vector<64x256xf32>
    %87 = tpu.matmul %78, %86, %cst_38 {dimension_numbers = #tpu.dot_dimension_numbers<[1], [0], [0], [1], [0, 0, 1, 1], [], []>} : vector<64x2xbf16>, vector<2x256xbf16>, vector<64x256xf32> -> vector<64x256xf32>
    %88 = arith.addf %76, %87 : vector<64x256xf32>
    %c7 = arith.constant 7 : index
    %c0_39 = arith.constant 0 : index
    %c0_40 = arith.constant 0 : index
    %89 = vector.load %arg3[%c7, %c0_39, %c0_40] : memref<9x64x2xbf16, #tpu.memory_space<vmem>>, vector<1x64x2xbf16>
    %90 = vector.shape_cast %89 : vector<1x64x2xbf16> to vector<64x2xbf16>
    %91 = vector.extract_strided_slice %7 {offsets = [0, 16], sizes = [2, 240], strides = [1, 1]} : vector<2x256xf32> to vector<2x240xf32>
    %cst_41 = arith.constant 0.000000e+00 : f32
    %92 = vector.broadcast %cst_41 : f32 to vector<2x16xf32>
    %93 = tpu.concatenate %91, %92 in 1 : vector<2x240xf32>, vector<2x16xf32> -> vector<2x256xf32>
    %94 = arith.truncf %93 : vector<2x256xf32> to vector<2x256xbf16>
    %cst_42 = arith.constant dense<0.000000e+00> : vector<64x256xf32>
    %95 = tpu.matmul %90, %94, %cst_42 {dimension_numbers = #tpu.dot_dimension_numbers<[1], [0], [0], [1], [0, 0, 1, 1], [], []>} : vector<64x2xbf16>, vector<2x256xbf16>, vector<64x256xf32> -> vector<64x256xf32>
    %96 = arith.addf %88, %95 : vector<64x256xf32>
    %c8 = arith.constant 8 : index
    %c0_43 = arith.constant 0 : index
    %c0_44 = arith.constant 0 : index
    %97 = vector.load %arg3[%c8, %c0_43, %c0_44] : memref<9x64x2xbf16, #tpu.memory_space<vmem>>, vector<1x64x2xbf16>
    %98 = vector.shape_cast %97 : vector<1x64x2xbf16> to vector<64x2xbf16>
    %99 = vector.extract_strided_slice %7 {offsets = [0, 17], sizes = [2, 239], strides = [1, 1]} : vector<2x256xf32> to vector<2x239xf32>
    %cst_45 = arith.constant 0.000000e+00 : f32
    %100 = vector.broadcast %cst_45 : f32 to vector<2x17xf32>
    %101 = tpu.concatenate %99, %100 in 1 : vector<2x239xf32>, vector<2x17xf32> -> vector<2x256xf32>
    %cst_46 = arith.constant 0.000000e+00 : f32
    %102 = vector.shape_cast %14 : vector<1x256xi1> to vector<1x256xi1>
    %103 = vector.broadcast %102 : vector<1x256xi1> to vector<2x256xi1>
    %104 = vector.broadcast %cst_46 : f32 to vector<2x256xf32>
    %105 = arith.select %103, %101, %104 : vector<2x256xi1>, vector<2x256xf32>
    %106 = arith.truncf %105 : vector<2x256xf32> to vector<2x256xbf16>
    %cst_47 = arith.constant dense<0.000000e+00> : vector<64x256xf32>
    %107 = tpu.matmul %98, %106, %cst_47 {dimension_numbers = #tpu.dot_dimension_numbers<[1], [0], [0], [1], [0, 0, 1, 1], [], []>} : vector<64x2xbf16>, vector<2x256xbf16>, vector<64x256xf32> -> vector<64x256xf32>
    %108 = arith.addf %96, %107 : vector<64x256xf32>
    %c0_48 = arith.constant 0 : index
    %c0_49 = arith.constant 0 : index
    %109 = vector.load %arg4[%c0_48, %c0_49] : memref<64x1xf32, #tpu.memory_space<vmem>>, vector<64x1xf32>
    %110 = vector.broadcast %109 : vector<64x1xf32> to vector<64x256xf32>
    %111 = arith.addf %108, %110 : vector<64x256xf32>
    %cst_50 = arith.constant 0.000000e+00 : f32
    %112 = vector.broadcast %cst_50 : f32 to vector<64x256xf32>
    %113 = arith.maximumf %111, %112 : vector<64x256xf32>
    %cst_51 = arith.constant 0.000000e+00 : f32
    %114 = vector.broadcast %cst_51 : f32 to vector<64x17xf32>
    %115 = vector.extract_strided_slice %113 {offsets = [0, 0], sizes = [64, 239], strides = [1, 1]} : vector<64x256xf32> to vector<64x239xf32>
    %116 = tpu.concatenate %114, %115 in 1 : vector<64x17xf32>, vector<64x239xf32> -> vector<64x256xf32>
    %cst_52 = arith.constant 0.000000e+00 : f32
    %117 = vector.shape_cast %12 : vector<1x256xi1> to vector<1x256xi1>
    %118 = vector.broadcast %117 : vector<1x256xi1> to vector<64x256xi1>
    %119 = vector.broadcast %cst_52 : f32 to vector<64x256xf32>
    %120 = arith.select %118, %116, %119 : vector<64x256xi1>, vector<64x256xf32>
    %cst_53 = arith.constant 0.000000e+00 : f32
    %121 = vector.broadcast %cst_53 : f32 to vector<64x16xf32>
    %122 = vector.extract_strided_slice %113 {offsets = [0, 0], sizes = [64, 240], strides = [1, 1]} : vector<64x256xf32> to vector<64x240xf32>
    %123 = tpu.concatenate %121, %122 in 1 : vector<64x16xf32>, vector<64x240xf32> -> vector<64x256xf32>
    %cst_54 = arith.constant 0.000000e+00 : f32
    %124 = vector.broadcast %cst_54 : f32 to vector<64x15xf32>
    %125 = vector.extract_strided_slice %113 {offsets = [0, 0], sizes = [64, 241], strides = [1, 1]} : vector<64x256xf32> to vector<64x241xf32>
    %126 = tpu.concatenate %124, %125 in 1 : vector<64x15xf32>, vector<64x241xf32> -> vector<64x256xf32>
    %cst_55 = arith.constant 0.000000e+00 : f32
    %127 = vector.shape_cast %14 : vector<1x256xi1> to vector<1x256xi1>
    %128 = vector.broadcast %127 : vector<1x256xi1> to vector<64x256xi1>
    %129 = vector.broadcast %cst_55 : f32 to vector<64x256xf32>
    %130 = arith.select %128, %126, %129 : vector<64x256xi1>, vector<64x256xf32>
    %cst_56 = arith.constant 0.000000e+00 : f32
    %131 = vector.broadcast %cst_56 : f32 to vector<64x1xf32>
    %132 = vector.extract_strided_slice %113 {offsets = [0, 0], sizes = [64, 255], strides = [1, 1]} : vector<64x256xf32> to vector<64x255xf32>
    %133 = tpu.concatenate %131, %132 in 1 : vector<64x1xf32>, vector<64x255xf32> -> vector<64x256xf32>
    %cst_57 = arith.constant 0.000000e+00 : f32
    %134 = vector.shape_cast %12 : vector<1x256xi1> to vector<1x256xi1>
    %135 = vector.broadcast %134 : vector<1x256xi1> to vector<64x256xi1>
    %136 = vector.broadcast %cst_57 : f32 to vector<64x256xf32>
    %137 = arith.select %135, %133, %136 : vector<64x256xi1>, vector<64x256xf32>
    %138 = vector.extract_strided_slice %113 {offsets = [0, 1], sizes = [64, 255], strides = [1, 1]} : vector<64x256xf32> to vector<64x255xf32>
    %cst_58 = arith.constant 0.000000e+00 : f32
    %139 = vector.broadcast %cst_58 : f32 to vector<64x1xf32>
    %140 = tpu.concatenate %138, %139 in 1 : vector<64x255xf32>, vector<64x1xf32> -> vector<64x256xf32>
    %cst_59 = arith.constant 0.000000e+00 : f32
    %141 = vector.shape_cast %14 : vector<1x256xi1> to vector<1x256xi1>
    %142 = vector.broadcast %141 : vector<1x256xi1> to vector<64x256xi1>
    %143 = vector.broadcast %cst_59 : f32 to vector<64x256xf32>
    %144 = arith.select %142, %140, %143 : vector<64x256xi1>, vector<64x256xf32>
    %145 = vector.extract_strided_slice %113 {offsets = [0, 15], sizes = [64, 241], strides = [1, 1]} : vector<64x256xf32> to vector<64x241xf32>
    %cst_60 = arith.constant 0.000000e+00 : f32
    %146 = vector.broadcast %cst_60 : f32 to vector<64x15xf32>
    %147 = tpu.concatenate %145, %146 in 1 : vector<64x241xf32>, vector<64x15xf32> -> vector<64x256xf32>
    %cst_61 = arith.constant 0.000000e+00 : f32
    %148 = vector.shape_cast %12 : vector<1x256xi1> to vector<1x256xi1>
    %149 = vector.broadcast %148 : vector<1x256xi1> to vector<64x256xi1>
    %150 = vector.broadcast %cst_61 : f32 to vector<64x256xf32>
    %151 = arith.select %149, %147, %150 : vector<64x256xi1>, vector<64x256xf32>
    %152 = vector.extract_strided_slice %113 {offsets = [0, 16], sizes = [64, 240], strides = [1, 1]} : vector<64x256xf32> to vector<64x240xf32>
    %cst_62 = arith.constant 0.000000e+00 : f32
    %153 = vector.broadcast %cst_62 : f32 to vector<64x16xf32>
    %154 = tpu.concatenate %152, %153 in 1 : vector<64x240xf32>, vector<64x16xf32> -> vector<64x256xf32>
    %155 = vector.extract_strided_slice %113 {offsets = [0, 17], sizes = [64, 239], strides = [1, 1]} : vector<64x256xf32> to vector<64x239xf32>
    %cst_63 = arith.constant 0.000000e+00 : f32
    %156 = vector.broadcast %cst_63 : f32 to vector<64x17xf32>
    %157 = tpu.concatenate %155, %156 in 1 : vector<64x239xf32>, vector<64x17xf32> -> vector<64x256xf32>
    %cst_64 = arith.constant 0.000000e+00 : f32
    %158 = vector.shape_cast %14 : vector<1x256xi1> to vector<1x256xi1>
    %159 = vector.broadcast %158 : vector<1x256xi1> to vector<64x256xi1>
    %160 = vector.broadcast %cst_64 : f32 to vector<64x256xf32>
    %161 = arith.select %159, %157, %160 : vector<64x256xi1>, vector<64x256xf32>
    %162 = tpu.concatenate %120, %123, %130, %137, %113, %144, %151, %154, %161 in 0 : vector<64x256xf32>, vector<64x256xf32>, vector<64x256xf32>, vector<64x256xf32>, vector<64x256xf32>, vector<64x256xf32>, vector<64x256xf32>, vector<64x256xf32>, vector<64x256xf32> -> vector<576x256xf32>
    %163 = arith.truncf %162 : vector<576x256xf32> to vector<576x256xbf16>
    %c0_65 = arith.constant 0 : index
    %c0_66 = arith.constant 0 : index
    %164 = vector.load %arg5[%c0_65, %c0_66] : memref<64x576xbf16, #tpu.memory_space<vmem>>, vector<64x576xbf16>
    %cst_67 = arith.constant dense<0.000000e+00> : vector<64x256xf32>
    %165 = tpu.matmul %164, %163, %cst_67 {dimension_numbers = #tpu.dot_dimension_numbers<[1], [0], [0], [1], [0, 0, 1, 1], [], []>} : vector<64x576xbf16>, vector<576x256xbf16>, vector<64x256xf32> -> vector<64x256xf32>
    %c0_68 = arith.constant 0 : index
    %c0_69 = arith.constant 0 : index
    %166 = vector.load %arg6[%c0_68, %c0_69] : memref<64x1xf32, #tpu.memory_space<vmem>>, vector<64x1xf32>
    %167 = vector.broadcast %166 : vector<64x1xf32> to vector<64x256xf32>
    %168 = arith.addf %165, %167 : vector<64x256xf32>
    %cst_70 = arith.constant 0.000000e+00 : f32
    %169 = vector.broadcast %cst_70 : f32 to vector<64x256xf32>
    %170 = arith.maximumf %168, %169 : vector<64x256xf32>
    %c0_71 = arith.constant 0 : index
    %c0_72 = arith.constant 0 : index
    %171 = vector.load %arg7[%c0_71, %c0_72] : memref<1x64xf32, #tpu.memory_space<vmem>>, vector<1x64xf32>
    %cst_73 = arith.constant dense<0.000000e+00> : vector<1x256xf32>
    %172 = tpu.matmul %171, %170, %cst_73 {dimension_numbers = #tpu.dot_dimension_numbers<[1], [0], [0], [1], [0, 0, 1, 1], [], []>} : vector<1x64xf32>, vector<64x256xf32>, vector<1x256xf32> -> vector<1x256xf32>
    %c0_74 = arith.constant 0 : index
    %c0_75 = arith.constant 0 : index
    %173 = vector.load %arg8[%c0_74, %c0_75] : memref<1x1xf32, #tpu.memory_space<vmem>>, vector<1x1xf32>
    %174 = vector.broadcast %173 : vector<1x1xf32> to vector<1x256xf32>
    %175 = arith.addf %172, %174 : vector<1x256xf32>
    %c1_i32 = arith.constant 1 : i32
    %176 = vector.broadcast %c1_i32 : i32 to vector<1x256xi32>
    %177 = arith.andi %10, %176 : vector<1x256xi32>
    %c0_i32_76 = arith.constant 0 : i32
    %178 = vector.broadcast %c0_i32_76 : i32 to vector<1x256xi32>
    %179 = arith.cmpi eq, %177, %178 : vector<1x256xi32>
    %180 = vector.extract_strided_slice %175 {offsets = [0, 1], sizes = [1, 255], strides = [1, 1]} : vector<1x256xf32> to vector<1x255xf32>
    %cst_77 = arith.constant 0.000000e+00 : f32
    %181 = vector.broadcast %cst_77 : f32 to vector<1x1xf32>
    %182 = tpu.concatenate %180, %181 in 1 : vector<1x255xf32>, vector<1x1xf32> -> vector<1x256xf32>
    %cst_78 = arith.constant 0.000000e+00 : f32
    %183 = vector.broadcast %cst_78 : f32 to vector<1x1xf32>
    %184 = vector.extract_strided_slice %175 {offsets = [0, 0], sizes = [1, 255], strides = [1, 1]} : vector<1x256xf32> to vector<1x255xf32>
    %185 = tpu.concatenate %183, %184 in 1 : vector<1x1xf32>, vector<1x255xf32> -> vector<1x256xf32>
    %186 = arith.select %179, %182, %185 : vector<1x256xi1>, vector<1x256xf32>
    %187 = arith.maximumf %175, %186 : vector<1x256xf32>
    %c2_i32 = arith.constant 2 : i32
    %188 = vector.broadcast %c2_i32 : i32 to vector<1x256xi32>
    %189 = arith.andi %10, %188 : vector<1x256xi32>
    %c0_i32_79 = arith.constant 0 : i32
    %190 = vector.broadcast %c0_i32_79 : i32 to vector<1x256xi32>
    %191 = arith.cmpi eq, %189, %190 : vector<1x256xi32>
    %192 = vector.extract_strided_slice %187 {offsets = [0, 2], sizes = [1, 254], strides = [1, 1]} : vector<1x256xf32> to vector<1x254xf32>
    %cst_80 = arith.constant 0.000000e+00 : f32
    %193 = vector.broadcast %cst_80 : f32 to vector<1x2xf32>
    %194 = tpu.concatenate %192, %193 in 1 : vector<1x254xf32>, vector<1x2xf32> -> vector<1x256xf32>
    %cst_81 = arith.constant 0.000000e+00 : f32
    %195 = vector.broadcast %cst_81 : f32 to vector<1x2xf32>
    %196 = vector.extract_strided_slice %187 {offsets = [0, 0], sizes = [1, 254], strides = [1, 1]} : vector<1x256xf32> to vector<1x254xf32>
    %197 = tpu.concatenate %195, %196 in 1 : vector<1x2xf32>, vector<1x254xf32> -> vector<1x256xf32>
    %198 = arith.select %191, %194, %197 : vector<1x256xi1>, vector<1x256xf32>
    %199 = arith.maximumf %187, %198 : vector<1x256xf32>
    %c4_i32 = arith.constant 4 : i32
    %200 = vector.broadcast %c4_i32 : i32 to vector<1x256xi32>
    %201 = arith.andi %10, %200 : vector<1x256xi32>
    %c0_i32_82 = arith.constant 0 : i32
    %202 = vector.broadcast %c0_i32_82 : i32 to vector<1x256xi32>
    %203 = arith.cmpi eq, %201, %202 : vector<1x256xi32>
    %204 = vector.extract_strided_slice %199 {offsets = [0, 4], sizes = [1, 252], strides = [1, 1]} : vector<1x256xf32> to vector<1x252xf32>
    %cst_83 = arith.constant 0.000000e+00 : f32
    %205 = vector.broadcast %cst_83 : f32 to vector<1x4xf32>
    %206 = tpu.concatenate %204, %205 in 1 : vector<1x252xf32>, vector<1x4xf32> -> vector<1x256xf32>
    %cst_84 = arith.constant 0.000000e+00 : f32
    %207 = vector.broadcast %cst_84 : f32 to vector<1x4xf32>
    %208 = vector.extract_strided_slice %199 {offsets = [0, 0], sizes = [1, 252], strides = [1, 1]} : vector<1x256xf32> to vector<1x252xf32>
    %209 = tpu.concatenate %207, %208 in 1 : vector<1x4xf32>, vector<1x252xf32> -> vector<1x256xf32>
    %210 = arith.select %203, %206, %209 : vector<1x256xi1>, vector<1x256xf32>
    %211 = arith.maximumf %199, %210 : vector<1x256xf32>
    %c8_i32 = arith.constant 8 : i32
    %212 = vector.broadcast %c8_i32 : i32 to vector<1x256xi32>
    %213 = arith.andi %10, %212 : vector<1x256xi32>
    %c0_i32_85 = arith.constant 0 : i32
    %214 = vector.broadcast %c0_i32_85 : i32 to vector<1x256xi32>
    %215 = arith.cmpi eq, %213, %214 : vector<1x256xi32>
    %216 = vector.extract_strided_slice %211 {offsets = [0, 8], sizes = [1, 248], strides = [1, 1]} : vector<1x256xf32> to vector<1x248xf32>
    %cst_86 = arith.constant 0.000000e+00 : f32
    %217 = vector.broadcast %cst_86 : f32 to vector<1x8xf32>
    %218 = tpu.concatenate %216, %217 in 1 : vector<1x248xf32>, vector<1x8xf32> -> vector<1x256xf32>
    %cst_87 = arith.constant 0.000000e+00 : f32
    %219 = vector.broadcast %cst_87 : f32 to vector<1x8xf32>
    %220 = vector.extract_strided_slice %211 {offsets = [0, 0], sizes = [1, 248], strides = [1, 1]} : vector<1x256xf32> to vector<1x248xf32>
    %221 = tpu.concatenate %219, %220 in 1 : vector<1x8xf32>, vector<1x248xf32> -> vector<1x256xf32>
    %222 = arith.select %215, %218, %221 : vector<1x256xi1>, vector<1x256xf32>
    %223 = arith.maximumf %211, %222 : vector<1x256xf32>
    %224 = arith.subf %175, %223 : vector<1x256xf32>
    %225 = math.exp %224 : vector<1x256xf32>
    %c1_i32_88 = arith.constant 1 : i32
    %226 = vector.broadcast %c1_i32_88 : i32 to vector<1x256xi32>
    %227 = arith.andi %10, %226 : vector<1x256xi32>
    %c0_i32_89 = arith.constant 0 : i32
    %228 = vector.broadcast %c0_i32_89 : i32 to vector<1x256xi32>
    %229 = arith.cmpi eq, %227, %228 : vector<1x256xi32>
    %230 = vector.extract_strided_slice %225 {offsets = [0, 1], sizes = [1, 255], strides = [1, 1]} : vector<1x256xf32> to vector<1x255xf32>
    %cst_90 = arith.constant 0.000000e+00 : f32
    %231 = vector.broadcast %cst_90 : f32 to vector<1x1xf32>
    %232 = tpu.concatenate %230, %231 in 1 : vector<1x255xf32>, vector<1x1xf32> -> vector<1x256xf32>
    %cst_91 = arith.constant 0.000000e+00 : f32
    %233 = vector.broadcast %cst_91 : f32 to vector<1x1xf32>
    %234 = vector.extract_strided_slice %225 {offsets = [0, 0], sizes = [1, 255], strides = [1, 1]} : vector<1x256xf32> to vector<1x255xf32>
    %235 = tpu.concatenate %233, %234 in 1 : vector<1x1xf32>, vector<1x255xf32> -> vector<1x256xf32>
    %236 = arith.select %229, %232, %235 : vector<1x256xi1>, vector<1x256xf32>
    %237 = arith.addf %225, %236 : vector<1x256xf32>
    %c2_i32_92 = arith.constant 2 : i32
    %238 = vector.broadcast %c2_i32_92 : i32 to vector<1x256xi32>
    %239 = arith.andi %10, %238 : vector<1x256xi32>
    %c0_i32_93 = arith.constant 0 : i32
    %240 = vector.broadcast %c0_i32_93 : i32 to vector<1x256xi32>
    %241 = arith.cmpi eq, %239, %240 : vector<1x256xi32>
    %242 = vector.extract_strided_slice %237 {offsets = [0, 2], sizes = [1, 254], strides = [1, 1]} : vector<1x256xf32> to vector<1x254xf32>
    %cst_94 = arith.constant 0.000000e+00 : f32
    %243 = vector.broadcast %cst_94 : f32 to vector<1x2xf32>
    %244 = tpu.concatenate %242, %243 in 1 : vector<1x254xf32>, vector<1x2xf32> -> vector<1x256xf32>
    %cst_95 = arith.constant 0.000000e+00 : f32
    %245 = vector.broadcast %cst_95 : f32 to vector<1x2xf32>
    %246 = vector.extract_strided_slice %237 {offsets = [0, 0], sizes = [1, 254], strides = [1, 1]} : vector<1x256xf32> to vector<1x254xf32>
    %247 = tpu.concatenate %245, %246 in 1 : vector<1x2xf32>, vector<1x254xf32> -> vector<1x256xf32>
    %248 = arith.select %241, %244, %247 : vector<1x256xi1>, vector<1x256xf32>
    %249 = arith.addf %237, %248 : vector<1x256xf32>
    %c4_i32_96 = arith.constant 4 : i32
    %250 = vector.broadcast %c4_i32_96 : i32 to vector<1x256xi32>
    %251 = arith.andi %10, %250 : vector<1x256xi32>
    %c0_i32_97 = arith.constant 0 : i32
    %252 = vector.broadcast %c0_i32_97 : i32 to vector<1x256xi32>
    %253 = arith.cmpi eq, %251, %252 : vector<1x256xi32>
    %254 = vector.extract_strided_slice %249 {offsets = [0, 4], sizes = [1, 252], strides = [1, 1]} : vector<1x256xf32> to vector<1x252xf32>
    %cst_98 = arith.constant 0.000000e+00 : f32
    %255 = vector.broadcast %cst_98 : f32 to vector<1x4xf32>
    %256 = tpu.concatenate %254, %255 in 1 : vector<1x252xf32>, vector<1x4xf32> -> vector<1x256xf32>
    %cst_99 = arith.constant 0.000000e+00 : f32
    %257 = vector.broadcast %cst_99 : f32 to vector<1x4xf32>
    %258 = vector.extract_strided_slice %249 {offsets = [0, 0], sizes = [1, 252], strides = [1, 1]} : vector<1x256xf32> to vector<1x252xf32>
    %259 = tpu.concatenate %257, %258 in 1 : vector<1x4xf32>, vector<1x252xf32> -> vector<1x256xf32>
    %260 = arith.select %253, %256, %259 : vector<1x256xi1>, vector<1x256xf32>
    %261 = arith.addf %249, %260 : vector<1x256xf32>
    %c8_i32_100 = arith.constant 8 : i32
    %262 = vector.broadcast %c8_i32_100 : i32 to vector<1x256xi32>
    %263 = arith.andi %10, %262 : vector<1x256xi32>
    %c0_i32_101 = arith.constant 0 : i32
    %264 = vector.broadcast %c0_i32_101 : i32 to vector<1x256xi32>
    %265 = arith.cmpi eq, %263, %264 : vector<1x256xi32>
    %266 = vector.extract_strided_slice %261 {offsets = [0, 8], sizes = [1, 248], strides = [1, 1]} : vector<1x256xf32> to vector<1x248xf32>
    %cst_102 = arith.constant 0.000000e+00 : f32
    %267 = vector.broadcast %cst_102 : f32 to vector<1x8xf32>
    %268 = tpu.concatenate %266, %267 in 1 : vector<1x248xf32>, vector<1x8xf32> -> vector<1x256xf32>
    %cst_103 = arith.constant 0.000000e+00 : f32
    %269 = vector.broadcast %cst_103 : f32 to vector<1x8xf32>
    %270 = vector.extract_strided_slice %261 {offsets = [0, 0], sizes = [1, 248], strides = [1, 1]} : vector<1x256xf32> to vector<1x248xf32>
    %271 = tpu.concatenate %269, %270 in 1 : vector<1x8xf32>, vector<1x248xf32> -> vector<1x256xf32>
    %272 = arith.select %265, %268, %271 : vector<1x256xi1>, vector<1x256xf32>
    %273 = arith.addf %261, %272 : vector<1x256xf32>
    %274 = tpu.reciprocal %273 {approx = true} : vector<1x256xf32> -> vector<1x256xf32>
    %275 = arith.mulf %225, %274 : vector<1x256xf32>
    %c0_104 = arith.constant 0 : index
    %c0_105 = arith.constant 0 : index
    %c0_106 = arith.constant 0 : index
    %276 = vector.load %arg9[%c0_104, %c0_105, %c0_106] : memref<1x1x256xf32, #tpu.memory_space<vmem>>, vector<1x1x256xf32>
    %277 = vector.shape_cast %276 : vector<1x1x256xf32> to vector<1x256xf32>
    %278 = vector.shape_cast %275 : vector<1x256xf32> to vector<1x1x256xf32>
    tpu.vector_store %arg9[%c0_104, %c0_105, %c0_106], %278 {strides = array<i32>} : memref<1x1x256xf32, #tpu.memory_space<vmem>>, vector<1x1x256xf32>,
    return
  }
  func.func @transform_0(%arg0: i32) -> (i32, i32, i32) {
    %c0_i32 = arith.constant 0 : i32
    %c0_i32_0 = arith.constant 0 : i32
    %c0_i32_1 = arith.constant 0 : i32
    return %arg0, %c0_i32, %c0_i32_0 : i32, i32, i32
  }
  func.func @transform_1(%arg0: i32) -> (i32, i32, i32) {
    %c0_i32 = arith.constant 0 : i32
    %c0_i32_0 = arith.constant 0 : i32
    %c0_i32_1 = arith.constant 0 : i32
    return %arg0, %c0_i32, %c0_i32_0 : i32, i32, i32
  }
  func.func @transform_2(%arg0: i32) -> (i32, i32, i32) {
    %c0_i32 = arith.constant 0 : i32
    %c0_i32_0 = arith.constant 0 : i32
    %c0_i32_1 = arith.constant 0 : i32
    %c0_i32_2 = arith.constant 0 : i32
    return %c0_i32, %c0_i32_0, %c0_i32_1 : i32, i32, i32
  }
  func.func @transform_3(%arg0: i32) -> (i32, i32) {
    %c0_i32 = arith.constant 0 : i32
    %c0_i32_0 = arith.constant 0 : i32
    %c0_i32_1 = arith.constant 0 : i32
    return %c0_i32, %c0_i32_0 : i32, i32
  }
  func.func @transform_4(%arg0: i32) -> (i32, i32) {
    %c0_i32 = arith.constant 0 : i32
    %c0_i32_0 = arith.constant 0 : i32
    %c0_i32_1 = arith.constant 0 : i32
    return %c0_i32, %c0_i32_0 : i32, i32
  }
  func.func @transform_5(%arg0: i32) -> (i32, i32) {
    %c0_i32 = arith.constant 0 : i32
    %c0_i32_0 = arith.constant 0 : i32
    %c0_i32_1 = arith.constant 0 : i32
    return %c0_i32, %c0_i32_0 : i32, i32
  }
  func.func @transform_6(%arg0: i32) -> (i32, i32) {
    %c0_i32 = arith.constant 0 : i32
    %c0_i32_0 = arith.constant 0 : i32
    %c0_i32_1 = arith.constant 0 : i32
    return %c0_i32, %c0_i32_0 : i32, i32
  }
  func.func @transform_7(%arg0: i32) -> (i32, i32) {
    %c0_i32 = arith.constant 0 : i32
    %c0_i32_0 = arith.constant 0 : i32
    %c0_i32_1 = arith.constant 0 : i32
    return %c0_i32, %c0_i32_0 : i32, i32
  }
  func.func @transform_8(%arg0: i32) -> (i32, i32, i32) {
    %c0_i32 = arith.constant 0 : i32
    %c0_i32_0 = arith.constant 0 : i32
    %c0_i32_1 = arith.constant 0 : i32
    return %arg0, %c0_i32, %c0_i32_0 : i32, i32, i32
  }
}

module attributes {stable_mosaic.version = 11 : i64} {
  func.func @_spectral_filter_kernel(%arg0: i32, %arg1: memref<1x2x256xf32, #tpu.memory_space<vmem>>, %arg2: memref<1x2x256xf32, #tpu.memory_space<vmem>>, %arg3: memref<2x256xf32, #tpu.memory_space<vmem>>, %arg4: memref<1x2x256xf32, #tpu.memory_space<vmem>>, %arg5: memref<1x2x256xf32, #tpu.memory_space<vmem>>) attributes {dimension_semantics = [#tpu.dimension_semantics<parallel>], iteration_bounds = array<i64: 2>, scalar_prefetch = 0 : i64, scratch_operands = 0 : i64, tpu.core_type = #tpu.core_type<tc>, window_params = [{transform_indices = @transform_0, window_bounds = array<i64: 1, 2, 256>}, {transform_indices = @transform_1, window_bounds = array<i64: 1, 2, 256>}, {pipeline_mode = #tpu.pipeline_mode<synchronous>, transform_indices = @transform_2, window_bounds = array<i64: 2, 256>}, {transform_indices = @transform_3, window_bounds = array<i64: 1, 2, 256>}, {transform_indices = @transform_4, window_bounds = array<i64: 1, 2, 256>}]} {
    %c0 = arith.constant 0 : index
    %c0_0 = arith.constant 0 : index
    %0 = vector.load %arg3[%c0, %c0_0] : memref<2x256xf32, #tpu.memory_space<vmem>>, vector<2x256xf32>
    %c0_1 = arith.constant 0 : index
    %c0_2 = arith.constant 0 : index
    %c0_3 = arith.constant 0 : index
    %1 = vector.load %arg1[%c0_1, %c0_2, %c0_3] : memref<1x2x256xf32, #tpu.memory_space<vmem>>, vector<1x2x256xf32>
    %2 = vector.shape_cast %1 : vector<1x2x256xf32> to vector<2x256xf32>
    %3 = arith.mulf %2, %0 : vector<2x256xf32>
    %c0_4 = arith.constant 0 : index
    %c0_5 = arith.constant 0 : index
    %c0_6 = arith.constant 0 : index
    %4 = vector.load %arg4[%c0_4, %c0_5, %c0_6] : memref<1x2x256xf32, #tpu.memory_space<vmem>>, vector<1x2x256xf32>
    %5 = vector.shape_cast %4 : vector<1x2x256xf32> to vector<2x256xf32>
    %6 = vector.shape_cast %3 : vector<2x256xf32> to vector<1x2x256xf32>
    tpu.vector_store %arg4[%c0_4, %c0_5, %c0_6], %6 {strides = array<i32>} : memref<1x2x256xf32, #tpu.memory_space<vmem>>, vector<1x2x256xf32>,
    %c0_7 = arith.constant 0 : index
    %c0_8 = arith.constant 0 : index
    %c0_9 = arith.constant 0 : index
    %7 = vector.load %arg2[%c0_7, %c0_8, %c0_9] : memref<1x2x256xf32, #tpu.memory_space<vmem>>, vector<1x2x256xf32>
    %8 = vector.shape_cast %7 : vector<1x2x256xf32> to vector<2x256xf32>
    %9 = arith.mulf %8, %0 : vector<2x256xf32>
    %c0_10 = arith.constant 0 : index
    %c0_11 = arith.constant 0 : index
    %c0_12 = arith.constant 0 : index
    %10 = vector.load %arg5[%c0_10, %c0_11, %c0_12] : memref<1x2x256xf32, #tpu.memory_space<vmem>>, vector<1x2x256xf32>
    %11 = vector.shape_cast %10 : vector<1x2x256xf32> to vector<2x256xf32>
    %12 = vector.shape_cast %9 : vector<2x256xf32> to vector<1x2x256xf32>
    tpu.vector_store %arg5[%c0_10, %c0_11, %c0_12], %12 {strides = array<i32>} : memref<1x2x256xf32, #tpu.memory_space<vmem>>, vector<1x2x256xf32>,
    return
  }
  func.func @transform_0(%arg0: i32) -> (i32, i32, i32) {
    %c0_i32 = arith.constant 0 : i32
    %c0_i32_0 = arith.constant 0 : i32
    %c0_i32_1 = arith.constant 0 : i32
    return %arg0, %c0_i32, %c0_i32_0 : i32, i32, i32
  }
  func.func @transform_1(%arg0: i32) -> (i32, i32, i32) {
    %c0_i32 = arith.constant 0 : i32
    %c0_i32_0 = arith.constant 0 : i32
    %c0_i32_1 = arith.constant 0 : i32
    return %arg0, %c0_i32, %c0_i32_0 : i32, i32, i32
  }
  func.func @transform_2(%arg0: i32) -> (i32, i32) {
    %c0_i32 = arith.constant 0 : i32
    %c0_i32_0 = arith.constant 0 : i32
    %c0_i32_1 = arith.constant 0 : i32
    return %c0_i32, %c0_i32_0 : i32, i32
  }
  func.func @transform_3(%arg0: i32) -> (i32, i32, i32) {
    %c0_i32 = arith.constant 0 : i32
    %c0_i32_0 = arith.constant 0 : i32
    %c0_i32_1 = arith.constant 0 : i32
    return %arg0, %c0_i32, %c0_i32_0 : i32, i32, i32
  }
  func.func @transform_4(%arg0: i32) -> (i32, i32, i32) {
    %c0_i32 = arith.constant 0 : i32
    %c0_i32_0 = arith.constant 0 : i32
    %c0_i32_1 = arith.constant 0 : i32
    return %arg0, %c0_i32, %c0_i32_0 : i32, i32, i32
  }
}

</mosaic_0001>

<llo_original>
// kernel: frequency_filter_forward.3
$region0: #{frequency_filter_forward.3}
  #allocation0 [shape = 'u32[]', space=smem, size = 0x4, offset = 0x4, fixed_abs, tag = 'smem constant byte address 0x4 - core index']
  #allocation1 [shape = 'u32[144,128]{1,0:T(1,128)}', space=vmem, size = 0x12000, scoped, tag = 'internal scratch']
  %s0 = inlined_call_operand.vmem [shape: f32[2,2,256], index: 0, kind: input, shape index: {}, may-alias: {0,3}]
  %s1 = inlined_call_operand.vmem [shape: f32[2,2,256], index: 1, kind: input, shape index: {}, may-alias: {1,4}]
  %s2 = inlined_call_operand.vmem [shape: f32[2,256], index: 2, kind: input, shape index: {}]
  %s3 = inlined_call_operand.vmem [shape: f32[2,2,256], index: 3, kind: output, shape index: {0}, may-alias: {0,3}]
  %s4 = inlined_call_operand.vmem [shape: f32[2,2,256], index: 4, kind: output, shape index: {1}, may-alias: {1,4}]
  %5 = xla_tuple %s3, %s4
  %s6 = sld [smem:[#allocation0]]
  $region53: #{frequency_filter_forward.3} parent=0
    _
  %s8 = ssub.s32 1, %s6
  %s9 = scalar_select 0, %s8, %s6
  loop: start=0, step=1, limit=4
  $region2: #{frequency_filter_forward.3} parent=0 // loop_pre_header
    _
  $region3: #{frequency_filter_forward.3} parent=0 // loop_header
    %s11 = sphi 0, %s15
    %p12 = scmp.ge.s32.totalorder %s11, 4
    %s21 = sphi 0, %s23
    %s24 = sphi 0, %s21
    %s25 = sphi 0, %s24
    %s41 = sphi 0, %s25
    %s47 = sphi 0, %s49
    %s50 = sphi 0, %s47
    %s51 = sphi 0, %s50
    %s67 = sphi 0, %s51
    %s71 = sphi 0, %s71
    %s73 = sphi 0, %s71
    %s74 = sphi 0, %s73
    %s88 = sphi 0, %s74
    %s94 = sphi 0, %s96
    %s97 = sphi 0, %s94
    %s98 = sphi 0, %s97
    %s114 = sphi 0, %s98
    %s120 = sphi 0, %s122
    %s123 = sphi 0, %s120
    %s124 = sphi 0, %s123
    %s140 = sphi 0, %s124
  $region4: #{frequency_filter_forward.3} parent=0 // loop_header_branch
    %14 = sbr.rel (%p12) target = $region8
  $region5: #{frequency_filter_forward.3} parent=0 // loop_body
    %s16 = ssub.s32 %s11, 1
    %s17 = ssub.s32 %s11, 2
    %s18 = sadd.s32 %s11, 1
    %s19 = ssub.s32 %s11, %s18
    %p20 = scmp.eq.s32.totalorder %s19, 0
    %s22 = sadd.s32 %s21, 1
    %s23 = scalar_select %p20, %s21, %s22
    %p26 = pneg %p20
    %p27 = scmp.eq.s32.totalorder %s11, 1
    %p28 = por %p26, %p27
    %p29 = scmp.ne.s32.totalorder %s21, %s24
    %p30 = scmp.eq.s32.totalorder %s11, 0
    %p31 = por %p29, %p30
    %p32 = scmp.ne.s32.totalorder %s21, %s24
    %p33 = scmp.eq.s32.totalorder %s16, 1
    %p34 = por %p32, %p33
    %p35 = scmp.ne.s32.totalorder %s24, %s25
    %p36 = scmp.eq.s32.totalorder %s16, 0
    %p37 = por %p35, %p36
    %p38 = scmp.ne.s32.totalorder %s24, %s25
    %p39 = scmp.eq.s32.totalorder %s17, 1
    %p40 = por %p38, %p39
    %p42 = scmp.ne.s32.totalorder %s25, %s41
    %p43 = scmp.eq.s32.totalorder %s17, 0
    %p44 = por %p42, %p43
    %s45 = ssub.s32 %s11, %s18
    %p46 = scmp.eq.s32.totalorder %s45, 0
    %s48 = sadd.s32 %s47, 1
    %s49 = scalar_select %p46, %s47, %s48
    %p52 = pneg %p46
    %p53 = scmp.eq.s32.totalorder %s11, 1
    %p54 = por %p52, %p53
    %p55 = scmp.ne.s32.totalorder %s47, %s50
    %p56 = scmp.eq.s32.totalorder %s11, 0
    %p57 = por %p55, %p56
    %p58 = scmp.ne.s32.totalorder %s47, %s50
    %p59 = scmp.eq.s32.totalorder %s16, 1
    %p60 = por %p58, %p59
    %p61 = scmp.ne.s32.totalorder %s50, %s51
    %p62 = scmp.eq.s32.totalorder %s16, 0
    %p63 = por %p61, %p62
    %p64 = scmp.ne.s32.totalorder %s50, %s51
    %p65 = scmp.eq.s32.totalorder %s17, 1
    %p66 = por %p64, %p65
    %p68 = scmp.ne.s32.totalorder %s51, %s67
    %p69 = scmp.eq.s32.totalorder %s17, 0
    %p70 = por %p68, %p69
    %s72 = sadd.s32 %s71, 1
    %p75 = scmp.eq.s32.totalorder %s11, 1
    %p76 = scmp.ne.s32.totalorder %s71, %s73
    %p77 = scmp.eq.s32.totalorder %s11, 0
    %p78 = por %p76, %p77
    %p79 = scmp.ne.s32.totalorder %s71, %s73
    %p80 = scmp.eq.s32.totalorder %s16, 1
    %p81 = por %p79, %p80
    %p82 = scmp.ne.s32.totalorder %s73, %s74
    %p83 = scmp.eq.s32.totalorder %s16, 0
    %p84 = por %p82, %p83
    %p85 = scmp.ne.s32.totalorder %s73, %s74
    %p86 = scmp.eq.s32.totalorder %s17, 1
    %p87 = por %p85, %p86
    %p89 = scmp.ne.s32.totalorder %s74, %s88
    %p90 = scmp.eq.s32.totalorder %s17, 0
    %p91 = por %p89, %p90
    %s92 = ssub.s32 %s11, %s18
    %p93 = scmp.eq.s32.totalorder %s92, 0
    %s95 = sadd.s32 %s94, 1
    %s96 = scalar_select %p93, %s94, %s95
    %p99 = pneg %p93
    %p100 = scmp.eq.s32.totalorder %s11, 1
    %p101 = por %p99, %p100
    %p102 = scmp.ne.s32.totalorder %s94, %s97
    %p103 = scmp.eq.s32.totalorder %s11, 0
    %p104 = por %p102, %p103
    %p105 = scmp.ne.s32.totalorder %s94, %s97
    %p106 = scmp.eq.s32.totalorder %s16, 1
    %p107 = por %p105, %p106
    %p108 = scmp.ne.s32.totalorder %s97, %s98
    %p109 = scmp.eq.s32.totalorder %s16, 0
    %p110 = por %p108, %p109
    %p111 = scmp.ne.s32.totalorder %s97, %s98
    %p112 = scmp.eq.s32.totalorder %s17, 1
    %p113 = por %p111, %p112
    %p115 = scmp.ne.s32.totalorder %s98, %s114
    %p116 = scmp.eq.s32.totalorder %s17, 0
    %p117 = por %p115, %p116
    %s118 = ssub.s32 %s11, %s18
    %p119 = scmp.eq.s32.totalorder %s118, 0
    %s121 = sadd.s32 %s120, 1
    %s122 = scalar_select %p119, %s120, %s121
    %p125 = pneg %p119
    %p126 = scmp.eq.s32.totalorder %s11, 1
    %p127 = por %p125, %p126
    %p128 = scmp.ne.s32.totalorder %s120, %s123
    %p129 = scmp.eq.s32.totalorder %s11, 0
    %p130 = por %p128, %p129
    %p131 = scmp.ne.s32.totalorder %s120, %s123
    %p132 = scmp.eq.s32.totalorder %s16, 1
    %p133 = por %p131, %p132
    %p134 = scmp.ne.s32.totalorder %s123, %s124
    %p135 = scmp.eq.s32.totalorder %s16, 0
    %p136 = por %p134, %p135
    %p137 = scmp.ne.s32.totalorder %s123, %s124
    %p138 = scmp.eq.s32.totalorder %s17, 1
    %p139 = por %p137, %p138
    %p141 = scmp.ne.s32.totalorder %s124, %s140
    %p142 = scmp.eq.s32.totalorder %s17, 0
    %p143 = por %p141, %p142
    %p144 = scmp.le.s32.totalorder 1, %s11
    %p145 = scmp.lt.s32.totalorder %s11, 3
    %p146 = pnand %p144, %p145
    %p147 = pneg %p146
    // Predicated region
    $region9: #{frequency_filter_forward.3} parent=5 // pred_check
      _
    $region10: #{frequency_filter_forward.3} parent=5 // pred_check_branch
      %149 = sbr.rel (%p146) target = $region12
    $region11: #{frequency_filter_forward.3} parent=5 // pred_region
      %s150 = ssub.s32 %s11, 1
      // Predicated region
      $region13: #{frequency_filter_forward.3} parent=11 // pred_check
        %p151 = pneg %p84
      $region14: #{frequency_filter_forward.3} parent=11 // pred_check_branch
        %153 = sbr.rel (%p151) target = $region16
      $region15: #{frequency_filter_forward.3} parent=11 // pred_region
        _
      $region16: #{frequency_filter_forward.3} parent=11 // pred_fallthru
        _
    $region12: #{frequency_filter_forward.3} parent=5 // pred_fallthru
      _
    %p154 = scmp.lt.s32.totalorder %s11, 2
    // Predicated region
    $region17: #{frequency_filter_forward.3} parent=5 // pred_check
      %p155 = pneg %p154
    $region18: #{frequency_filter_forward.3} parent=5 // pred_check_branch
      %157 = sbr.rel (%p155) target = $region20
    $region19: #{frequency_filter_forward.3} parent=5 // pred_region
      // Predicated region
      $region21: #{frequency_filter_forward.3} parent=19 // pred_check
        %p158 = pneg %p31
      $region22: #{frequency_filter_forward.3} parent=19 // pred_check_branch
        %160 = sbr.rel (%p158) target = $region24
      $region23: #{frequency_filter_forward.3} parent=19 // pred_region
        %p161 = scmp.lt.s32.totalorder %s11, 1
        %s162 = scalar_select %p161, %s11, 1
        %s163 = smul.addr %s162, 2
        %s164 = smul.addr %s163, 2
        %s165 = scalar_lea.vmem %s0, %s164
      $region24: #{frequency_filter_forward.3} parent=19 // pred_fallthru
        _
      // Predicated region
      $region25: #{frequency_filter_forward.3} parent=19 // pred_check
        %p166 = pneg %p57
      $region26: #{frequency_filter_forward.3} parent=19 // pred_check_branch
        %168 = sbr.rel (%p166) target = $region28
      $region27: #{frequency_filter_forward.3} parent=19 // pred_region
        %p169 = scmp.lt.s32.totalorder %s11, 1
        %s170 = scalar_select %p169, %s11, 1
        %s171 = smul.addr %s170, 2
        %s172 = smul.addr %s171, 2
        %s173 = scalar_lea.vmem %s1, %s172
      $region28: #{frequency_filter_forward.3} parent=19 // pred_fallthru
        _
    $region20: #{frequency_filter_forward.3} parent=5 // pred_fallthru
      _
    %p174 = scmp.le.s32.totalorder 1, %s11
    %p175 = scmp.lt.s32.totalorder %s11, 3
    %p176 = pnand %p174, %p175
    %p177 = pneg %p176
    // Predicated region
    $region29: #{frequency_filter_forward.3} parent=5 // pred_check
      _
    $region30: #{frequency_filter_forward.3} parent=5 // pred_check_branch
      %179 = sbr.rel (%p176) target = $region32
    $region31: #{frequency_filter_forward.3} parent=5 // pred_region
      %s180 = ssub.s32 %s11, 1
      %p181 = scmp.lt.s32.totalorder %s16, 1
      %s182 = scalar_select %p181, %s16, 1
      %s183 = smul.addr %s182, 2
      %s184 = smul.addr %s183, 2
      %s185 = scalar_lea.vmem %s0, %s184
      %p186 = pneg %p37
      %p187 = pneg %p34
      %p188 = scmp.lt.s32.totalorder %s16, 1
      %s189 = scalar_select %p188, %s16, 1
      %s190 = smul.addr %s189, 2
      %s191 = smul.addr %s190, 2
      %s192 = scalar_lea.vmem %s1, %s191
      %p193 = pneg %p63
      %p194 = pneg %p60
      %p195 = pneg %p84
      %p196 = pneg %p81
      %p197 = pneg %p110
      %p198 = pneg %p107
      %p199 = scmp.lt.s32.totalorder %s16, 1
      %s200 = scalar_select %p199, %s16, 1
      %s201 = smul.addr %s200, 2
      %s202 = smul.addr %s201, 2
      %s203 = scalar_lea.vmem %s3, %s202
      %p204 = pneg %p136
      %p205 = pneg %p133
      %p206 = scmp.lt.s32.totalorder %s16, 1
      %s207 = scalar_select %p206, %s16, 1
      %s208 = smul.addr %s207, 2
      %s209 = smul.addr %s208, 2
      %s210 = scalar_lea.vmem %s4, %s209
      %p211 = scmp.lt.s32.totalorder %s16, 1
      %s212 = scalar_select %p211, %s16, 1
      %s213 = smul.addr %s212, 2
      %s214 = smul.addr %s213, 2
      %s215 = scalar_lea.vmem %s0, %s214
      %p216 = scmp.lt.s32.totalorder %s16, 1
      %s217 = scalar_select %p216, %s16, 1
      %s218 = smul.addr %s217, 2
      %s219 = smul.addr %s218, 2
      %s220 = scalar_lea.vmem %s1, %s219
      %p221 = scmp.lt.s32.totalorder %s16, 1
      %s222 = scalar_select %p221, %s16, 1
      %s223 = smul.addr %s222, 2
      %s224 = smul.addr %s223, 2
      %s225 = scalar_lea.vmem %s3, %s224
      %p226 = scmp.lt.s32.totalorder %s16, 1
      %s227 = scalar_select %p226, %s16, 1
      %s228 = smul.addr %s227, 2
      %s229 = smul.addr %s228, 2
      %s230 = scalar_lea.vmem %s4, %s229
      %v231 = vld [vmem:[%s2] sm:$0xf]
      %v232 = vld [vmem:[%s215] sm:$0xf]
      %v233 = vmul.f32 %v232, %v231
      %234 = vst [vmem:[%s225] sm:$0xf] %v233
      %v235 = vld [vmem:[%s220] sm:$0xf]
      %v236 = vmul.f32 %v235, %v231
      %237 = vst [vmem:[%s230] sm:$0xf] %v236
      %p238 = scmp.lt.s32.totalorder %s16, 1
      %s239 = scalar_select %p238, %s16, 1
      %s240 = smul.addr %s239, 2
      %s241 = smul.addr %s240, 2
      %s242 = scalar_lea.vmem %s3, %s241
      %p243 = scmp.lt.s32.totalorder %s16, 1
      %s244 = scalar_select %p243, %s16, 1
      %s245 = smul.addr %s244, 2
      %s246 = smul.addr %s245, 2
      %s247 = scalar_lea.vmem %s4, %s246
      // Predicated region
      $region33: #{frequency_filter_forward.3} parent=31 // pred_check
        %p248 = pneg %p107
      $region34: #{frequency_filter_forward.3} parent=31 // pred_check_branch
        %250 = sbr.rel (%p248) target = $region36
      $region35: #{frequency_filter_forward.3} parent=31 // pred_region
        _
      $region36: #{frequency_filter_forward.3} parent=31 // pred_fallthru
        _
      // Predicated region
      $region37: #{frequency_filter_forward.3} parent=31 // pred_check
        %p251 = pneg %p133
      $region38: #{frequency_filter_forward.3} parent=31 // pred_check_branch
        %253 = sbr.rel (%p251) target = $region40
      $region39: #{frequency_filter_forward.3} parent=31 // pred_region
        _
      $region40: #{frequency_filter_forward.3} parent=31 // pred_fallthru
        _
    $region32: #{frequency_filter_forward.3} parent=5 // pred_fallthru
      _
    %p254 = scmp.le.s32.totalorder 2, %s11
    // Predicated region
    $region41: #{frequency_filter_forward.3} parent=5 // pred_check
      %p255 = pneg %p254
    $region42: #{frequency_filter_forward.3} parent=5 // pred_check_branch
      %257 = sbr.rel (%p255) target = $region44
    $region43: #{frequency_filter_forward.3} parent=5 // pred_region
      %s258 = ssub.s32 %s11, 2
      // Predicated region
      $region45: #{frequency_filter_forward.3} parent=43 // pred_check
        %p259 = pneg %p113
      $region46: #{frequency_filter_forward.3} parent=43 // pred_check_branch
        %261 = sbr.rel (%p259) target = $region48
      $region47: #{frequency_filter_forward.3} parent=43 // pred_region
        %p262 = scmp.lt.s32.totalorder %s17, 1
        %s263 = scalar_select %p262, %s17, 1
        %s264 = smul.addr %s263, 2
        %s265 = smul.addr %s264, 2
        %s266 = scalar_lea.vmem %s3, %s265
      $region48: #{frequency_filter_forward.3} parent=43 // pred_fallthru
        _
      // Predicated region
      $region49: #{frequency_filter_forward.3} parent=43 // pred_check
        %p267 = pneg %p139
      $region50: #{frequency_filter_forward.3} parent=43 // pred_check_branch
        %269 = sbr.rel (%p267) target = $region52
      $region51: #{frequency_filter_forward.3} parent=43 // pred_region
        %p270 = scmp.lt.s32.totalorder %s17, 1
        %s271 = scalar_select %p270, %s17, 1
        %s272 = smul.addr %s271, 2
        %s273 = smul.addr %s272, 2
        %s274 = scalar_lea.vmem %s4, %s273
      $region52: #{frequency_filter_forward.3} parent=43 // pred_fallthru
        _
    $region44: #{frequency_filter_forward.3} parent=5 // pred_fallthru
      _
  $region6: #{frequency_filter_forward.3} parent=0 // loop_footer
    %s15 = sadd.s32 1, %s11
  $region7: #{frequency_filter_forward.3} parent=0 // loop_footer_branch
    %10 = sbr.rel target = $region3
  $region8: #{frequency_filter_forward.3} parent=0 // loop_exit
    _

// kernel: frequency_filter_forward.2
$region0: #{frequency_filter_forward.2}
  #allocation0 [shape = 'u32[]', space=smem, size = 0x4, offset = 0x4, fixed_abs, tag = 'smem constant byte address 0x4 - core index']
  #allocation1 [shape = 'u32[144,128]{1,0:T(1,128)}', space=vmem, size = 0x12000, scoped, tag = 'internal scratch']
  #allocation2 [shape = 'f32[1,1]{1,0:T(1,128)S(1)}', space=vmem, size = 0x200, scoped, tag = 'scoped memory for frequency_filter_forward.2']
  %s0 = inlined_call_operand.vmem [shape: f32[2,2,256], index: 0, kind: input, shape index: {}]
  %s1 = inlined_call_operand.vmem [shape: f32[2,2,256], index: 1, kind: input, shape index: {}]
  %s2 = inlined_call_operand.vmem [shape: bf16[9,64,2], index: 2, kind: input, shape index: {}]
  %s3 = inlined_call_operand.vmem [shape: f32[64,1], index: 3, kind: input, shape index: {}]
  %s4 = inlined_call_operand.vmem [shape: bf16[64,576], index: 4, kind: input, shape index: {}]
  %s5 = inlined_call_operand.vmem [shape: f32[64,1], index: 5, kind: input, shape index: {}]
  %s6 = inlined_call_operand.vmem [shape: f32[1,64], index: 6, kind: input, shape index: {}]
  %s7 = inlined_call_operand.<no memory space> [shape: f32[1,1], index: 7, kind: input, shape index: {}]
  %s8 = inlined_call_operand.vmem [shape: f32[2,1,256], index: 8, kind: output, shape index: {}]
  %s9 = sld [smem:[#allocation0]]
  $region65: #{frequency_filter_forward.2} parent=0
    _
  %s11 = ssub.s32 1, %s9
  %s12 = scalar_select 0, %s11, %s9
  %v13 = vstv %s7
  %14 = vst [vmem:[#allocation2] sm:$0x1] %v13
  loop: start=0, step=1, limit=4
  $region2: #{frequency_filter_forward.2} parent=0 // loop_pre_header
    _
  $region3: #{frequency_filter_forward.2} parent=0 // loop_header
    %s16 = sphi 0, %s20
    %p17 = scmp.ge.s32.totalorder %s16, 4
    %s26 = sphi 0, %s28
    %s29 = sphi 0, %s26
    %s30 = sphi 0, %s29
    %s46 = sphi 0, %s30
    %s52 = sphi 0, %s54
    %s55 = sphi 0, %s52
    %s56 = sphi 0, %s55
    %s72 = sphi 0, %s56
    %s76 = sphi 0, %s76
    %s78 = sphi 0, %s76
    %s79 = sphi 0, %s78
    %s93 = sphi 0, %s79
    %s97 = sphi 0, %s97
    %s99 = sphi 0, %s97
    %s100 = sphi 0, %s99
    %s114 = sphi 0, %s100
    %s118 = sphi 0, %s118
    %s120 = sphi 0, %s118
    %s121 = sphi 0, %s120
    %s135 = sphi 0, %s121
    %s139 = sphi 0, %s139
    %s141 = sphi 0, %s139
    %s142 = sphi 0, %s141
    %s156 = sphi 0, %s142
    %s160 = sphi 0, %s160
    %s162 = sphi 0, %s160
    %s163 = sphi 0, %s162
    %s177 = sphi 0, %s163
    %s181 = sphi 0, %s181
    %s183 = sphi 0, %s181
    %s184 = sphi 0, %s183
    %s198 = sphi 0, %s184
    %s204 = sphi 0, %s206
    %s207 = sphi 0, %s204
    %s208 = sphi 0, %s207
    %s224 = sphi 0, %s208
  $region4: #{frequency_filter_forward.2} parent=0 // loop_header_branch
    %19 = sbr.rel (%p17) target = $region8
  $region5: #{frequency_filter_forward.2} parent=0 // loop_body
    %s21 = ssub.s32 %s16, 1
    %s22 = ssub.s32 %s16, 2
    %s23 = sadd.s32 %s16, 1
    %s24 = ssub.s32 %s16, %s23
    %p25 = scmp.eq.s32.totalorder %s24, 0
    %s27 = sadd.s32 %s26, 1
    %s28 = scalar_select %p25, %s26, %s27
    %p31 = pneg %p25
    %p32 = scmp.eq.s32.totalorder %s16, 1
    %p33 = por %p31, %p32
    %p34 = scmp.ne.s32.totalorder %s26, %s29
    %p35 = scmp.eq.s32.totalorder %s16, 0
    %p36 = por %p34, %p35
    %p37 = scmp.ne.s32.totalorder %s26, %s29
    %p38 = scmp.eq.s32.totalorder %s21, 1
    %p39 = por %p37, %p38
    %p40 = scmp.ne.s32.totalorder %s29, %s30
    %p41 = scmp.eq.s32.totalorder %s21, 0
    %p42 = por %p40, %p41
    %p43 = scmp.ne.s32.totalorder %s29, %s30
    %p44 = scmp.eq.s32.totalorder %s22, 1
    %p45 = por %p43, %p44
    %p47 = scmp.ne.s32.totalorder %s30, %s46
    %p48 = scmp.eq.s32.totalorder %s22, 0
    %p49 = por %p47, %p48
    %s50 = ssub.s32 %s16, %s23
    %p51 = scmp.eq.s32.totalorder %s50, 0
    %s53 = sadd.s32 %s52, 1
    %s54 = scalar_select %p51, %s52, %s53
    %p57 = pneg %p51
    %p58 = scmp.eq.s32.totalorder %s16, 1
    %p59 = por %p57, %p58
    %p60 = scmp.ne.s32.totalorder %s52, %s55
    %p61 = scmp.eq.s32.totalorder %s16, 0
    %p62 = por %p60, %p61
    %p63 = scmp.ne.s32.totalorder %s52, %s55
    %p64 = scmp.eq.s32.totalorder %s21, 1
    %p65 = por %p63, %p64
    %p66 = scmp.ne.s32.totalorder %s55, %s56
    %p67 = scmp.eq.s32.totalorder %s21, 0
    %p68 = por %p66, %p67
    %p69 = scmp.ne.s32.totalorder %s55, %s56
    %p70 = scmp.eq.s32.totalorder %s22, 1
    %p71 = por %p69, %p70
    %p73 = scmp.ne.s32.totalorder %s56, %s72
    %p74 = scmp.eq.s32.totalorder %s22, 0
    %p75 = por %p73, %p74
    %s77 = sadd.s32 %s76, 1
    %p80 = scmp.eq.s32.totalorder %s16, 1
    %p81 = scmp.ne.s32.totalorder %s76, %s78
    %p82 = scmp.eq.s32.totalorder %s16, 0
    %p83 = por %p81, %p82
    %p84 = scmp.ne.s32.totalorder %s76, %s78
    %p85 = scmp.eq.s32.totalorder %s21, 1
    %p86 = por %p84, %p85
    %p87 = scmp.ne.s32.totalorder %s78, %s79
    %p88 = scmp.eq.s32.totalorder %s21, 0
    %p89 = por %p87, %p88
    %p90 = scmp.ne.s32.totalorder %s78, %s79
    %p91 = scmp.eq.s32.totalorder %s22, 1
    %p92 = por %p90, %p91
    %p94 = scmp.ne.s32.totalorder %s79, %s93
    %p95 = scmp.eq.s32.totalorder %s22, 0
    %p96 = por %p94, %p95
    %s98 = sadd.s32 %s97, 1
    %p101 = scmp.eq.s32.totalorder %s16, 1
    %p102 = scmp.ne.s32.totalorder %s97, %s99
    %p103 = scmp.eq.s32.totalorder %s16, 0
    %p104 = por %p102, %p103
    %p105 = scmp.ne.s32.totalorder %s97, %s99
    %p106 = scmp.eq.s32.totalorder %s21, 1
    %p107 = por %p105, %p106
    %p108 = scmp.ne.s32.totalorder %s99, %s100
    %p109 = scmp.eq.s32.totalorder %s21, 0
    %p110 = por %p108, %p109
    %p111 = scmp.ne.s32.totalorder %s99, %s100
    %p112 = scmp.eq.s32.totalorder %s22, 1
    %p113 = por %p111, %p112
    %p115 = scmp.ne.s32.totalorder %s100, %s114
    %p116 = scmp.eq.s32.totalorder %s22, 0
    %p117 = por %p115, %p116
    %s119 = sadd.s32 %s118, 1
    %p122 = scmp.eq.s32.totalorder %s16, 1
    %p123 = scmp.ne.s32.totalorder %s118, %s120
    %p124 = scmp.eq.s32.totalorder %s16, 0
    %p125 = por %p123, %p124
    %p126 = scmp.ne.s32.totalorder %s118, %s120
    %p127 = scmp.eq.s32.totalorder %s21, 1
    %p128 = por %p126, %p127
    %p129 = scmp.ne.s32.totalorder %s120, %s121
    %p130 = scmp.eq.s32.totalorder %s21, 0
    %p131 = por %p129, %p130
    %p132 = scmp.ne.s32.totalorder %s120, %s121
    %p133 = scmp.eq.s32.totalorder %s22, 1
    %p134 = por %p132, %p133
    %p136 = scmp.ne.s32.totalorder %s121, %s135
    %p137 = scmp.eq.s32.totalorder %s22, 0
    %p138 = por %p136, %p137
    %s140 = sadd.s32 %s139, 1
    %p143 = scmp.eq.s32.totalorder %s16, 1
    %p144 = scmp.ne.s32.totalorder %s139, %s141
    %p145 = scmp.eq.s32.totalorder %s16, 0
    %p146 = por %p144, %p145
    %p147 = scmp.ne.s32.totalorder %s139, %s141
    %p148 = scmp.eq.s32.totalorder %s21, 1
    %p149 = por %p147, %p148
    %p150 = scmp.ne.s32.totalorder %s141, %s142
    %p151 = scmp.eq.s32.totalorder %s21, 0
    %p152 = por %p150, %p151
    %p153 = scmp.ne.s32.totalorder %s141, %s142
    %p154 = scmp.eq.s32.totalorder %s22, 1
    %p155 = por %p153, %p154
    %p157 = scmp.ne.s32.totalorder %s142, %s156
    %p158 = scmp.eq.s32.totalorder %s22, 0
    %p159 = por %p157, %p158
    %s161 = sadd.s32 %s160, 1
    %p164 = scmp.eq.s32.totalorder %s16, 1
    %p165 = scmp.ne.s32.totalorder %s160, %s162
    %p166 = scmp.eq.s32.totalorder %s16, 0
    %p167 = por %p165, %p166
    %p168 = scmp.ne.s32.totalorder %s160, %s162
    %p169 = scmp.eq.s32.totalorder %s21, 1
    %p170 = por %p168, %p169
    %p171 = scmp.ne.s32.totalorder %s162, %s163
    %p172 = scmp.eq.s32.totalorder %s21, 0
    %p173 = por %p171, %p172
    %p174 = scmp.ne.s32.totalorder %s162, %s163
    %p175 = scmp.eq.s32.totalorder %s22, 1
    %p176 = por %p174, %p175
    %p178 = scmp.ne.s32.totalorder %s163, %s177
    %p179 = scmp.eq.s32.totalorder %s22, 0
    %p180 = por %p178, %p179
    %s182 = sadd.s32 %s181, 1
    %p185 = scmp.eq.s32.totalorder %s16, 1
    %p186 = scmp.ne.s32.totalorder %s181, %s183
    %p187 = scmp.eq.s32.totalorder %s16, 0
    %p188 = por %p186, %p187
    %p189 = scmp.ne.s32.totalorder %s181, %s183
    %p190 = scmp.eq.s32.totalorder %s21, 1
    %p191 = por %p189, %p190
    %p192 = scmp.ne.s32.totalorder %s183, %s184
    %p193 = scmp.eq.s32.totalorder %s21, 0
    %p194 = por %p192, %p193
    %p195 = scmp.ne.s32.totalorder %s183, %s184
    %p196 = scmp.eq.s32.totalorder %s22, 1
    %p197 = por %p195, %p196
    %p199 = scmp.ne.s32.totalorder %s184, %s198
    %p200 = scmp.eq.s32.totalorder %s22, 0
    %p201 = por %p199, %p200
    %s202 = ssub.s32 %s16, %s23
    %p203 = scmp.eq.s32.totalorder %s202, 0
    %s205 = sadd.s32 %s204, 1
    %s206 = scalar_select %p203, %s204, %s205
    %p209 = pneg %p203
    %p210 = scmp.eq.s32.totalorder %s16, 1
    %p211 = por %p209, %p210
    %p212 = scmp.ne.s32.totalorder %s204, %s207
    %p213 = scmp.eq.s32.totalorder %s16, 0
    %p214 = por %p212, %p213
    %p215 = scmp.ne.s32.totalorder %s204, %s207
    %p216 = scmp.eq.s32.totalorder %s21, 1
    %p217 = por %p215, %p216
    %p218 = scmp.ne.s32.totalorder %s207, %s208
    %p219 = scmp.eq.s32.totalorder %s21, 0
    %p220 = por %p218, %p219
    %p221 = scmp.ne.s32.totalorder %s207, %s208
    %p222 = scmp.eq.s32.totalorder %s22, 1
    %p223 = por %p221, %p222
    %p225 = scmp.ne.s32.totalorder %s208, %s224
    %p226 = scmp.eq.s32.totalorder %s22, 0
    %p227 = por %p225, %p226
    %p228 = scmp.le.s32.totalorder 1, %s16
    %p229 = scmp.lt.s32.totalorder %s16, 3
    %p230 = pnand %p228, %p229
    %p231 = pneg %p230
    // Predicated region
    $region9: #{frequency_filter_forward.2} parent=5 // pred_check
      _
    $region10: #{frequency_filter_forward.2} parent=5 // pred_check_branch
      %233 = sbr.rel (%p230) target = $region12
    $region11: #{frequency_filter_forward.2} parent=5 // pred_region
      %s234 = ssub.s32 %s16, 1
      // Predicated region
      $region13: #{frequency_filter_forward.2} parent=11 // pred_check
        %p235 = pneg %p89
      $region14: #{frequency_filter_forward.2} parent=11 // pred_check_branch
        %237 = sbr.rel (%p235) target = $region16
      $region15: #{frequency_filter_forward.2} parent=11 // pred_region
        _
      $region16: #{frequency_filter_forward.2} parent=11 // pred_fallthru
        _
      // Predicated region
      $region17: #{frequency_filter_forward.2} parent=11 // pred_check
        %p238 = pneg %p110
      $region18: #{frequency_filter_forward.2} parent=11 // pred_check_branch
        %240 = sbr.rel (%p238) target = $region20
      $region19: #{frequency_filter_forward.2} parent=11 // pred_region
        _
      $region20: #{frequency_filter_forward.2} parent=11 // pred_fallthru
        _
      // Predicated region
      $region21: #{frequency_filter_forward.2} parent=11 // pred_check
        %p241 = pneg %p131
      $region22: #{frequency_filter_forward.2} parent=11 // pred_check_branch
        %243 = sbr.rel (%p241) target = $region24
      $region23: #{frequency_filter_forward.2} parent=11 // pred_region
        _
      $region24: #{frequency_filter_forward.2} parent=11 // pred_fallthru
        _
      // Predicated region
      $region25: #{frequency_filter_forward.2} parent=11 // pred_check
        %p244 = pneg %p152
      $region26: #{frequency_filter_forward.2} parent=11 // pred_check_branch
        %246 = sbr.rel (%p244) target = $region28
      $region27: #{frequency_filter_forward.2} parent=11 // pred_region
        _
      $region28: #{frequency_filter_forward.2} parent=11 // pred_fallthru
        _
      // Predicated region
      $region29: #{frequency_filter_forward.2} parent=11 // pred_check
        %p247 = pneg %p173
      $region30: #{frequency_filter_forward.2} parent=11 // pred_check_branch
        %249 = sbr.rel (%p247) target = $region32
      $region31: #{frequency_filter_forward.2} parent=11 // pred_region
        _
      $region32: #{frequency_filter_forward.2} parent=11 // pred_fallthru
        _
      // Predicated region
      $region33: #{frequency_filter_forward.2} parent=11 // pred_check
        %p250 = pneg %p194
      $region34: #{frequency_filter_forward.2} parent=11 // pred_check_branch
        %252 = sbr.rel (%p250) target = $region36
      $region35: #{frequency_filter_forward.2} parent=11 // pred_region
        _
      $region36: #{frequency_filter_forward.2} parent=11 // pred_fallthru
        _
    $region12: #{frequency_filter_forward.2} parent=5 // pred_fallthru
      _
    %p253 = scmp.lt.s32.totalorder %s16, 2
    // Predicated region
    $region37: #{frequency_filter_forward.2} parent=5 // pred_check
      %p254 = pneg %p253
    $region38: #{frequency_filter_forward.2} parent=5 // pred_check_branch
      %256 = sbr.rel (%p254) target = $region40
    $region39: #{frequency_filter_forward.2} parent=5 // pred_region
      // Predicated region
      $region41: #{frequency_filter_forward.2} parent=39 // pred_check
        %p257 = pneg %p36
      $region42: #{frequency_filter_forward.2} parent=39 // pred_check_branch
        %259 = sbr.rel (%p257) target = $region44
      $region43: #{frequency_filter_forward.2} parent=39 // pred_region
        %p260 = scmp.lt.s32.totalorder %s16, 1
        %s261 = scalar_select %p260, %s16, 1
        %s262 = smul.addr %s261, 2
        %s263 = smul.addr %s262, 2
        %s264 = scalar_lea.vmem %s0, %s263
      $region44: #{frequency_filter_forward.2} parent=39 // pred_fallthru
        _
      // Predicated region
      $region45: #{frequency_filter_forward.2} parent=39 // pred_check
        %p265 = pneg %p62
      $region46: #{frequency_filter_forward.2} parent=39 // pred_check_branch
        %267 = sbr.rel (%p265) target = $region48
      $region47: #{frequency_filter_forward.2} parent=39 // pred_region
        %p268 = scmp.lt.s32.totalorder %s16, 1
        %s269 = scalar_select %p268, %s16, 1
        %s270 = smul.addr %s269, 2
        %s271 = smul.addr %s270, 2
        %s272 = scalar_lea.vmem %s1, %s271
      $region48: #{frequency_filter_forward.2} parent=39 // pred_fallthru
        _
    $region40: #{frequency_filter_forward.2} parent=5 // pred_fallthru
      _
    %p273 = scmp.le.s32.totalorder 1, %s16
    %p274 = scmp.lt.s32.totalorder %s16, 3
    %p275 = pnand %p273, %p274
    %p276 = pneg %p275
    // Predicated region
    $region49: #{frequency_filter_forward.2} parent=5 // pred_check
      _
    $region50: #{frequency_filter_forward.2} parent=5 // pred_check_branch
      %278 = sbr.rel (%p275) target = $region52
    $region51: #{frequency_filter_forward.2} parent=5 // pred_region
      %s279 = ssub.s32 %s16, 1
      %p280 = scmp.lt.s32.totalorder %s21, 1
      %s281 = scalar_select %p280, %s21, 1
      %s282 = smul.addr %s281, 2
      %s283 = smul.addr %s282, 2
      %s284 = scalar_lea.vmem %s0, %s283
      %p285 = pneg %p42
      %p286 = pneg %p39
      %p287 = scmp.lt.s32.totalorder %s21, 1
      %s288 = scalar_select %p287, %s21, 1
      %s289 = smul.addr %s288, 2
      %s290 = smul.addr %s289, 2
      %s291 = scalar_lea.vmem %s1, %s290
      %p292 = pneg %p68
      %p293 = pneg %p65
      %p294 = pneg %p89
      %p295 = pneg %p86
      %p296 = pneg %p110
      %p297 = pneg %p107
      %p298 = pneg %p131
      %p299 = pneg %p128
      %p300 = pneg %p152
      %p301 = pneg %p149
      %p302 = pneg %p173
      %p303 = pneg %p170
      %p304 = pneg %p194
      %p305 = pneg %p191
      %p306 = pneg %p220
      %p307 = pneg %p217
      %p308 = scmp.lt.s32.totalorder %s21, 1
      %s309 = scalar_select %p308, %s21, 1
      %s310 = smul.addr %s309, 2
      %s311 = scalar_lea.vmem %s8, %s310
      %p312 = scmp.lt.s32.totalorder %s21, 1
      %s313 = scalar_select %p312, %s21, 1
      %s314 = smul.addr %s313, 2
      %s315 = smul.addr %s314, 2
      %s316 = scalar_lea.vmem %s0, %s315
      %p317 = scmp.lt.s32.totalorder %s21, 1
      %s318 = scalar_select %p317, %s21, 1
      %s319 = smul.addr %s318, 2
      %s320 = smul.addr %s319, 2
      %s321 = scalar_lea.vmem %s1, %s320
      %p322 = scmp.lt.s32.totalorder %s21, 1
      %s323 = scalar_select %p322, %s21, 1
      %s324 = smul.addr %s323, 2
      %s325 = scalar_lea.vmem %s8, %s324
      %v327 = vld [vmem:[%s316] sm:$0xf]
      %v328 = vld [vmem:[%s321] sm:$0xf]
      %v329 = vmul.f32 %v327, %v327
      %v330 = vmul.f32 %v328, %v328
      %v331 = vadd.f32 %v329, %v330
      %v332 = vrsqrt.pop %v331
      %v333 = vmul.f32 %v331, %v332
      %vm334 = vcmp.eq.f32.partialorder %v331, inf
      %v335 = vsel %vm334, %v331, %v333
      %vm336 = vcmp.eq.f32.partialorder %v331, 0.0
      %v337 = vand.u32 %v331, 2147483648
      %v338 = vsel %vm336, %v337, %v335
      %v339 = vlaneseq
      %v340 = vand.u32 %v339, 127
      %v341 = vadd.s32 %v340, 128
      %v342 = vand.u32 %v340, 15
      %v343 = vand.u32 %v341, 15
      %vm344 = vcmp.ne.s32.totalorder %v342, 0
      %vm345 = vcmp.ne.s32.totalorder %v343, 0
      %vm346 = vcmp.ne.s32.totalorder %v342, 15
      %vm347 = vcmp.ne.s32.totalorder %v343, 15
      %v348 = vld [vmem:[%s2] sm:$0xf]
      %v349 = vld [vmem:[%s2 + $0x4] sm:$0xf]
      %v350 = vld [vmem:[%s2 + $0x8] sm:$0xf]
      %v351 = vld [vmem:[%s2 + $0xc] sm:$0xf]
      %v352 = vld [vmem:[%s2 + $0x10] sm:$0xf]
      %v353 = vld [vmem:[%s2 + $0x14] sm:$0xf]
      %v354 = vld [vmem:[%s2 + $0x18] sm:$0xf]
      %v355 = vld [vmem:[%s2 + $0x1c] sm:$0xf]
      %v358 = vunpack.c.l.s4 1983009808
      %v359 = vunpack.c.0.s8 %v358
      %v360 = vlaneseq
      %v361 = vshrl.u32 %v360, 7
      %v362 = vsub.s32 %v359, %v361
      %v363 = vrot.slane %v338, %v362
      %v364 = vcombine.high %v363, %v363
      %365 = vrot.lane.b32.xlu0 %v363, 17
      %v366 = vpop.permute.xlu0 %365
      %367 = vrot.lane.b32.xlu0 %v364, 17
      %v368 = vpop.permute.xlu0 %367
      %vm369 = vcmask 138240
      %v370 = vsel %vm369, %v366, %v368
      %v373 = vsel %vm369, 0.0, %v366
      %v374 = vsel %vm344, 1, 0
      %v375 = vsel %vm345, 1, 0
      %vm376 = vcmp.eq.s32.totalorder %v374, 1
      %vm377 = vcmp.eq.s32.totalorder %v375, 1
      %v378 = vsel %vm376, %v373, 0.0
      %v379 = vsel %vm377, %v370, 0.0
      %v380 = vpack.c.bf16 %v378, %v378
      %v381 = vpack.c.bf16 %v379, %v379
      %s382 = scalar_lea.vmem %s2, 32
      %v383 = vld [vmem:[%s382] sm:$0xf]
      %v384 = vld [vmem:[%s382 + $0x4] sm:$0xf]
      %v385 = vld [vmem:[%s382 + $0x8] sm:$0xf]
      %v386 = vld [vmem:[%s382 + $0xc] sm:$0xf]
      %v387 = vld [vmem:[%s382 + $0x10] sm:$0xf]
      %v388 = vld [vmem:[%s382 + $0x14] sm:$0xf]
      %v389 = vld [vmem:[%s382 + $0x18] sm:$0xf]
      %v390 = vld [vmem:[%s382 + $0x1c] sm:$0xf]
      %391 = vrot.lane.b32.xlu0 %v363, 16
      %v392 = vpop.permute.xlu0 %391
      %393 = vrot.lane.b32.xlu0 %v364, 16
      %v394 = vpop.permute.xlu0 %393
      %vm395 = vcmask 130048
      %v396 = vsel %vm395, %v392, %v394
      %v399 = vsel %vm395, 0.0, %v392
      %v400 = vpack.c.bf16 %v399, %v399
      %v401 = vpack.c.bf16 %v396, %v396
      %v410 = vunpack.c.l.b16 %v383
      %v411 = vunpack.c.l.b16 %v384
      %v412 = vunpack.c.l.b16 %v385
      %v413 = vunpack.c.l.b16 %v386
      %v414 = vunpack.c.l.b16 %v387
      %v415 = vunpack.c.l.b16 %v388
      %v416 = vunpack.c.l.b16 %v389
      %v417 = vunpack.c.l.b16 %v390
      %v418 = vpack.c.b16 %v411, %v410
      %v419 = vpack.c.b16 %v413, %v412
      %v420 = vpack.c.b16 %v415, %v414
      %v421 = vpack.c.b16 %v417, %v416
      %vm422 = vcmask 15360
      %v424 = vsel %vm422, %v418, 0
      %v427 = vsel %vm422, %v419, 0
      %v430 = vsel %vm422, %v420, 0
      %v433 = vsel %vm422, %v421, 0
      %vm435 = vcmask 1040384
      %v437 = vsel %vm435, %v400, 0
      %v440 = vsel %vm435, %v401, 0
      %442 = vmatprep.subr.bf16.mxu0 0
      %443 = vmatpush1.bf16.msra.mxu0 0
      %444 = vmatprep.subr.bf16.mxu0 0
      %445 = vmatpush1.bf16.msra.mxu0 0
      %446 = vmatprep.subr.bf16.mxu0 0
      %447 = vmatpush1.bf16.msra.mxu0 0
      %448 = vmatprep.subr.bf16.mxu0 0
      %449 = vmatpush1.bf16.msra.mxu0 0
      %450 = vmatprep.subr.bf16.mxu0 0
      %451 = vmatpush1.bf16.msra.mxu0 0
      %452 = vmatprep.subr.bf16.mxu0 0
      %453 = vmatpush1.bf16.msra.mxu0 0
      %454 = vmatprep.subr.bf16.mxu0 0
      %455 = vmatpush1.bf16.msra.mxu0 0
      %456 = vmatprep.subr.bf16.mxu0 %v440
      %457 = vmatpush1.bf16.msra.mxu0 %v437
      %458 = vmatprep.subr.bf16.mxu0 0
      %459 = vmatpush2.bf16.msra.mxu0 0
      %460 = vmatprep.subr.bf16.mxu0 0
      %461 = vmatpush2.bf16.msra.mxu0 0
      %462 = vmatprep.subr.bf16.mxu0 0
      %463 = vmatpush2.bf16.msra.mxu0 0
      %464 = vmatprep.subr.bf16.mxu0 0
      %465 = vmatpush2.bf16.msra.mxu0 0
      %466 = vmatprep.subr.bf16.mxu0 0
      %467 = vmatpush2.bf16.msra.mxu0 0
      %468 = vmatprep.subr.bf16.mxu0 0
      %469 = vmatpush2.bf16.msra.mxu0 0
      %470 = vmatprep.subr.bf16.mxu0 0
      %471 = vmatpush2.bf16.msra.mxu0 0
      %472 = vmatprep.subr.bf16.mxu0 0
      %473 = vmatpush2.bf16.msra.mxu0 0
      %474 = vmatprep.mubr.bf16.mxu0 0
      %475 = vmatmul.mubr.bf16.gmra.mxu0 %v424
      %v476 = vpop.f32.mrf.mxu0
      %v477 = vadd.f32 0.0, %v476
      %v478 = vpop.f32.mrf.mxu0
      %v479 = vadd.f32 0.0, %v478
      %v480 = vpop.f32.mrf.mxu0
      %v481 = vadd.f32 0.0, %v480
      %v482 = vpop.f32.mrf.mxu0
      %v483 = vadd.f32 0.0, %v482
      %484 = vmatprep.mubr.bf16.mxu0 0
      %485 = vmatmul.mubr.bf16.gmra.mxu0 %v427
      %v486 = vpop.f32.mrf.mxu0
      %v487 = vadd.f32 0.0, %v486
      %v488 = vpop.f32.mrf.mxu0
      %v489 = vadd.f32 0.0, %v488
      %v490 = vpop.f32.mrf.mxu0
      %v491 = vadd.f32 0.0, %v490
      %v492 = vpop.f32.mrf.mxu0
      %v493 = vadd.f32 0.0, %v492
      %494 = vmatprep.mubr.bf16.mxu0 0
      %495 = vmatmul.mubr.bf16.gmra.mxu0 %v430
      %v496 = vpop.f32.mrf.mxu0
      %v497 = vadd.f32 0.0, %v496
      %v498 = vpop.f32.mrf.mxu0
      %v499 = vadd.f32 0.0, %v498
      %v500 = vpop.f32.mrf.mxu0
      %v501 = vadd.f32 0.0, %v500
      %v502 = vpop.f32.mrf.mxu0
      %v503 = vadd.f32 0.0, %v502
      %504 = vmatprep.mubr.bf16.mxu0 0
      %505 = vmatmul.mubr.bf16.gmra.mxu0 %v433
      %v506 = vpop.f32.mrf.mxu0
      %v507 = vadd.f32 0.0, %v506
      %v508 = vpop.f32.mrf.mxu0
      %v509 = vadd.f32 0.0, %v508
      %v510 = vpop.f32.mrf.mxu0
      %v511 = vadd.f32 0.0, %v510
      %v512 = vpop.f32.mrf.mxu0
      %v513 = vadd.f32 0.0, %v512
      %514 = vdwg.mxu0
      %v523 = vunpack.c.l.b16 %v348
      %v524 = vunpack.c.l.b16 %v349
      %v525 = vunpack.c.l.b16 %v350
      %v526 = vunpack.c.l.b16 %v351
      %v527 = vunpack.c.l.b16 %v352
      %v528 = vunpack.c.l.b16 %v353
      %v529 = vunpack.c.l.b16 %v354
      %v530 = vunpack.c.l.b16 %v355
      %v531 = vpack.c.b16 %v524, %v523
      %v532 = vpack.c.b16 %v526, %v525
      %v533 = vpack.c.b16 %v528, %v527
      %v534 = vpack.c.b16 %v530, %v529
      %v536 = vsel %vm422, %v531, 0
      %v539 = vsel %vm422, %v532, 0
      %v542 = vsel %vm422, %v533, 0
      %v545 = vsel %vm422, %v534, 0
      %v548 = vsel %vm435, %v380, 0
      %v551 = vsel %vm435, %v381, 0
      %553 = vmatprep.subr.bf16.mxu0 0
      %554 = vmatpush1.bf16.msra.mxu0 0
      %555 = vmatprep.subr.bf16.mxu0 0
      %556 = vmatpush1.bf16.msra.mxu0 0
      %557 = vmatprep.subr.bf16.mxu0 0
      %558 = vmatpush1.bf16.msra.mxu0 0
      %559 = vmatprep.subr.bf16.mxu0 0
      %560 = vmatpush1.bf16.msra.mxu0 0
      %561 = vmatprep.subr.bf16.mxu0 0
      %562 = vmatpush1.bf16.msra.mxu0 0
      %563 = vmatprep.subr.bf16.mxu0 0
      %564 = vmatpush1.bf16.msra.mxu0 0
      %565 = vmatprep.subr.bf16.mxu0 0
      %566 = vmatpush1.bf16.msra.mxu0 0
      %567 = vmatprep.subr.bf16.mxu0 %v551
      %568 = vmatpush1.bf16.msra.mxu0 %v548
      %569 = vmatprep.subr.bf16.mxu0 0
      %570 = vmatpush2.bf16.msra.mxu0 0
      %571 = vmatprep.subr.bf16.mxu0 0
      %572 = vmatpush2.bf16.msra.mxu0 0
      %573 = vmatprep.subr.bf16.mxu0 0
      %574 = vmatpush2.bf16.msra.mxu0 0
      %575 = vmatprep.subr.bf16.mxu0 0
      %576 = vmatpush2.bf16.msra.mxu0 0
      %577 = vmatprep.subr.bf16.mxu0 0
      %578 = vmatpush2.bf16.msra.mxu0 0
      %579 = vmatprep.subr.bf16.mxu0 0
      %580 = vmatpush2.bf16.msra.mxu0 0
      %581 = vmatprep.subr.bf16.mxu0 0
      %582 = vmatpush2.bf16.msra.mxu0 0
      %583 = vmatprep.subr.bf16.mxu0 0
      %584 = vmatpush2.bf16.msra.mxu0 0
      %585 = vmatprep.mubr.bf16.mxu0 0
      %586 = vmatmul.mubr.bf16.gmra.mxu0 %v536
      %v587 = vpop.f32.mrf.mxu0
      %v588 = vadd.f32 %v477, %v587
      %v589 = vpop.f32.mrf.mxu0
      %v590 = vadd.f32 %v479, %v589
      %v591 = vpop.f32.mrf.mxu0
      %v592 = vadd.f32 %v481, %v591
      %v593 = vpop.f32.mrf.mxu0
      %v594 = vadd.f32 %v483, %v593
      %595 = vmatprep.mubr.bf16.mxu0 0
      %596 = vmatmul.mubr.bf16.gmra.mxu0 %v539
      %v597 = vpop.f32.mrf.mxu0
      %v598 = vadd.f32 %v487, %v597
      %v599 = vpop.f32.mrf.mxu0
      %v600 = vadd.f32 %v489, %v599
      %v601 = vpop.f32.mrf.mxu0
      %v602 = vadd.f32 %v491, %v601
      %v603 = vpop.f32.mrf.mxu0
      %v604 = vadd.f32 %v493, %v603
      %605 = vmatprep.mubr.bf16.mxu0 0
      %606 = vmatmul.mubr.bf16.gmra.mxu0 %v542
      %v607 = vpop.f32.mrf.mxu0
      %v608 = vadd.f32 %v497, %v607
      %v609 = vpop.f32.mrf.mxu0
      %v610 = vadd.f32 %v499, %v609
      %v611 = vpop.f32.mrf.mxu0
      %v612 = vadd.f32 %v501, %v611
      %v613 = vpop.f32.mrf.mxu0
      %v614 = vadd.f32 %v503, %v613
      %615 = vmatprep.mubr.bf16.mxu0 0
      %616 = vmatmul.mubr.bf16.gmra.mxu0 %v545
      %v617 = vpop.f32.mrf.mxu0
      %v618 = vadd.f32 %v507, %v617
      %v619 = vpop.f32.mrf.mxu0
      %v620 = vadd.f32 %v509, %v619
      %v621 = vpop.f32.mrf.mxu0
      %v622 = vadd.f32 %v511, %v621
      %v623 = vpop.f32.mrf.mxu0
      %v624 = vadd.f32 %v513, %v623
      %625 = vdwg.mxu0
      %s626 = scalar_lea.vmem %s2, 64
      %v627 = vld [vmem:[%s626] sm:$0xf]
      %v628 = vld [vmem:[%s626 + $0x4] sm:$0xf]
      %v629 = vld [vmem:[%s626 + $0x8] sm:$0xf]
      %v630 = vld [vmem:[%s626 + $0xc] sm:$0xf]
      %v631 = vld [vmem:[%s626 + $0x10] sm:$0xf]
      %v632 = vld [vmem:[%s626 + $0x14] sm:$0xf]
      %v633 = vld [vmem:[%s626 + $0x18] sm:$0xf]
      %v634 = vld [vmem:[%s626 + $0x1c] sm:$0xf]
      %635 = vrot.lane.b32.xlu0 %v363, 15
      %v636 = vpop.permute.xlu0 %635
      %637 = vrot.lane.b32.xlu0 %v364, 15
      %v638 = vpop.permute.xlu0 %637
      %vm639 = vcmask 121856
      %v640 = vsel %vm639, %v636, %v638
      %v643 = vsel %vm639, 0.0, %v636
      %v644 = vsel %vm346, 1, 0
      %v645 = vsel %vm347, 1, 0
      %vm646 = vcmp.eq.s32.totalorder %v644, 1
      %vm647 = vcmp.eq.s32.totalorder %v645, 1
      %v648 = vsel %vm646, %v643, 0.0
      %v649 = vsel %vm647, %v640, 0.0
      %v650 = vpack.c.bf16 %v648, %v648
      %v651 = vpack.c.bf16 %v649, %v649
      %v660 = vunpack.c.l.b16 %v627
      %v661 = vunpack.c.l.b16 %v628
      %v662 = vunpack.c.l.b16 %v629
      %v663 = vunpack.c.l.b16 %v630
      %v664 = vunpack.c.l.b16 %v631
      %v665 = vunpack.c.l.b16 %v632
      %v666 = vunpack.c.l.b16 %v633
      %v667 = vunpack.c.l.b16 %v634
      %v668 = vpack.c.b16 %v661, %v660
      %v669 = vpack.c.b16 %v663, %v662
      %v670 = vpack.c.b16 %v665, %v664
      %v671 = vpack.c.b16 %v667, %v666
      %v673 = vsel %vm422, %v668, 0
      %v676 = vsel %vm422, %v669, 0
      %v679 = vsel %vm422, %v670, 0
      %v682 = vsel %vm422, %v671, 0
      %v685 = vsel %vm435, %v650, 0
      %v688 = vsel %vm435, %v651, 0
      %690 = vmatprep.subr.bf16.mxu0 0
      %691 = vmatpush1.bf16.msra.mxu0 0
      %692 = vmatprep.subr.bf16.mxu0 0
      %693 = vmatpush1.bf16.msra.mxu0 0
      %694 = vmatprep.subr.bf16.mxu0 0
      %695 = vmatpush1.bf16.msra.mxu0 0
      %696 = vmatprep.subr.bf16.mxu0 0
      %697 = vmatpush1.bf16.msra.mxu0 0
      %698 = vmatprep.subr.bf16.mxu0 0
      %699 = vmatpush1.bf16.msra.mxu0 0
      %700 = vmatprep.subr.bf16.mxu0 0
      %701 = vmatpush1.bf16.msra.mxu0 0
      %702 = vmatprep.subr.bf16.mxu0 0
      %703 = vmatpush1.bf16.msra.mxu0 0
      %704 = vmatprep.subr.bf16.mxu0 %v688
      %705 = vmatpush1.bf16.msra.mxu0 %v685
      %706 = vmatprep.subr.bf16.mxu0 0
      %707 = vmatpush2.bf16.msra.mxu0 0
      %708 = vmatprep.subr.bf16.mxu0 0
      %709 = vmatpush2.bf16.msra.mxu0 0
      %710 = vmatprep.subr.bf16.mxu0 0
      %711 = vmatpush2.bf16.msra.mxu0 0
      %712 = vmatprep.subr.bf16.mxu0 0
      %713 = vmatpush2.bf16.msra.mxu0 0
      %714 = vmatprep.subr.bf16.mxu0 0
      %715 = vmatpush2.bf16.msra.mxu0 0
      %716 = vmatprep.subr.bf16.mxu0 0
      %717 = vmatpush2.bf16.msra.mxu0 0
      %718 = vmatprep.subr.bf16.mxu0 0
      %719 = vmatpush2.bf16.msra.mxu0 0
      %720 = vmatprep.subr.bf16.mxu0 0
      %721 = vmatpush2.bf16.msra.mxu0 0
      %722 = vmatprep.mubr.bf16.mxu0 0
      %723 = vmatmul.mubr.bf16.gmra.mxu0 %v673
      %v724 = vpop.f32.mrf.mxu0
      %v725 = vadd.f32 0.0, %v724
      %v726 = vpop.f32.mrf.mxu0
      %v727 = vadd.f32 0.0, %v726
      %v728 = vpop.f32.mrf.mxu0
      %v729 = vadd.f32 0.0, %v728
      %v730 = vpop.f32.mrf.mxu0
      %v731 = vadd.f32 0.0, %v730
      %732 = vmatprep.mubr.bf16.mxu0 0
      %733 = vmatmul.mubr.bf16.gmra.mxu0 %v676
      %v734 = vpop.f32.mrf.mxu0
      %v735 = vadd.f32 0.0, %v734
      %v736 = vpop.f32.mrf.mxu0
      %v737 = vadd.f32 0.0, %v736
      %v738 = vpop.f32.mrf.mxu0
      %v739 = vadd.f32 0.0, %v738
      %v740 = vpop.f32.mrf.mxu0
      %v741 = vadd.f32 0.0, %v740
      %742 = vmatprep.mubr.bf16.mxu0 0
      %743 = vmatmul.mubr.bf16.gmra.mxu0 %v679
      %v744 = vpop.f32.mrf.mxu0
      %v745 = vadd.f32 0.0, %v744
      %v746 = vpop.f32.mrf.mxu0
      %v747 = vadd.f32 0.0, %v746
      %v748 = vpop.f32.mrf.mxu0
      %v749 = vadd.f32 0.0, %v748
      %v750 = vpop.f32.mrf.mxu0
      %v751 = vadd.f32 0.0, %v750
      %752 = vmatprep.mubr.bf16.mxu0 0
      %753 = vmatmul.mubr.bf16.gmra.mxu0 %v682
      %v754 = vpop.f32.mrf.mxu0
      %v755 = vadd.f32 0.0, %v754
      %v756 = vpop.f32.mrf.mxu0
      %v757 = vadd.f32 0.0, %v756
      %v758 = vpop.f32.mrf.mxu0
      %v759 = vadd.f32 0.0, %v758
      %v760 = vpop.f32.mrf.mxu0
      %v761 = vadd.f32 0.0, %v760
      %762 = vdwg.mxu0
      %v763 = vadd.f32 %v588, %v725
      %v764 = vadd.f32 %v590, %v727
      %v765 = vadd.f32 %v592, %v729
      %v766 = vadd.f32 %v594, %v731
      %v767 = vadd.f32 %v598, %v735
      %v768 = vadd.f32 %v600, %v737
      %v769 = vadd.f32 %v602, %v739
      %v770 = vadd.f32 %v604, %v741
      %v771 = vadd.f32 %v608, %v745
      %v772 = vadd.f32 %v610, %v747
      %v773 = vadd.f32 %v612, %v749
      %v774 = vadd.f32 %v614, %v751
      %v775 = vadd.f32 %v618, %v755
      %v776 = vadd.f32 %v620, %v757
      %v777 = vadd.f32 %v622, %v759
      %v778 = vadd.f32 %v624, %v761
      %s779 = scalar_lea.vmem %s2, 96
      %v780 = vld [vmem:[%s779] sm:$0xf]
      %v781 = vld [vmem:[%s779 + $0x4] sm:$0xf]
      %v782 = vld [vmem:[%s779 + $0x8] sm:$0xf]
      %v783 = vld [vmem:[%s779 + $0xc] sm:$0xf]
      %v784 = vld [vmem:[%s779 + $0x10] sm:$0xf]
      %v785 = vld [vmem:[%s779 + $0x14] sm:$0xf]
      %v786 = vld [vmem:[%s779 + $0x18] sm:$0xf]
      %v787 = vld [vmem:[%s779 + $0x1c] sm:$0xf]
      %788 = vrot.lane.b32.xlu0 %v363, 1
      %v789 = vpop.permute.xlu0 %788
      %790 = vrot.lane.b32.xlu0 %v364, 1
      %v791 = vpop.permute.xlu0 %790
      %vm792 = vcmask 7168
      %v793 = vsel %vm792, %v789, %v791
      %v796 = vsel %vm792, 0.0, %v789
      %v797 = vsel %vm376, %v796, 0.0
      %v798 = vsel %vm377, %v793, 0.0
      %v799 = vpack.c.bf16 %v797, %v797
      %v800 = vpack.c.bf16 %v798, %v798
      %v809 = vunpack.c.l.b16 %v780
      %v810 = vunpack.c.l.b16 %v781
      %v811 = vunpack.c.l.b16 %v782
      %v812 = vunpack.c.l.b16 %v783
      %v813 = vunpack.c.l.b16 %v784
      %v814 = vunpack.c.l.b16 %v785
      %v815 = vunpack.c.l.b16 %v786
      %v816 = vunpack.c.l.b16 %v787
      %v817 = vpack.c.b16 %v810, %v809
      %v818 = vpack.c.b16 %v812, %v811
      %v819 = vpack.c.b16 %v814, %v813
      %v820 = vpack.c.b16 %v816, %v815
      %v822 = vsel %vm422, %v817, 0
      %v825 = vsel %vm422, %v818, 0
      %v828 = vsel %vm422, %v819, 0
      %v831 = vsel %vm422, %v820, 0
      %v834 = vsel %vm435, %v799, 0
      %v837 = vsel %vm435, %v800, 0
      %839 = vmatprep.subr.bf16.mxu0 0
      %840 = vmatpush1.bf16.msra.mxu0 0
      %841 = vmatprep.subr.bf16.mxu0 0
      %842 = vmatpush1.bf16.msra.mxu0 0
      %843 = vmatprep.subr.bf16.mxu0 0
      %844 = vmatpush1.bf16.msra.mxu0 0
      %845 = vmatprep.subr.bf16.mxu0 0
      %846 = vmatpush1.bf16.msra.mxu0 0
      %847 = vmatprep.subr.bf16.mxu0 0
      %848 = vmatpush1.bf16.msra.mxu0 0
      %849 = vmatprep.subr.bf16.mxu0 0
      %850 = vmatpush1.bf16.msra.mxu0 0
      %851 = vmatprep.subr.bf16.mxu0 0
      %852 = vmatpush1.bf16.msra.mxu0 0
      %853 = vmatprep.subr.bf16.mxu0 %v837
      %854 = vmatpush1.bf16.msra.mxu0 %v834
      %855 = vmatprep.subr.bf16.mxu0 0
      %856 = vmatpush2.bf16.msra.mxu0 0
      %857 = vmatprep.subr.bf16.mxu0 0
      %858 = vmatpush2.bf16.msra.mxu0 0
      %859 = vmatprep.subr.bf16.mxu0 0
      %860 = vmatpush2.bf16.msra.mxu0 0
      %861 = vmatprep.subr.bf16.mxu0 0
      %862 = vmatpush2.bf16.msra.mxu0 0
      %863 = vmatprep.subr.bf16.mxu0 0
      %864 = vmatpush2.bf16.msra.mxu0 0
      %865 = vmatprep.subr.bf16.mxu0 0
      %866 = vmatpush2.bf16.msra.mxu0 0
      %867 = vmatprep.subr.bf16.mxu0 0
      %868 = vmatpush2.bf16.msra.mxu0 0
      %869 = vmatprep.subr.bf16.mxu0 0
      %870 = vmatpush2.bf16.msra.mxu0 0
      %871 = vmatprep.mubr.bf16.mxu0 0
      %872 = vmatmul.mubr.bf16.gmra.mxu0 %v822
      %v873 = vpop.f32.mrf.mxu0
      %v874 = vadd.f32 0.0, %v873
      %v875 = vpop.f32.mrf.mxu0
      %v876 = vadd.f32 0.0, %v875
      %v877 = vpop.f32.mrf.mxu0
      %v878 = vadd.f32 0.0, %v877
      %v879 = vpop.f32.mrf.mxu0
      %v880 = vadd.f32 0.0, %v879
      %881 = vmatprep.mubr.bf16.mxu0 0
      %882 = vmatmul.mubr.bf16.gmra.mxu0 %v825
      %v883 = vpop.f32.mrf.mxu0
      %v884 = vadd.f32 0.0, %v883
      %v885 = vpop.f32.mrf.mxu0
      %v886 = vadd.f32 0.0, %v885
      %v887 = vpop.f32.mrf.mxu0
      %v888 = vadd.f32 0.0, %v887
      %v889 = vpop.f32.mrf.mxu0
      %v890 = vadd.f32 0.0, %v889
      %891 = vmatprep.mubr.bf16.mxu0 0
      %892 = vmatmul.mubr.bf16.gmra.mxu0 %v828
      %v893 = vpop.f32.mrf.mxu0
      %v894 = vadd.f32 0.0, %v893
      %v895 = vpop.f32.mrf.mxu0
      %v896 = vadd.f32 0.0, %v895
      %v897 = vpop.f32.mrf.mxu0
      %v898 = vadd.f32 0.0, %v897
      %v899 = vpop.f32.mrf.mxu0
      %v900 = vadd.f32 0.0, %v899
      %901 = vmatprep.mubr.bf16.mxu0 0
      %902 = vmatmul.mubr.bf16.gmra.mxu0 %v831
      %v903 = vpop.f32.mrf.mxu0
      %v904 = vadd.f32 0.0, %v903
      %v905 = vpop.f32.mrf.mxu0
      %v906 = vadd.f32 0.0, %v905
      %v907 = vpop.f32.mrf.mxu0
      %v908 = vadd.f32 0.0, %v907
      %v909 = vpop.f32.mrf.mxu0
      %v910 = vadd.f32 0.0, %v909
      %911 = vdwg.mxu0
      %v912 = vadd.f32 %v763, %v874
      %v913 = vadd.f32 %v764, %v876
      %v914 = vadd.f32 %v765, %v878
      %v915 = vadd.f32 %v766, %v880
      %v916 = vadd.f32 %v767, %v884
      %v917 = vadd.f32 %v768, %v886
      %v918 = vadd.f32 %v769, %v888
      %v919 = vadd.f32 %v770, %v890
      %v920 = vadd.f32 %v771, %v894
      %v921 = vadd.f32 %v772, %v896
      %v922 = vadd.f32 %v773, %v898
      %v923 = vadd.f32 %v774, %v900
      %v924 = vadd.f32 %v775, %v904
      %v925 = vadd.f32 %v776, %v906
      %v926 = vadd.f32 %v777, %v908
      %v927 = vadd.f32 %v778, %v910
      %s928 = scalar_lea.vmem %s2, 128
      %v929 = vld [vmem:[%s928] sm:$0xf]
      %v930 = vld [vmem:[%s928 + $0x4] sm:$0xf]
      %v931 = vld [vmem:[%s928 + $0x8] sm:$0xf]
      %v932 = vld [vmem:[%s928 + $0xc] sm:$0xf]
      %v933 = vld [vmem:[%s928 + $0x10] sm:$0xf]
      %v934 = vld [vmem:[%s928 + $0x14] sm:$0xf]
      %v935 = vld [vmem:[%s928 + $0x18] sm:$0xf]
      %v936 = vld [vmem:[%s928 + $0x1c] sm:$0xf]
      %v939 = vpack.c.bf16 %v363, %v363
      %v940 = vpack.c.bf16 %v364, %v364
      %v949 = vunpack.c.l.b16 %v929
      %v950 = vunpack.c.l.b16 %v930
      %v951 = vunpack.c.l.b16 %v931
      %v952 = vunpack.c.l.b16 %v932
      %v953 = vunpack.c.l.b16 %v933
      %v954 = vunpack.c.l.b16 %v934
      %v955 = vunpack.c.l.b16 %v935
      %v956 = vunpack.c.l.b16 %v936
      %v957 = vpack.c.b16 %v950, %v949
      %v958 = vpack.c.b16 %v952, %v951
      %v959 = vpack.c.b16 %v954, %v953
      %v960 = vpack.c.b16 %v956, %v955
      %v962 = vsel %vm422, %v957, 0
      %v965 = vsel %vm422, %v958, 0
      %v968 = vsel %vm422, %v959, 0
      %v971 = vsel %vm422, %v960, 0
      %v974 = vsel %vm435, %v939, 0
      %v977 = vsel %vm435, %v940, 0
      %979 = vmatprep.subr.bf16.mxu0 0
      %980 = vmatpush1.bf16.msra.mxu0 0
      %981 = vmatprep.subr.bf16.mxu0 0
      %982 = vmatpush1.bf16.msra.mxu0 0
      %983 = vmatprep.subr.bf16.mxu0 0
      %984 = vmatpush1.bf16.msra.mxu0 0
      %985 = vmatprep.subr.bf16.mxu0 0
      %986 = vmatpush1.bf16.msra.mxu0 0
      %987 = vmatprep.subr.bf16.mxu0 0
      %988 = vmatpush1.bf16.msra.mxu0 0
      %989 = vmatprep.subr.bf16.mxu0 0
      %990 = vmatpush1.bf16.msra.mxu0 0
      %991 = vmatprep.subr.bf16.mxu0 0
      %992 = vmatpush1.bf16.msra.mxu0 0
      %993 = vmatprep.subr.bf16.mxu0 %v977
      %994 = vmatpush1.bf16.msra.mxu0 %v974
      %995 = vmatprep.subr.bf16.mxu0 0
      %996 = vmatpush2.bf16.msra.mxu0 0
      %997 = vmatprep.subr.bf16.mxu0 0
      %998 = vmatpush2.bf16.msra.mxu0 0
      %999 = vmatprep.subr.bf16.mxu0 0
      %1000 = vmatpush2.bf16.msra.mxu0 0
      %1001 = vmatprep.subr.bf16.mxu0 0
      %1002 = vmatpush2.bf16.msra.mxu0 0
      %1003 = vmatprep.subr.bf16.mxu0 0
      %1004 = vmatpush2.bf16.msra.mxu0 0
      %1005 = vmatprep.subr.bf16.mxu0 0
      %1006 = vmatpush2.bf16.msra.mxu0 0
      %1007 = vmatprep.subr.bf16.mxu0 0
      %1008 = vmatpush2.bf16.msra.mxu0 0
      %1009 = vmatprep.subr.bf16.mxu0 0
      %1010 = vmatpush2.bf16.msra.mxu0 0
      %1011 = vmatprep.mubr.bf16.mxu0 0
      %1012 = vmatmul.mubr.bf16.gmra.mxu0 %v962
      %v1013 = vpop.f32.mrf.mxu0
      %v1014 = vadd.f32 0.0, %v1013
      %v1015 = vpop.f32.mrf.mxu0
      %v1016 = vadd.f32 0.0, %v1015
      %v1017 = vpop.f32.mrf.mxu0
      %v1018 = vadd.f32 0.0, %v1017
      %v1019 = vpop.f32.mrf.mxu0
      %v1020 = vadd.f32 0.0, %v1019
      %1021 = vmatprep.mubr.bf16.mxu0 0
      %1022 = vmatmul.mubr.bf16.gmra.mxu0 %v965
      %v1023 = vpop.f32.mrf.mxu0
      %v1024 = vadd.f32 0.0, %v1023
      %v1025 = vpop.f32.mrf.mxu0
      %v1026 = vadd.f32 0.0, %v1025
      %v1027 = vpop.f32.mrf.mxu0
      %v1028 = vadd.f32 0.0, %v1027
      %v1029 = vpop.f32.mrf.mxu0
      %v1030 = vadd.f32 0.0, %v1029
      %1031 = vmatprep.mubr.bf16.mxu0 0
      %1032 = vmatmul.mubr.bf16.gmra.mxu0 %v968
      %v1033 = vpop.f32.mrf.mxu0
      %v1034 = vadd.f32 0.0, %v1033
      %v1035 = vpop.f32.mrf.mxu0
      %v1036 = vadd.f32 0.0, %v1035
      %v1037 = vpop.f32.mrf.mxu0
      %v1038 = vadd.f32 0.0, %v1037
      %v1039 = vpop.f32.mrf.mxu0
      %v1040 = vadd.f32 0.0, %v1039
      %1041 = vmatprep.mubr.bf16.mxu0 0
      %1042 = vmatmul.mubr.bf16.gmra.mxu0 %v971
      %v1043 = vpop.f32.mrf.mxu0
      %v1044 = vadd.f32 0.0, %v1043
      %v1045 = vpop.f32.mrf.mxu0
      %v1046 = vadd.f32 0.0, %v1045
      %v1047 = vpop.f32.mrf.mxu0
      %v1048 = vadd.f32 0.0, %v1047
      %v1049 = vpop.f32.mrf.mxu0
      %v1050 = vadd.f32 0.0, %v1049
      %1051 = vdwg.mxu0
      %v1052 = vadd.f32 %v912, %v1014
      %v1053 = vadd.f32 %v913, %v1016
      %v1054 = vadd.f32 %v914, %v1018
      %v1055 = vadd.f32 %v915, %v1020
      %v1056 = vadd.f32 %v916, %v1024
      %v1057 = vadd.f32 %v917, %v1026
      %v1058 = vadd.f32 %v918, %v1028
      %v1059 = vadd.f32 %v919, %v1030
      %v1060 = vadd.f32 %v920, %v1034
      %v1061 = vadd.f32 %v921, %v1036
      %v1062 = vadd.f32 %v922, %v1038
      %v1063 = vadd.f32 %v923, %v1040
      %v1064 = vadd.f32 %v924, %v1044
      %v1065 = vadd.f32 %v925, %v1046
      %v1066 = vadd.f32 %v926, %v1048
      %v1067 = vadd.f32 %v927, %v1050
      %s1068 = scalar_lea.vmem %s2, 160
      %v1069 = vld [vmem:[%s1068] sm:$0xf]
      %v1070 = vld [vmem:[%s1068 + $0x4] sm:$0xf]
      %v1071 = vld [vmem:[%s1068 + $0x8] sm:$0xf]
      %v1072 = vld [vmem:[%s1068 + $0xc] sm:$0xf]
      %v1073 = vld [vmem:[%s1068 + $0x10] sm:$0xf]
      %v1074 = vld [vmem:[%s1068 + $0x14] sm:$0xf]
      %v1075 = vld [vmem:[%s1068 + $0x18] sm:$0xf]
      %v1076 = vld [vmem:[%s1068 + $0x1c] sm:$0xf]
      %1077 = vrot.lane.b32.xlu0 %v363, 127
      %v1078 = vpop.permute.xlu0 %1077
      %1079 = vrot.lane.b32.xlu0 %v364, 127
      %v1080 = vpop.permute.xlu0 %1079
      %vm1081 = vcmask 1039360
      %v1082 = vsel %vm1081, %v1078, %v1080
      %v1085 = vsel %vm1081, %v1080, 0.0
      %v1086 = vsel %vm646, %v1082, 0.0
      %v1087 = vsel %vm647, %v1085, 0.0
      %v1088 = vpack.c.bf16 %v1086, %v1086
      %v1089 = vpack.c.bf16 %v1087, %v1087
      %v1098 = vunpack.c.l.b16 %v1069
      %v1099 = vunpack.c.l.b16 %v1070
      %v1100 = vunpack.c.l.b16 %v1071
      %v1101 = vunpack.c.l.b16 %v1072
      %v1102 = vunpack.c.l.b16 %v1073
      %v1103 = vunpack.c.l.b16 %v1074
      %v1104 = vunpack.c.l.b16 %v1075
      %v1105 = vunpack.c.l.b16 %v1076
      %v1106 = vpack.c.b16 %v1099, %v1098
      %v1107 = vpack.c.b16 %v1101, %v1100
      %v1108 = vpack.c.b16 %v1103, %v1102
      %v1109 = vpack.c.b16 %v1105, %v1104
      %v1111 = vsel %vm422, %v1106, 0
      %v1114 = vsel %vm422, %v1107, 0
      %v1117 = vsel %vm422, %v1108, 0
      %v1120 = vsel %vm422, %v1109, 0
      %v1123 = vsel %vm435, %v1088, 0
      %v1126 = vsel %vm435, %v1089, 0
      %1128 = vmatprep.subr.bf16.mxu0 0
      %1129 = vmatpush1.bf16.msra.mxu0 0
      %1130 = vmatprep.subr.bf16.mxu0 0
      %1131 = vmatpush1.bf16.msra.mxu0 0
      %1132 = vmatprep.subr.bf16.mxu0 0
      %1133 = vmatpush1.bf16.msra.mxu0 0
      %1134 = vmatprep.subr.bf16.mxu0 0
      %1135 = vmatpush1.bf16.msra.mxu0 0
      %1136 = vmatprep.subr.bf16.mxu0 0
      %1137 = vmatpush1.bf16.msra.mxu0 0
      %1138 = vmatprep.subr.bf16.mxu0 0
      %1139 = vmatpush1.bf16.msra.mxu0 0
      %1140 = vmatprep.subr.bf16.mxu0 0
      %1141 = vmatpush1.bf16.msra.mxu0 0
      %1142 = vmatprep.subr.bf16.mxu0 %v1126
      %1143 = vmatpush1.bf16.msra.mxu0 %v1123
      %1144 = vmatprep.subr.bf16.mxu0 0
      %1145 = vmatpush2.bf16.msra.mxu0 0
      %1146 = vmatprep.subr.bf16.mxu0 0
      %1147 = vmatpush2.bf16.msra.mxu0 0
      %1148 = vmatprep.subr.bf16.mxu0 0
      %1149 = vmatpush2.bf16.msra.mxu0 0
      %1150 = vmatprep.subr.bf16.mxu0 0
      %1151 = vmatpush2.bf16.msra.mxu0 0
      %1152 = vmatprep.subr.bf16.mxu0 0
      %1153 = vmatpush2.bf16.msra.mxu0 0
      %1154 = vmatprep.subr.bf16.mxu0 0
      %1155 = vmatpush2.bf16.msra.mxu0 0
      %1156 = vmatprep.subr.bf16.mxu0 0
      %1157 = vmatpush2.bf16.msra.mxu0 0
      %1158 = vmatprep.subr.bf16.mxu0 0
      %1159 = vmatpush2.bf16.msra.mxu0 0
      %1160 = vmatprep.mubr.bf16.mxu0 0
      %1161 = vmatmul.mubr.bf16.gmra.mxu0 %v1111
      %v1162 = vpop.f32.mrf.mxu0
      %v1163 = vadd.f32 0.0, %v1162
      %v1164 = vpop.f32.mrf.mxu0
      %v1165 = vadd.f32 0.0, %v1164
      %v1166 = vpop.f32.mrf.mxu0
      %v1167 = vadd.f32 0.0, %v1166
      %v1168 = vpop.f32.mrf.mxu0
      %v1169 = vadd.f32 0.0, %v1168
      %1170 = vmatprep.mubr.bf16.mxu0 0
      %1171 = vmatmul.mubr.bf16.gmra.mxu0 %v1114
      %v1172 = vpop.f32.mrf.mxu0
      %v1173 = vadd.f32 0.0, %v1172
      %v1174 = vpop.f32.mrf.mxu0
      %v1175 = vadd.f32 0.0, %v1174
      %v1176 = vpop.f32.mrf.mxu0
      %v1177 = vadd.f32 0.0, %v1176
      %v1178 = vpop.f32.mrf.mxu0
      %v1179 = vadd.f32 0.0, %v1178
      %1180 = vmatprep.mubr.bf16.mxu0 0
      %1181 = vmatmul.mubr.bf16.gmra.mxu0 %v1117
      %v1182 = vpop.f32.mrf.mxu0
      %v1183 = vadd.f32 0.0, %v1182
      %v1184 = vpop.f32.mrf.mxu0
      %v1185 = vadd.f32 0.0, %v1184
      %v1186 = vpop.f32.mrf.mxu0
      %v1187 = vadd.f32 0.0, %v1186
      %v1188 = vpop.f32.mrf.mxu0
      %v1189 = vadd.f32 0.0, %v1188
      %1190 = vmatprep.mubr.bf16.mxu0 0
      %1191 = vmatmul.mubr.bf16.gmra.mxu0 %v1120
      %v1192 = vpop.f32.mrf.mxu0
      %v1193 = vadd.f32 0.0, %v1192
      %v1194 = vpop.f32.mrf.mxu0
      %v1195 = vadd.f32 0.0, %v1194
      %v1196 = vpop.f32.mrf.mxu0
      %v1197 = vadd.f32 0.0, %v1196
      %v1198 = vpop.f32.mrf.mxu0
      %v1199 = vadd.f32 0.0, %v1198
      %1200 = vdwg.mxu0
      %v1201 = vadd.f32 %v1052, %v1163
      %v1202 = vadd.f32 %v1053, %v1165
      %v1203 = vadd.f32 %v1054, %v1167
      %v1204 = vadd.f32 %v1055, %v1169
      %v1205 = vadd.f32 %v1056, %v1173
      %v1206 = vadd.f32 %v1057, %v1175
      %v1207 = vadd.f32 %v1058, %v1177
      %v1208 = vadd.f32 %v1059, %v1179
      %v1209 = vadd.f32 %v1060, %v1183
      %v1210 = vadd.f32 %v1061, %v1185
      %v1211 = vadd.f32 %v1062, %v1187
      %v1212 = vadd.f32 %v1063, %v1189
      %v1213 = vadd.f32 %v1064, %v1193
      %v1214 = vadd.f32 %v1065, %v1195
      %v1215 = vadd.f32 %v1066, %v1197
      %v1216 = vadd.f32 %v1067, %v1199
      %s1217 = scalar_lea.vmem %s2, 192
      %v1218 = vld [vmem:[%s1217] sm:$0xf]
      %v1219 = vld [vmem:[%s1217 + $0x4] sm:$0xf]
      %v1220 = vld [vmem:[%s1217 + $0x8] sm:$0xf]
      %v1221 = vld [vmem:[%s1217 + $0xc] sm:$0xf]
      %v1222 = vld [vmem:[%s1217 + $0x10] sm:$0xf]
      %v1223 = vld [vmem:[%s1217 + $0x14] sm:$0xf]
      %v1224 = vld [vmem:[%s1217 + $0x18] sm:$0xf]
      %v1225 = vld [vmem:[%s1217 + $0x1c] sm:$0xf]
      %1226 = vrot.lane.b32.xlu0 %v363, 113
      %v1227 = vpop.permute.xlu0 %1226
      %1228 = vrot.lane.b32.xlu0 %v364, 113
      %v1229 = vpop.permute.xlu0 %1228
      %vm1230 = vcmask 924672
      %v1231 = vsel %vm1230, %v1227, %v1229
      %v1234 = vsel %vm1230, %v1229, 0.0
      %v1235 = vsel %vm376, %v1231, 0.0
      %v1236 = vsel %vm377, %v1234, 0.0
      %v1237 = vpack.c.bf16 %v1235, %v1235
      %v1238 = vpack.c.bf16 %v1236, %v1236
      %v1247 = vunpack.c.l.b16 %v1218
      %v1248 = vunpack.c.l.b16 %v1219
      %v1249 = vunpack.c.l.b16 %v1220
      %v1250 = vunpack.c.l.b16 %v1221
      %v1251 = vunpack.c.l.b16 %v1222
      %v1252 = vunpack.c.l.b16 %v1223
      %v1253 = vunpack.c.l.b16 %v1224
      %v1254 = vunpack.c.l.b16 %v1225
      %v1255 = vpack.c.b16 %v1248, %v1247
      %v1256 = vpack.c.b16 %v1250, %v1249
      %v1257 = vpack.c.b16 %v1252, %v1251
      %v1258 = vpack.c.b16 %v1254, %v1253
      %v1260 = vsel %vm422, %v1255, 0
      %v1263 = vsel %vm422, %v1256, 0
      %v1266 = vsel %vm422, %v1257, 0
      %v1269 = vsel %vm422, %v1258, 0
      %v1272 = vsel %vm435, %v1237, 0
      %v1275 = vsel %vm435, %v1238, 0
      %1277 = vmatprep.subr.bf16.mxu0 0
      %1278 = vmatpush1.bf16.msra.mxu0 0
      %1279 = vmatprep.subr.bf16.mxu0 0
      %1280 = vmatpush1.bf16.msra.mxu0 0
      %1281 = vmatprep.subr.bf16.mxu0 0
      %1282 = vmatpush1.bf16.msra.mxu0 0
      %1283 = vmatprep.subr.bf16.mxu0 0
      %1284 = vmatpush1.bf16.msra.mxu0 0
      %1285 = vmatprep.subr.bf16.mxu0 0
      %1286 = vmatpush1.bf16.msra.mxu0 0
      %1287 = vmatprep.subr.bf16.mxu0 0
      %1288 = vmatpush1.bf16.msra.mxu0 0
      %1289 = vmatprep.subr.bf16.mxu0 0
      %1290 = vmatpush1.bf16.msra.mxu0 0
      %1291 = vmatprep.subr.bf16.mxu0 %v1275
      %1292 = vmatpush1.bf16.msra.mxu0 %v1272
      %1293 = vmatprep.subr.bf16.mxu0 0
      %1294 = vmatpush2.bf16.msra.mxu0 0
      %1295 = vmatprep.subr.bf16.mxu0 0
      %1296 = vmatpush2.bf16.msra.mxu0 0
      %1297 = vmatprep.subr.bf16.mxu0 0
      %1298 = vmatpush2.bf16.msra.mxu0 0
      %1299 = vmatprep.subr.bf16.mxu0 0
      %1300 = vmatpush2.bf16.msra.mxu0 0
      %1301 = vmatprep.subr.bf16.mxu0 0
      %1302 = vmatpush2.bf16.msra.mxu0 0
      %1303 = vmatprep.subr.bf16.mxu0 0
      %1304 = vmatpush2.bf16.msra.mxu0 0
      %1305 = vmatprep.subr.bf16.mxu0 0
      %1306 = vmatpush2.bf16.msra.mxu0 0
      %1307 = vmatprep.subr.bf16.mxu0 0
      %1308 = vmatpush2.bf16.msra.mxu0 0
      %1309 = vmatprep.mubr.bf16.mxu0 0
      %1310 = vmatmul.mubr.bf16.gmra.mxu0 %v1260
      %v1311 = vpop.f32.mrf.mxu0
      %v1312 = vadd.f32 0.0, %v1311
      %v1313 = vpop.f32.mrf.mxu0
      %v1314 = vadd.f32 0.0, %v1313
      %v1315 = vpop.f32.mrf.mxu0
      %v1316 = vadd.f32 0.0, %v1315
      %v1317 = vpop.f32.mrf.mxu0
      %v1318 = vadd.f32 0.0, %v1317
      %1319 = vmatprep.mubr.bf16.mxu0 0
      %1320 = vmatmul.mubr.bf16.gmra.mxu0 %v1263
      %v1321 = vpop.f32.mrf.mxu0
      %v1322 = vadd.f32 0.0, %v1321
      %v1323 = vpop.f32.mrf.mxu0
      %v1324 = vadd.f32 0.0, %v1323
      %v1325 = vpop.f32.mrf.mxu0
      %v1326 = vadd.f32 0.0, %v1325
      %v1327 = vpop.f32.mrf.mxu0
      %v1328 = vadd.f32 0.0, %v1327
      %1329 = vmatprep.mubr.bf16.mxu0 0
      %1330 = vmatmul.mubr.bf16.gmra.mxu0 %v1266
      %v1331 = vpop.f32.mrf.mxu0
      %v1332 = vadd.f32 0.0, %v1331
      %v1333 = vpop.f32.mrf.mxu0
      %v1334 = vadd.f32 0.0, %v1333
      %v1335 = vpop.f32.mrf.mxu0
      %v1336 = vadd.f32 0.0, %v1335
      %v1337 = vpop.f32.mrf.mxu0
      %v1338 = vadd.f32 0.0, %v1337
      %1339 = vmatprep.mubr.bf16.mxu0 0
      %1340 = vmatmul.mubr.bf16.gmra.mxu0 %v1269
      %v1341 = vpop.f32.mrf.mxu0
      %v1342 = vadd.f32 0.0, %v1341
      %v1343 = vpop.f32.mrf.mxu0
      %v1344 = vadd.f32 0.0, %v1343
      %v1345 = vpop.f32.mrf.mxu0
      %v1346 = vadd.f32 0.0, %v1345
      %v1347 = vpop.f32.mrf.mxu0
      %v1348 = vadd.f32 0.0, %v1347
      %1349 = vdwg.mxu0
      %v1350 = vadd.f32 %v1201, %v1312
      %v1351 = vadd.f32 %v1202, %v1314
      %v1352 = vadd.f32 %v1203, %v1316
      %v1353 = vadd.f32 %v1204, %v1318
      %v1354 = vadd.f32 %v1205, %v1322
      %v1355 = vadd.f32 %v1206, %v1324
      %v1356 = vadd.f32 %v1207, %v1326
      %v1357 = vadd.f32 %v1208, %v1328
      %v1358 = vadd.f32 %v1209, %v1332
      %v1359 = vadd.f32 %v1210, %v1334
      %v1360 = vadd.f32 %v1211, %v1336
      %v1361 = vadd.f32 %v1212, %v1338
      %v1362 = vadd.f32 %v1213, %v1342
      %v1363 = vadd.f32 %v1214, %v1344
      %v1364 = vadd.f32 %v1215, %v1346
      %v1365 = vadd.f32 %v1216, %v1348
      %s1366 = scalar_lea.vmem %s2, 224
      %v1367 = vld [vmem:[%s1366] sm:$0xf]
      %v1368 = vld [vmem:[%s1366 + $0x4] sm:$0xf]
      %v1369 = vld [vmem:[%s1366 + $0x8] sm:$0xf]
      %v1370 = vld [vmem:[%s1366 + $0xc] sm:$0xf]
      %v1371 = vld [vmem:[%s1366 + $0x10] sm:$0xf]
      %v1372 = vld [vmem:[%s1366 + $0x14] sm:$0xf]
      %v1373 = vld [vmem:[%s1366 + $0x18] sm:$0xf]
      %v1374 = vld [vmem:[%s1366 + $0x1c] sm:$0xf]
      %1375 = vrot.lane.b32.xlu0 %v363, 112
      %v1376 = vpop.permute.xlu0 %1375
      %1377 = vrot.lane.b32.xlu0 %v364, 112
      %v1378 = vpop.permute.xlu0 %1377
      %vm1379 = vcmask 916480
      %v1380 = vsel %vm1379, %v1376, %v1378
      %v1383 = vsel %vm1379, %v1378, 0.0
      %v1384 = vpack.c.bf16 %v1380, %v1380
      %v1385 = vpack.c.bf16 %v1383, %v1383
      %v1394 = vunpack.c.l.b16 %v1367
      %v1395 = vunpack.c.l.b16 %v1368
      %v1396 = vunpack.c.l.b16 %v1369
      %v1397 = vunpack.c.l.b16 %v1370
      %v1398 = vunpack.c.l.b16 %v1371
      %v1399 = vunpack.c.l.b16 %v1372
      %v1400 = vunpack.c.l.b16 %v1373
      %v1401 = vunpack.c.l.b16 %v1374
      %v1402 = vpack.c.b16 %v1395, %v1394
      %v1403 = vpack.c.b16 %v1397, %v1396
      %v1404 = vpack.c.b16 %v1399, %v1398
      %v1405 = vpack.c.b16 %v1401, %v1400
      %v1407 = vsel %vm422, %v1402, 0
      %v1410 = vsel %vm422, %v1403, 0
      %v1413 = vsel %vm422, %v1404, 0
      %v1416 = vsel %vm422, %v1405, 0
      %v1419 = vsel %vm435, %v1384, 0
      %v1422 = vsel %vm435, %v1385, 0
      %1424 = vmatprep.subr.bf16.mxu0 0
      %1425 = vmatpush1.bf16.msra.mxu0 0
      %1426 = vmatprep.subr.bf16.mxu0 0
      %1427 = vmatpush1.bf16.msra.mxu0 0
      %1428 = vmatprep.subr.bf16.mxu0 0
      %1429 = vmatpush1.bf16.msra.mxu0 0
      %1430 = vmatprep.subr.bf16.mxu0 0
      %1431 = vmatpush1.bf16.msra.mxu0 0
      %1432 = vmatprep.subr.bf16.mxu0 0
      %1433 = vmatpush1.bf16.msra.mxu0 0
      %1434 = vmatprep.subr.bf16.mxu0 0
      %1435 = vmatpush1.bf16.msra.mxu0 0
      %1436 = vmatprep.subr.bf16.mxu0 0
      %1437 = vmatpush1.bf16.msra.mxu0 0
      %1438 = vmatprep.subr.bf16.mxu0 %v1422
      %1439 = vmatpush1.bf16.msra.mxu0 %v1419
      %1440 = vmatprep.subr.bf16.mxu0 0
      %1441 = vmatpush2.bf16.msra.mxu0 0
      %1442 = vmatprep.subr.bf16.mxu0 0
      %1443 = vmatpush2.bf16.msra.mxu0 0
      %1444 = vmatprep.subr.bf16.mxu0 0
      %1445 = vmatpush2.bf16.msra.mxu0 0
      %1446 = vmatprep.subr.bf16.mxu0 0
      %1447 = vmatpush2.bf16.msra.mxu0 0
      %1448 = vmatprep.subr.bf16.mxu0 0
      %1449 = vmatpush2.bf16.msra.mxu0 0
      %1450 = vmatprep.subr.bf16.mxu0 0
      %1451 = vmatpush2.bf16.msra.mxu0 0
      %1452 = vmatprep.subr.bf16.mxu0 0
      %1453 = vmatpush2.bf16.msra.mxu0 0
      %1454 = vmatprep.subr.bf16.mxu0 0
      %1455 = vmatpush2.bf16.msra.mxu0 0
      %1456 = vmatprep.mubr.bf16.mxu0 0
      %1457 = vmatmul.mubr.bf16.gmra.mxu0 %v1407
      %v1458 = vpop.f32.mrf.mxu0
      %v1459 = vadd.f32 0.0, %v1458
      %v1460 = vpop.f32.mrf.mxu0
      %v1461 = vadd.f32 0.0, %v1460
      %v1462 = vpop.f32.mrf.mxu0
      %v1463 = vadd.f32 0.0, %v1462
      %v1464 = vpop.f32.mrf.mxu0
      %v1465 = vadd.f32 0.0, %v1464
      %1466 = vmatprep.mubr.bf16.mxu0 0
      %1467 = vmatmul.mubr.bf16.gmra.mxu0 %v1410
      %v1468 = vpop.f32.mrf.mxu0
      %v1469 = vadd.f32 0.0, %v1468
      %v1470 = vpop.f32.mrf.mxu0
      %v1471 = vadd.f32 0.0, %v1470
      %v1472 = vpop.f32.mrf.mxu0
      %v1473 = vadd.f32 0.0, %v1472
      %v1474 = vpop.f32.mrf.mxu0
      %v1475 = vadd.f32 0.0, %v1474
      %1476 = vmatprep.mubr.bf16.mxu0 0
      %1477 = vmatmul.mubr.bf16.gmra.mxu0 %v1413
      %v1478 = vpop.f32.mrf.mxu0
      %v1479 = vadd.f32 0.0, %v1478
      %v1480 = vpop.f32.mrf.mxu0
      %v1481 = vadd.f32 0.0, %v1480
      %v1482 = vpop.f32.mrf.mxu0
      %v1483 = vadd.f32 0.0, %v1482
      %v1484 = vpop.f32.mrf.mxu0
      %v1485 = vadd.f32 0.0, %v1484
      %1486 = vmatprep.mubr.bf16.mxu0 0
      %1487 = vmatmul.mubr.bf16.gmra.mxu0 %v1416
      %v1488 = vpop.f32.mrf.mxu0
      %v1489 = vadd.f32 0.0, %v1488
      %v1490 = vpop.f32.mrf.mxu0
      %v1491 = vadd.f32 0.0, %v1490
      %v1492 = vpop.f32.mrf.mxu0
      %v1493 = vadd.f32 0.0, %v1492
      %v1494 = vpop.f32.mrf.mxu0
      %v1495 = vadd.f32 0.0, %v1494
      %1496 = vdwg.mxu0
      %v1497 = vadd.f32 %v1350, %v1459
      %v1498 = vadd.f32 %v1351, %v1461
      %v1499 = vadd.f32 %v1352, %v1463
      %v1500 = vadd.f32 %v1353, %v1465
      %v1501 = vadd.f32 %v1354, %v1469
      %v1502 = vadd.f32 %v1355, %v1471
      %v1503 = vadd.f32 %v1356, %v1473
      %v1504 = vadd.f32 %v1357, %v1475
      %v1505 = vadd.f32 %v1358, %v1479
      %v1506 = vadd.f32 %v1359, %v1481
      %v1507 = vadd.f32 %v1360, %v1483
      %v1508 = vadd.f32 %v1361, %v1485
      %v1509 = vadd.f32 %v1362, %v1489
      %v1510 = vadd.f32 %v1363, %v1491
      %v1511 = vadd.f32 %v1364, %v1493
      %v1512 = vadd.f32 %v1365, %v1495
      %s1513 = scalar_lea.vmem %s2, 256
      %v1514 = vld [vmem:[%s1513] sm:$0xf]
      %v1515 = vld [vmem:[%s1513 + $0x4] sm:$0xf]
      %v1516 = vld [vmem:[%s1513 + $0x8] sm:$0xf]
      %v1517 = vld [vmem:[%s1513 + $0xc] sm:$0xf]
      %v1518 = vld [vmem:[%s1513 + $0x10] sm:$0xf]
      %v1519 = vld [vmem:[%s1513 + $0x14] sm:$0xf]
      %v1520 = vld [vmem:[%s1513 + $0x18] sm:$0xf]
      %v1521 = vld [vmem:[%s1513 + $0x1c] sm:$0xf]
      %1522 = vrot.lane.b32.xlu0 %v363, 111
      %v1523 = vpop.permute.xlu0 %1522
      %1524 = vrot.lane.b32.xlu0 %v364, 111
      %v1525 = vpop.permute.xlu0 %1524
      %vm1526 = vcmask 908288
      %v1527 = vsel %vm1526, %v1523, %v1525
      %v1530 = vsel %vm1526, %v1525, 0.0
      %v1531 = vsel %vm646, %v1527, 0.0
      %v1532 = vsel %vm647, %v1530, 0.0
      %v1533 = vpack.c.bf16 %v1531, %v1531
      %v1534 = vpack.c.bf16 %v1532, %v1532
      %v1543 = vunpack.c.l.b16 %v1514
      %v1544 = vunpack.c.l.b16 %v1515
      %v1545 = vunpack.c.l.b16 %v1516
      %v1546 = vunpack.c.l.b16 %v1517
      %v1547 = vunpack.c.l.b16 %v1518
      %v1548 = vunpack.c.l.b16 %v1519
      %v1549 = vunpack.c.l.b16 %v1520
      %v1550 = vunpack.c.l.b16 %v1521
      %v1551 = vpack.c.b16 %v1544, %v1543
      %v1552 = vpack.c.b16 %v1546, %v1545
      %v1553 = vpack.c.b16 %v1548, %v1547
      %v1554 = vpack.c.b16 %v1550, %v1549
      %v1556 = vsel %vm422, %v1551, 0
      %v1559 = vsel %vm422, %v1552, 0
      %v1562 = vsel %vm422, %v1553, 0
      %v1565 = vsel %vm422, %v1554, 0
      %v1568 = vsel %vm435, %v1533, 0
      %v1571 = vsel %vm435, %v1534, 0
      %1573 = vmatprep.subr.bf16.mxu0 0
      %1574 = vmatpush1.bf16.msra.mxu0 0
      %1575 = vmatprep.subr.bf16.mxu0 0
      %1576 = vmatpush1.bf16.msra.mxu0 0
      %1577 = vmatprep.subr.bf16.mxu0 0
      %1578 = vmatpush1.bf16.msra.mxu0 0
      %1579 = vmatprep.subr.bf16.mxu0 0
      %1580 = vmatpush1.bf16.msra.mxu0 0
      %1581 = vmatprep.subr.bf16.mxu0 0
      %1582 = vmatpush1.bf16.msra.mxu0 0
      %1583 = vmatprep.subr.bf16.mxu0 0
      %1584 = vmatpush1.bf16.msra.mxu0 0
      %1585 = vmatprep.subr.bf16.mxu0 0
      %1586 = vmatpush1.bf16.msra.mxu0 0
      %1587 = vmatprep.subr.bf16.mxu0 %v1571
      %1588 = vmatpush1.bf16.msra.mxu0 %v1568
      %1589 = vmatprep.subr.bf16.mxu0 0
      %1590 = vmatpush2.bf16.msra.mxu0 0
      %1591 = vmatprep.subr.bf16.mxu0 0
      %1592 = vmatpush2.bf16.msra.mxu0 0
      %1593 = vmatprep.subr.bf16.mxu0 0
      %1594 = vmatpush2.bf16.msra.mxu0 0
      %1595 = vmatprep.subr.bf16.mxu0 0
      %1596 = vmatpush2.bf16.msra.mxu0 0
      %1597 = vmatprep.subr.bf16.mxu0 0
      %1598 = vmatpush2.bf16.msra.mxu0 0
      %1599 = vmatprep.subr.bf16.mxu0 0
      %1600 = vmatpush2.bf16.msra.mxu0 0
      %1601 = vmatprep.subr.bf16.mxu0 0
      %1602 = vmatpush2.bf16.msra.mxu0 0
      %1603 = vmatprep.subr.bf16.mxu0 0
      %1604 = vmatpush2.bf16.msra.mxu0 0
      %1605 = vmatprep.mubr.bf16.mxu0 0
      %1606 = vmatmul.mubr.bf16.gmra.mxu0 %v1556
      %v1607 = vpop.f32.mrf.mxu0
      %v1608 = vadd.f32 0.0, %v1607
      %v1609 = vpop.f32.mrf.mxu0
      %v1610 = vadd.f32 0.0, %v1609
      %v1611 = vpop.f32.mrf.mxu0
      %v1612 = vadd.f32 0.0, %v1611
      %v1613 = vpop.f32.mrf.mxu0
      %v1614 = vadd.f32 0.0, %v1613
      %1615 = vmatprep.mubr.bf16.mxu0 0
      %1616 = vmatmul.mubr.bf16.gmra.mxu0 %v1559
      %v1617 = vpop.f32.mrf.mxu0
      %v1618 = vadd.f32 0.0, %v1617
      %v1619 = vpop.f32.mrf.mxu0
      %v1620 = vadd.f32 0.0, %v1619
      %v1621 = vpop.f32.mrf.mxu0
      %v1622 = vadd.f32 0.0, %v1621
      %v1623 = vpop.f32.mrf.mxu0
      %v1624 = vadd.f32 0.0, %v1623
      %1625 = vmatprep.mubr.bf16.mxu0 0
      %1626 = vmatmul.mubr.bf16.gmra.mxu0 %v1562
      %v1627 = vpop.f32.mrf.mxu0
      %v1628 = vadd.f32 0.0, %v1627
      %v1629 = vpop.f32.mrf.mxu0
      %v1630 = vadd.f32 0.0, %v1629
      %v1631 = vpop.f32.mrf.mxu0
      %v1632 = vadd.f32 0.0, %v1631
      %v1633 = vpop.f32.mrf.mxu0
      %v1634 = vadd.f32 0.0, %v1633
      %1635 = vmatprep.mubr.bf16.mxu0 0
      %1636 = vmatmul.mubr.bf16.gmra.mxu0 %v1565
      %v1637 = vpop.f32.mrf.mxu0
      %v1638 = vadd.f32 0.0, %v1637
      %v1639 = vpop.f32.mrf.mxu0
      %v1640 = vadd.f32 0.0, %v1639
      %v1641 = vpop.f32.mrf.mxu0
      %v1642 = vadd.f32 0.0, %v1641
      %v1643 = vpop.f32.mrf.mxu0
      %v1644 = vadd.f32 0.0, %v1643
      %1645 = vdwg.mxu0
      %v1646 = vadd.f32 %v1497, %v1608
      %v1647 = vadd.f32 %v1498, %v1610
      %v1648 = vadd.f32 %v1499, %v1612
      %v1649 = vadd.f32 %v1500, %v1614
      %v1650 = vadd.f32 %v1501, %v1618
      %v1651 = vadd.f32 %v1502, %v1620
      %v1652 = vadd.f32 %v1503, %v1622
      %v1653 = vadd.f32 %v1504, %v1624
      %v1654 = vadd.f32 %v1505, %v1628
      %v1655 = vadd.f32 %v1506, %v1630
      %v1656 = vadd.f32 %v1507, %v1632
      %v1657 = vadd.f32 %v1508, %v1634
      %v1658 = vadd.f32 %v1509, %v1638
      %v1659 = vadd.f32 %v1510, %v1640
      %v1660 = vadd.f32 %v1511, %v1642
      %v1661 = vadd.f32 %v1512, %v1644
      %v1662 = vld [vmem:[%s3] sm:$0xff]
      %v1663 = vld [vmem:[%s3 + $0x8] sm:$0xff]
      %v1664 = vld [vmem:[%s3 + $0x10] sm:$0xff]
      %v1665 = vld [vmem:[%s3 + $0x18] sm:$0xff]
      %v1666 = vld [vmem:[%s3 + $0x20] sm:$0xff]
      %v1667 = vld [vmem:[%s3 + $0x28] sm:$0xff]
      %v1668 = vld [vmem:[%s3 + $0x30] sm:$0xff]
      %v1669 = vld [vmem:[%s3 + $0x38] sm:$0xff]
      %1671 = vset.pattern.permute.xlu0 0
      %1672 = vperm.xlu0 %1671, %v1662
      %v1673 = vpop.permute.xlu0 %1672
      %1676 = vset.pattern.permute.xlu0 0
      %1677 = vperm.xlu0 %1676, %v1663
      %v1678 = vpop.permute.xlu0 %1677
      %1681 = vset.pattern.permute.xlu0 0
      %1682 = vperm.xlu0 %1681, %v1664
      %v1683 = vpop.permute.xlu0 %1682
      %1686 = vset.pattern.permute.xlu0 0
      %1687 = vperm.xlu0 %1686, %v1665
      %v1688 = vpop.permute.xlu0 %1687
      %1691 = vset.pattern.permute.xlu0 0
      %1692 = vperm.xlu0 %1691, %v1666
      %v1693 = vpop.permute.xlu0 %1692
      %1696 = vset.pattern.permute.xlu0 0
      %1697 = vperm.xlu0 %1696, %v1667
      %v1698 = vpop.permute.xlu0 %1697
      %1701 = vset.pattern.permute.xlu0 0
      %1702 = vperm.xlu0 %1701, %v1668
      %v1703 = vpop.permute.xlu0 %1702
      %1706 = vset.pattern.permute.xlu0 0
      %1707 = vperm.xlu0 %1706, %v1669
      %v1708 = vpop.permute.xlu0 %1707
      %v1710 = vadd.f32 %v1646, %v1673
      %v1711 = vadd.f32 %v1647, %v1673
      %v1712 = vadd.f32 %v1648, %v1678
      %v1713 = vadd.f32 %v1649, %v1678
      %v1714 = vadd.f32 %v1650, %v1683
      %v1715 = vadd.f32 %v1651, %v1683
      %v1716 = vadd.f32 %v1652, %v1688
      %v1717 = vadd.f32 %v1653, %v1688
      %v1718 = vadd.f32 %v1654, %v1693
      %v1719 = vadd.f32 %v1655, %v1693
      %v1720 = vadd.f32 %v1656, %v1698
      %v1721 = vadd.f32 %v1657, %v1698
      %v1722 = vadd.f32 %v1658, %v1703
      %v1723 = vadd.f32 %v1659, %v1703
      %v1724 = vadd.f32 %v1660, %v1708
      %v1725 = vadd.f32 %v1661, %v1708
      %v1726 = vmax.f32 %v1710, 0.0
      %v1727 = vmax.f32 %v1711, 0.0
      %v1728 = vmax.f32 %v1712, 0.0
      %v1729 = vmax.f32 %v1713, 0.0
      %v1730 = vmax.f32 %v1714, 0.0
      %v1731 = vmax.f32 %v1715, 0.0
      %v1732 = vmax.f32 %v1716, 0.0
      %v1733 = vmax.f32 %v1717, 0.0
      %v1734 = vmax.f32 %v1718, 0.0
      %v1735 = vmax.f32 %v1719, 0.0
      %v1736 = vmax.f32 %v1720, 0.0
      %v1737 = vmax.f32 %v1721, 0.0
      %v1738 = vmax.f32 %v1722, 0.0
      %v1739 = vmax.f32 %v1723, 0.0
      %v1740 = vmax.f32 %v1724, 0.0
      %v1741 = vmax.f32 %v1725, 0.0
      %1758 = vrot.lane.b32.xlu0 %v1726, 17
      %v1759 = vpop.permute.xlu0 %1758
      %1760 = vrot.lane.b32.xlu0 %v1727, 17
      %v1761 = vpop.permute.xlu0 %1760
      %1762 = vrot.lane.b32.xlu0 %v1728, 17
      %v1763 = vpop.permute.xlu0 %1762
      %1764 = vrot.lane.b32.xlu0 %v1729, 17
      %v1765 = vpop.permute.xlu0 %1764
      %1766 = vrot.lane.b32.xlu0 %v1730, 17
      %v1767 = vpop.permute.xlu0 %1766
      %1768 = vrot.lane.b32.xlu0 %v1731, 17
      %v1769 = vpop.permute.xlu0 %1768
      %1770 = vrot.lane.b32.xlu0 %v1732, 17
      %v1771 = vpop.permute.xlu0 %1770
      %1772 = vrot.lane.b32.xlu0 %v1733, 17
      %v1773 = vpop.permute.xlu0 %1772
      %1774 = vrot.lane.b32.xlu0 %v1734, 17
      %v1775 = vpop.permute.xlu0 %1774
      %1776 = vrot.lane.b32.xlu0 %v1735, 17
      %v1777 = vpop.permute.xlu0 %1776
      %1778 = vrot.lane.b32.xlu0 %v1736, 17
      %v1779 = vpop.permute.xlu0 %1778
      %1780 = vrot.lane.b32.xlu0 %v1737, 17
      %v1781 = vpop.permute.xlu0 %1780
      %1782 = vrot.lane.b32.xlu0 %v1738, 17
      %v1783 = vpop.permute.xlu0 %1782
      %1784 = vrot.lane.b32.xlu0 %v1739, 17
      %v1785 = vpop.permute.xlu0 %1784
      %1786 = vrot.lane.b32.xlu0 %v1740, 17
      %v1787 = vpop.permute.xlu0 %1786
      %1788 = vrot.lane.b32.xlu0 %v1741, 17
      %v1789 = vpop.permute.xlu0 %1788
      %v1790 = vsel %vm369, %v1759, %v1761
      %v1791 = vsel %vm369, %v1763, %v1765
      %v1792 = vsel %vm369, %v1767, %v1769
      %v1793 = vsel %vm369, %v1771, %v1773
      %v1794 = vsel %vm369, %v1775, %v1777
      %v1795 = vsel %vm369, %v1779, %v1781
      %v1796 = vsel %vm369, %v1783, %v1785
      %v1797 = vsel %vm369, %v1787, %v1789
      %v1814 = vsel %vm369, 0.0, %v1759
      %v1815 = vsel %vm369, 0.0, %v1763
      %v1816 = vsel %vm369, 0.0, %v1767
      %v1817 = vsel %vm369, 0.0, %v1771
      %v1818 = vsel %vm369, 0.0, %v1775
      %v1819 = vsel %vm369, 0.0, %v1779
      %v1820 = vsel %vm369, 0.0, %v1783
      %v1821 = vsel %vm369, 0.0, %v1787
      %v1822 = vsel %vm376, %v1814, 0.0
      %v1823 = vsel %vm377, %v1790, 0.0
      %v1824 = vsel %vm376, %v1815, 0.0
      %v1825 = vsel %vm377, %v1791, 0.0
      %v1826 = vsel %vm376, %v1816, 0.0
      %v1827 = vsel %vm377, %v1792, 0.0
      %v1828 = vsel %vm376, %v1817, 0.0
      %v1829 = vsel %vm377, %v1793, 0.0
      %v1830 = vsel %vm376, %v1818, 0.0
      %v1831 = vsel %vm377, %v1794, 0.0
      %v1832 = vsel %vm376, %v1819, 0.0
      %v1833 = vsel %vm377, %v1795, 0.0
      %v1834 = vsel %vm376, %v1820, 0.0
      %v1835 = vsel %vm377, %v1796, 0.0
      %v1836 = vsel %vm376, %v1821, 0.0
      %v1837 = vsel %vm377, %v1797, 0.0
      %1838 = vrot.lane.b32.xlu0 %v1726, 16
      %v1839 = vpop.permute.xlu0 %1838
      %1840 = vrot.lane.b32.xlu0 %v1727, 16
      %v1841 = vpop.permute.xlu0 %1840
      %1842 = vrot.lane.b32.xlu0 %v1728, 16
      %v1843 = vpop.permute.xlu0 %1842
      %1844 = vrot.lane.b32.xlu0 %v1729, 16
      %v1845 = vpop.permute.xlu0 %1844
      %1846 = vrot.lane.b32.xlu0 %v1730, 16
      %v1847 = vpop.permute.xlu0 %1846
      %1848 = vrot.lane.b32.xlu0 %v1731, 16
      %v1849 = vpop.permute.xlu0 %1848
      %1850 = vrot.lane.b32.xlu0 %v1732, 16
      %v1851 = vpop.permute.xlu0 %1850
      %1852 = vrot.lane.b32.xlu0 %v1733, 16
      %v1853 = vpop.permute.xlu0 %1852
      %1854 = vrot.lane.b32.xlu0 %v1734, 16
      %v1855 = vpop.permute.xlu0 %1854
      %1856 = vrot.lane.b32.xlu0 %v1735, 16
      %v1857 = vpop.permute.xlu0 %1856
      %1858 = vrot.lane.b32.xlu0 %v1736, 16
      %v1859 = vpop.permute.xlu0 %1858
      %1860 = vrot.lane.b32.xlu0 %v1737, 16
      %v1861 = vpop.permute.xlu0 %1860
      %1862 = vrot.lane.b32.xlu0 %v1738, 16
      %v1863 = vpop.permute.xlu0 %1862
      %1864 = vrot.lane.b32.xlu0 %v1739, 16
      %v1865 = vpop.permute.xlu0 %1864
      %1866 = vrot.lane.b32.xlu0 %v1740, 16
      %v1867 = vpop.permute.xlu0 %1866
      %1868 = vrot.lane.b32.xlu0 %v1741, 16
      %v1869 = vpop.permute.xlu0 %1868
      %v1870 = vsel %vm395, %v1839, %v1841
      %v1871 = vsel %vm395, %v1843, %v1845
      %v1872 = vsel %vm395, %v1847, %v1849
      %v1873 = vsel %vm395, %v1851, %v1853
      %v1874 = vsel %vm395, %v1855, %v1857
      %v1875 = vsel %vm395, %v1859, %v1861
      %v1876 = vsel %vm395, %v1863, %v1865
      %v1877 = vsel %vm395, %v1867, %v1869
      %v1894 = vsel %vm395, 0.0, %v1839
      %v1895 = vsel %vm395, 0.0, %v1843
      %v1896 = vsel %vm395, 0.0, %v1847
      %v1897 = vsel %vm395, 0.0, %v1851
      %v1898 = vsel %vm395, 0.0, %v1855
      %v1899 = vsel %vm395, 0.0, %v1859
      %v1900 = vsel %vm395, 0.0, %v1863
      %v1901 = vsel %vm395, 0.0, %v1867
      %1902 = vrot.lane.b32.xlu0 %v1726, 15
      %v1903 = vpop.permute.xlu0 %1902
      %1904 = vrot.lane.b32.xlu0 %v1727, 15
      %v1905 = vpop.permute.xlu0 %1904
      %1906 = vrot.lane.b32.xlu0 %v1728, 15
      %v1907 = vpop.permute.xlu0 %1906
      %1908 = vrot.lane.b32.xlu0 %v1729, 15
      %v1909 = vpop.permute.xlu0 %1908
      %1910 = vrot.lane.b32.xlu0 %v1730, 15
      %v1911 = vpop.permute.xlu0 %1910
      %1912 = vrot.lane.b32.xlu0 %v1731, 15
      %v1913 = vpop.permute.xlu0 %1912
      %1914 = vrot.lane.b32.xlu0 %v1732, 15
      %v1915 = vpop.permute.xlu0 %1914
      %1916 = vrot.lane.b32.xlu0 %v1733, 15
      %v1917 = vpop.permute.xlu0 %1916
      %1918 = vrot.lane.b32.xlu0 %v1734, 15
      %v1919 = vpop.permute.xlu0 %1918
      %1920 = vrot.lane.b32.xlu0 %v1735, 15
      %v1921 = vpop.permute.xlu0 %1920
      %1922 = vrot.lane.b32.xlu0 %v1736, 15
      %v1923 = vpop.permute.xlu0 %1922
      %1924 = vrot.lane.b32.xlu0 %v1737, 15
      %v1925 = vpop.permute.xlu0 %1924
      %1926 = vrot.lane.b32.xlu0 %v1738, 15
      %v1927 = vpop.permute.xlu0 %1926
      %1928 = vrot.lane.b32.xlu0 %v1739, 15
      %v1929 = vpop.permute.xlu0 %1928
      %1930 = vrot.lane.b32.xlu0 %v1740, 15
      %v1931 = vpop.permute.xlu0 %1930
      %1932 = vrot.lane.b32.xlu0 %v1741, 15
      %v1933 = vpop.permute.xlu0 %1932
      %v1934 = vsel %vm639, %v1903, %v1905
      %v1935 = vsel %vm639, %v1907, %v1909
      %v1936 = vsel %vm639, %v1911, %v1913
      %v1937 = vsel %vm639, %v1915, %v1917
      %v1938 = vsel %vm639, %v1919, %v1921
      %v1939 = vsel %vm639, %v1923, %v1925
      %v1940 = vsel %vm639, %v1927, %v1929
      %v1941 = vsel %vm639, %v1931, %v1933
      %v1958 = vsel %vm639, 0.0, %v1903
      %v1959 = vsel %vm639, 0.0, %v1907
      %v1960 = vsel %vm639, 0.0, %v1911
      %v1961 = vsel %vm639, 0.0, %v1915
      %v1962 = vsel %vm639, 0.0, %v1919
      %v1963 = vsel %vm639, 0.0, %v1923
      %v1964 = vsel %vm639, 0.0, %v1927
      %v1965 = vsel %vm639, 0.0, %v1931
      %v1966 = vsel %vm646, %v1958, 0.0
      %v1967 = vsel %vm647, %v1934, 0.0
      %v1968 = vsel %vm646, %v1959, 0.0
      %v1969 = vsel %vm647, %v1935, 0.0
      %v1970 = vsel %vm646, %v1960, 0.0
      %v1971 = vsel %vm647, %v1936, 0.0
      %v1972 = vsel %vm646, %v1961, 0.0
      %v1973 = vsel %vm647, %v1937, 0.0
      %v1974 = vsel %vm646, %v1962, 0.0
      %v1975 = vsel %vm647, %v1938, 0.0
      %v1976 = vsel %vm646, %v1963, 0.0
      %v1977 = vsel %vm647, %v1939, 0.0
      %v1978 = vsel %vm646, %v1964, 0.0
      %v1979 = vsel %vm647, %v1940, 0.0
      %v1980 = vsel %vm646, %v1965, 0.0
      %v1981 = vsel %vm647, %v1941, 0.0
      %1982 = vrot.lane.b32.xlu0 %v1726, 1
      %v1983 = vpop.permute.xlu0 %1982
      %1984 = vrot.lane.b32.xlu0 %v1727, 1
      %v1985 = vpop.permute.xlu0 %1984
      %1986 = vrot.lane.b32.xlu0 %v1728, 1
      %v1987 = vpop.permute.xlu0 %1986
      %1988 = vrot.lane.b32.xlu0 %v1729, 1
      %v1989 = vpop.permute.xlu0 %1988
      %1990 = vrot.lane.b32.xlu0 %v1730, 1
      %v1991 = vpop.permute.xlu0 %1990
      %1992 = vrot.lane.b32.xlu0 %v1731, 1
      %v1993 = vpop.permute.xlu0 %1992
      %1994 = vrot.lane.b32.xlu0 %v1732, 1
      %v1995 = vpop.permute.xlu0 %1994
      %1996 = vrot.lane.b32.xlu0 %v1733, 1
      %v1997 = vpop.permute.xlu0 %1996
      %1998 = vrot.lane.b32.xlu0 %v1734, 1
      %v1999 = vpop.permute.xlu0 %1998
      %2000 = vrot.lane.b32.xlu0 %v1735, 1
      %v2001 = vpop.permute.xlu0 %2000
      %2002 = vrot.lane.b32.xlu0 %v1736, 1
      %v2003 = vpop.permute.xlu0 %2002
      %2004 = vrot.lane.b32.xlu0 %v1737, 1
      %v2005 = vpop.permute.xlu0 %2004
      %2006 = vrot.lane.b32.xlu0 %v1738, 1
      %v2007 = vpop.permute.xlu0 %2006
      %2008 = vrot.lane.b32.xlu0 %v1739, 1
      %v2009 = vpop.permute.xlu0 %2008
      %2010 = vrot.lane.b32.xlu0 %v1740, 1
      %v2011 = vpop.permute.xlu0 %2010
      %2012 = vrot.lane.b32.xlu0 %v1741, 1
      %v2013 = vpop.permute.xlu0 %2012
      %v2014 = vsel %vm792, %v1983, %v1985
      %v2015 = vsel %vm792, %v1987, %v1989
      %v2016 = vsel %vm792, %v1991, %v1993
      %v2017 = vsel %vm792, %v1995, %v1997
      %v2018 = vsel %vm792, %v1999, %v2001
      %v2019 = vsel %vm792, %v2003, %v2005
      %v2020 = vsel %vm792, %v2007, %v2009
      %v2021 = vsel %vm792, %v2011, %v2013
      %v2038 = vsel %vm792, 0.0, %v1983
      %v2039 = vsel %vm792, 0.0, %v1987
      %v2040 = vsel %vm792, 0.0, %v1991
      %v2041 = vsel %vm792, 0.0, %v1995
      %v2042 = vsel %vm792, 0.0, %v1999
      %v2043 = vsel %vm792, 0.0, %v2003
      %v2044 = vsel %vm792, 0.0, %v2007
      %v2045 = vsel %vm792, 0.0, %v2011
      %v2046 = vsel %vm376, %v2038, 0.0
      %v2047 = vsel %vm377, %v2014, 0.0
      %v2048 = vsel %vm376, %v2039, 0.0
      %v2049 = vsel %vm377, %v2015, 0.0
      %v2050 = vsel %vm376, %v2040, 0.0
      %v2051 = vsel %vm377, %v2016, 0.0
      %v2052 = vsel %vm376, %v2041, 0.0
      %v2053 = vsel %vm377, %v2017, 0.0
      %v2054 = vsel %vm376, %v2042, 0.0
      %v2055 = vsel %vm377, %v2018, 0.0
      %v2056 = vsel %vm376, %v2043, 0.0
      %v2057 = vsel %vm377, %v2019, 0.0
      %v2058 = vsel %vm376, %v2044, 0.0
      %v2059 = vsel %vm377, %v2020, 0.0
      %v2060 = vsel %vm376, %v2045, 0.0
      %v2061 = vsel %vm377, %v2021, 0.0
      %2062 = vrot.lane.b32.xlu0 %v1726, 127
      %v2063 = vpop.permute.xlu0 %2062
      %2064 = vrot.lane.b32.xlu0 %v1727, 127
      %v2065 = vpop.permute.xlu0 %2064
      %2066 = vrot.lane.b32.xlu0 %v1728, 127
      %v2067 = vpop.permute.xlu0 %2066
      %2068 = vrot.lane.b32.xlu0 %v1729, 127
      %v2069 = vpop.permute.xlu0 %2068
      %2070 = vrot.lane.b32.xlu0 %v1730, 127
      %v2071 = vpop.permute.xlu0 %2070
      %2072 = vrot.lane.b32.xlu0 %v1731, 127
      %v2073 = vpop.permute.xlu0 %2072
      %2074 = vrot.lane.b32.xlu0 %v1732, 127
      %v2075 = vpop.permute.xlu0 %2074
      %2076 = vrot.lane.b32.xlu0 %v1733, 127
      %v2077 = vpop.permute.xlu0 %2076
      %2078 = vrot.lane.b32.xlu0 %v1734, 127
      %v2079 = vpop.permute.xlu0 %2078
      %2080 = vrot.lane.b32.xlu0 %v1735, 127
      %v2081 = vpop.permute.xlu0 %2080
      %2082 = vrot.lane.b32.xlu0 %v1736, 127
      %v2083 = vpop.permute.xlu0 %2082
      %2084 = vrot.lane.b32.xlu0 %v1737, 127
      %v2085 = vpop.permute.xlu0 %2084
      %2086 = vrot.lane.b32.xlu0 %v1738, 127
      %v2087 = vpop.permute.xlu0 %2086
      %2088 = vrot.lane.b32.xlu0 %v1739, 127
      %v2089 = vpop.permute.xlu0 %2088
      %2090 = vrot.lane.b32.xlu0 %v1740, 127
      %v2091 = vpop.permute.xlu0 %2090
      %2092 = vrot.lane.b32.xlu0 %v1741, 127
      %v2093 = vpop.permute.xlu0 %2092
      %v2094 = vsel %vm1081, %v2063, %v2065
      %v2095 = vsel %vm1081, %v2067, %v2069
      %v2096 = vsel %vm1081, %v2071, %v2073
      %v2097 = vsel %vm1081, %v2075, %v2077
      %v2098 = vsel %vm1081, %v2079, %v2081
      %v2099 = vsel %vm1081, %v2083, %v2085
      %v2100 = vsel %vm1081, %v2087, %v2089
      %v2101 = vsel %vm1081, %v2091, %v2093
      %v2118 = vsel %vm1081, %v2065, 0.0
      %v2119 = vsel %vm1081, %v2069, 0.0
      %v2120 = vsel %vm1081, %v2073, 0.0
      %v2121 = vsel %vm1081, %v2077, 0.0
      %v2122 = vsel %vm1081, %v2081, 0.0
      %v2123 = vsel %vm1081, %v2085, 0.0
      %v2124 = vsel %vm1081, %v2089, 0.0
      %v2125 = vsel %vm1081, %v2093, 0.0
      %v2126 = vsel %vm646, %v2094, 0.0
      %v2127 = vsel %vm647, %v2118, 0.0
      %v2128 = vsel %vm646, %v2095, 0.0
      %v2129 = vsel %vm647, %v2119, 0.0
      %v2130 = vsel %vm646, %v2096, 0.0
      %v2131 = vsel %vm647, %v2120, 0.0
      %v2132 = vsel %vm646, %v2097, 0.0
      %v2133 = vsel %vm647, %v2121, 0.0
      %v2134 = vsel %vm646, %v2098, 0.0
      %v2135 = vsel %vm647, %v2122, 0.0
      %v2136 = vsel %vm646, %v2099, 0.0
      %v2137 = vsel %vm647, %v2123, 0.0
      %v2138 = vsel %vm646, %v2100, 0.0
      %v2139 = vsel %vm647, %v2124, 0.0
      %v2140 = vsel %vm646, %v2101, 0.0
      %v2141 = vsel %vm647, %v2125, 0.0
      %2142 = vrot.lane.b32.xlu0 %v1726, 113
      %v2143 = vpop.permute.xlu0 %2142
      %2144 = vrot.lane.b32.xlu0 %v1727, 113
      %v2145 = vpop.permute.xlu0 %2144
      %2146 = vrot.lane.b32.xlu0 %v1728, 113
      %v2147 = vpop.permute.xlu0 %2146
      %2148 = vrot.lane.b32.xlu0 %v1729, 113
      %v2149 = vpop.permute.xlu0 %2148
      %2150 = vrot.lane.b32.xlu0 %v1730, 113
      %v2151 = vpop.permute.xlu0 %2150
      %2152 = vrot.lane.b32.xlu0 %v1731, 113
      %v2153 = vpop.permute.xlu0 %2152
      %2154 = vrot.lane.b32.xlu0 %v1732, 113
      %v2155 = vpop.permute.xlu0 %2154
      %2156 = vrot.lane.b32.xlu0 %v1733, 113
      %v2157 = vpop.permute.xlu0 %2156
      %2158 = vrot.lane.b32.xlu0 %v1734, 113
      %v2159 = vpop.permute.xlu0 %2158
      %2160 = vrot.lane.b32.xlu0 %v1735, 113
      %v2161 = vpop.permute.xlu0 %2160
      %2162 = vrot.lane.b32.xlu0 %v1736, 113
      %v2163 = vpop.permute.xlu0 %2162
      %2164 = vrot.lane.b32.xlu0 %v1737, 113
      %v2165 = vpop.permute.xlu0 %2164
      %2166 = vrot.lane.b32.xlu0 %v1738, 113
      %v2167 = vpop.permute.xlu0 %2166
      %2168 = vrot.lane.b32.xlu0 %v1739, 113
      %v2169 = vpop.permute.xlu0 %2168
      %2170 = vrot.lane.b32.xlu0 %v1740, 113
      %v2171 = vpop.permute.xlu0 %2170
      %2172 = vrot.lane.b32.xlu0 %v1741, 113
      %v2173 = vpop.permute.xlu0 %2172
      %v2174 = vsel %vm1230, %v2143, %v2145
      %v2175 = vsel %vm1230, %v2147, %v2149
      %v2176 = vsel %vm1230, %v2151, %v2153
      %v2177 = vsel %vm1230, %v2155, %v2157
      %v2178 = vsel %vm1230, %v2159, %v2161
      %v2179 = vsel %vm1230, %v2163, %v2165
      %v2180 = vsel %vm1230, %v2167, %v2169
      %v2181 = vsel %vm1230, %v2171, %v2173
      %v2198 = vsel %vm1230, %v2145, 0.0
      %v2199 = vsel %vm1230, %v2149, 0.0
      %v2200 = vsel %vm1230, %v2153, 0.0
      %v2201 = vsel %vm1230, %v2157, 0.0
      %v2202 = vsel %vm1230, %v2161, 0.0
      %v2203 = vsel %vm1230, %v2165, 0.0
      %v2204 = vsel %vm1230, %v2169, 0.0
      %v2205 = vsel %vm1230, %v2173, 0.0
      %v2206 = vsel %vm376, %v2174, 0.0
      %v2207 = vsel %vm377, %v2198, 0.0
      %v2208 = vsel %vm376, %v2175, 0.0
      %v2209 = vsel %vm377, %v2199, 0.0
      %v2210 = vsel %vm376, %v2176, 0.0
      %v2211 = vsel %vm377, %v2200, 0.0
      %v2212 = vsel %vm376, %v2177, 0.0
      %v2213 = vsel %vm377, %v2201, 0.0
      %v2214 = vsel %vm376, %v2178, 0.0
      %v2215 = vsel %vm377, %v2202, 0.0
      %v2216 = vsel %vm376, %v2179, 0.0
      %v2217 = vsel %vm377, %v2203, 0.0
      %v2218 = vsel %vm376, %v2180, 0.0
      %v2219 = vsel %vm377, %v2204, 0.0
      %v2220 = vsel %vm376, %v2181, 0.0
      %v2221 = vsel %vm377, %v2205, 0.0
      %2222 = vrot.lane.b32.xlu0 %v1726, 112
      %v2223 = vpop.permute.xlu0 %2222
      %2224 = vrot.lane.b32.xlu0 %v1727, 112
      %v2225 = vpop.permute.xlu0 %2224
      %2226 = vrot.lane.b32.xlu0 %v1728, 112
      %v2227 = vpop.permute.xlu0 %2226
      %2228 = vrot.lane.b32.xlu0 %v1729, 112
      %v2229 = vpop.permute.xlu0 %2228
      %2230 = vrot.lane.b32.xlu0 %v1730, 112
      %v2231 = vpop.permute.xlu0 %2230
      %2232 = vrot.lane.b32.xlu0 %v1731, 112
      %v2233 = vpop.permute.xlu0 %2232
      %2234 = vrot.lane.b32.xlu0 %v1732, 112
      %v2235 = vpop.permute.xlu0 %2234
      %2236 = vrot.lane.b32.xlu0 %v1733, 112
      %v2237 = vpop.permute.xlu0 %2236
      %2238 = vrot.lane.b32.xlu0 %v1734, 112
      %v2239 = vpop.permute.xlu0 %2238
      %2240 = vrot.lane.b32.xlu0 %v1735, 112
      %v2241 = vpop.permute.xlu0 %2240
      %2242 = vrot.lane.b32.xlu0 %v1736, 112
      %v2243 = vpop.permute.xlu0 %2242
      %2244 = vrot.lane.b32.xlu0 %v1737, 112
      %v2245 = vpop.permute.xlu0 %2244
      %2246 = vrot.lane.b32.xlu0 %v1738, 112
      %v2247 = vpop.permute.xlu0 %2246
      %2248 = vrot.lane.b32.xlu0 %v1739, 112
      %v2249 = vpop.permute.xlu0 %2248
      %2250 = vrot.lane.b32.xlu0 %v1740, 112
      %v2251 = vpop.permute.xlu0 %2250
      %2252 = vrot.lane.b32.xlu0 %v1741, 112
      %v2253 = vpop.permute.xlu0 %2252
      %v2254 = vsel %vm1379, %v2223, %v2225
      %v2255 = vsel %vm1379, %v2227, %v2229
      %v2256 = vsel %vm1379, %v2231, %v2233
      %v2257 = vsel %vm1379, %v2235, %v2237
      %v2258 = vsel %vm1379, %v2239, %v2241
      %v2259 = vsel %vm1379, %v2243, %v2245
      %v2260 = vsel %vm1379, %v2247, %v2249
      %v2261 = vsel %vm1379, %v2251, %v2253
      %v2278 = vsel %vm1379, %v2225, 0.0
      %v2279 = vsel %vm1379, %v2229, 0.0
      %v2280 = vsel %vm1379, %v2233, 0.0
      %v2281 = vsel %vm1379, %v2237, 0.0
      %v2282 = vsel %vm1379, %v2241, 0.0
      %v2283 = vsel %vm1379, %v2245, 0.0
      %v2284 = vsel %vm1379, %v2249, 0.0
      %v2285 = vsel %vm1379, %v2253, 0.0
      %2286 = vrot.lane.b32.xlu0 %v1726, 111
      %v2287 = vpop.permute.xlu0 %2286
      %2288 = vrot.lane.b32.xlu0 %v1727, 111
      %v2289 = vpop.permute.xlu0 %2288
      %2290 = vrot.lane.b32.xlu0 %v1728, 111
      %v2291 = vpop.permute.xlu0 %2290
      %2292 = vrot.lane.b32.xlu0 %v1729, 111
      %v2293 = vpop.permute.xlu0 %2292
      %2294 = vrot.lane.b32.xlu0 %v1730, 111
      %v2295 = vpop.permute.xlu0 %2294
      %2296 = vrot.lane.b32.xlu0 %v1731, 111
      %v2297 = vpop.permute.xlu0 %2296
      %2298 = vrot.lane.b32.xlu0 %v1732, 111
      %v2299 = vpop.permute.xlu0 %2298
      %2300 = vrot.lane.b32.xlu0 %v1733, 111
      %v2301 = vpop.permute.xlu0 %2300
      %2302 = vrot.lane.b32.xlu0 %v1734, 111
      %v2303 = vpop.permute.xlu0 %2302
      %2304 = vrot.lane.b32.xlu0 %v1735, 111
      %v2305 = vpop.permute.xlu0 %2304
      %2306 = vrot.lane.b32.xlu0 %v1736, 111
      %v2307 = vpop.permute.xlu0 %2306
      %2308 = vrot.lane.b32.xlu0 %v1737, 111
      %v2309 = vpop.permute.xlu0 %2308
      %2310 = vrot.lane.b32.xlu0 %v1738, 111
      %v2311 = vpop.permute.xlu0 %2310
      %2312 = vrot.lane.b32.xlu0 %v1739, 111
      %v2313 = vpop.permute.xlu0 %2312
      %2314 = vrot.lane.b32.xlu0 %v1740, 111
      %v2315 = vpop.permute.xlu0 %2314
      %2316 = vrot.lane.b32.xlu0 %v1741, 111
      %v2317 = vpop.permute.xlu0 %2316
      %v2318 = vsel %vm1526, %v2287, %v2289
      %v2319 = vsel %vm1526, %v2291, %v2293
      %v2320 = vsel %vm1526, %v2295, %v2297
      %v2321 = vsel %vm1526, %v2299, %v2301
      %v2322 = vsel %vm1526, %v2303, %v2305
      %v2323 = vsel %vm1526, %v2307, %v2309
      %v2324 = vsel %vm1526, %v2311, %v2313
      %v2325 = vsel %vm1526, %v2315, %v2317
      %v2342 = vsel %vm1526, %v2289, 0.0
      %v2343 = vsel %vm1526, %v2293, 0.0
      %v2344 = vsel %vm1526, %v2297, 0.0
      %v2345 = vsel %vm1526, %v2301, 0.0
      %v2346 = vsel %vm1526, %v2305, 0.0
      %v2347 = vsel %vm1526, %v2309, 0.0
      %v2348 = vsel %vm1526, %v2313, 0.0
      %v2349 = vsel %vm1526, %v2317, 0.0
      %v2350 = vsel %vm646, %v2318, 0.0
      %v2351 = vsel %vm647, %v2342, 0.0
      %v2352 = vsel %vm646, %v2319, 0.0
      %v2353 = vsel %vm647, %v2343, 0.0
      %v2354 = vsel %vm646, %v2320, 0.0
      %v2355 = vsel %vm647, %v2344, 0.0
      %v2356 = vsel %vm646, %v2321, 0.0
      %v2357 = vsel %vm647, %v2345, 0.0
      %v2358 = vsel %vm646, %v2322, 0.0
      %v2359 = vsel %vm647, %v2346, 0.0
      %v2360 = vsel %vm646, %v2323, 0.0
      %v2361 = vsel %vm647, %v2347, 0.0
      %v2362 = vsel %vm646, %v2324, 0.0
      %v2363 = vsel %vm647, %v2348, 0.0
      %v2364 = vsel %vm646, %v2325, 0.0
      %v2365 = vsel %vm647, %v2349, 0.0
      %v2366 = vpack.c.bf16 %v1824, %v1822
      %v2367 = vpack.c.bf16 %v1825, %v1823
      %v2368 = vpack.c.bf16 %v1828, %v1826
      %v2369 = vpack.c.bf16 %v1829, %v1827
      %v2370 = vpack.c.bf16 %v1832, %v1830
      %v2371 = vpack.c.bf16 %v1833, %v1831
      %v2372 = vpack.c.bf16 %v1836, %v1834
      %v2373 = vpack.c.bf16 %v1837, %v1835
      %v2374 = vpack.c.bf16 %v1895, %v1894
      %v2375 = vpack.c.bf16 %v1871, %v1870
      %v2376 = vpack.c.bf16 %v1897, %v1896
      %v2377 = vpack.c.bf16 %v1873, %v1872
      %v2378 = vpack.c.bf16 %v1899, %v1898
      %v2379 = vpack.c.bf16 %v1875, %v1874
      %v2380 = vpack.c.bf16 %v1901, %v1900
      %v2381 = vpack.c.bf16 %v1877, %v1876
      %v2382 = vpack.c.bf16 %v1968, %v1966
      %v2383 = vpack.c.bf16 %v1969, %v1967
      %v2384 = vpack.c.bf16 %v1972, %v1970
      %v2385 = vpack.c.bf16 %v1973, %v1971
      %v2386 = vpack.c.bf16 %v1976, %v1974
      %v2387 = vpack.c.bf16 %v1977, %v1975
      %v2388 = vpack.c.bf16 %v1980, %v1978
      %v2389 = vpack.c.bf16 %v1981, %v1979
      %v2390 = vpack.c.bf16 %v2048, %v2046
      %v2391 = vpack.c.bf16 %v2049, %v2047
      %v2392 = vpack.c.bf16 %v2052, %v2050
      %v2393 = vpack.c.bf16 %v2053, %v2051
      %v2394 = vpack.c.bf16 %v2056, %v2054
      %v2395 = vpack.c.bf16 %v2057, %v2055
      %v2396 = vpack.c.bf16 %v2060, %v2058
      %v2397 = vpack.c.bf16 %v2061, %v2059
      %v2398 = vpack.c.bf16 %v1728, %v1726
      %v2399 = vpack.c.bf16 %v1729, %v1727
      %v2400 = vpack.c.bf16 %v1732, %v1730
      %v2401 = vpack.c.bf16 %v1733, %v1731
      %v2402 = vpack.c.bf16 %v1736, %v1734
      %v2403 = vpack.c.bf16 %v1737, %v1735
      %v2404 = vpack.c.bf16 %v1740, %v1738
      %v2405 = vpack.c.bf16 %v1741, %v1739
      %v2406 = vpack.c.bf16 %v2128, %v2126
      %v2407 = vpack.c.bf16 %v2129, %v2127
      %v2408 = vpack.c.bf16 %v2132, %v2130
      %v2409 = vpack.c.bf16 %v2133, %v2131
      %v2410 = vpack.c.bf16 %v2136, %v2134
      %v2411 = vpack.c.bf16 %v2137, %v2135
      %v2412 = vpack.c.bf16 %v2140, %v2138
      %v2413 = vpack.c.bf16 %v2141, %v2139
      %v2414 = vpack.c.bf16 %v2208, %v2206
      %v2415 = vpack.c.bf16 %v2209, %v2207
      %v2416 = vpack.c.bf16 %v2212, %v2210
      %v2417 = vpack.c.bf16 %v2213, %v2211
      %v2418 = vpack.c.bf16 %v2216, %v2214
      %v2419 = vpack.c.bf16 %v2217, %v2215
      %v2420 = vpack.c.bf16 %v2220, %v2218
      %v2421 = vpack.c.bf16 %v2221, %v2219
      %v2422 = vpack.c.bf16 %v2255, %v2254
      %v2423 = vpack.c.bf16 %v2279, %v2278
      %v2424 = vpack.c.bf16 %v2257, %v2256
      %v2425 = vpack.c.bf16 %v2281, %v2280
      %v2426 = vpack.c.bf16 %v2259, %v2258
      %v2427 = vpack.c.bf16 %v2283, %v2282
      %v2428 = vpack.c.bf16 %v2261, %v2260
      %v2429 = vpack.c.bf16 %v2285, %v2284
      %v2430 = vpack.c.bf16 %v2352, %v2350
      %v2431 = vpack.c.bf16 %v2353, %v2351
      %v2432 = vpack.c.bf16 %v2356, %v2354
      %v2433 = vpack.c.bf16 %v2357, %v2355
      %v2434 = vpack.c.bf16 %v2360, %v2358
      %v2435 = vpack.c.bf16 %v2361, %v2359
      %v2436 = vpack.c.bf16 %v2364, %v2362
      %v2437 = vpack.c.bf16 %v2365, %v2363
      %v2438 = vld [vmem:[%s4] sm:$0xff]
      %v2439 = vld [vmem:[%s4 + $0x8] sm:$0xff]
      %v2440 = vld [vmem:[%s4 + $0x10] sm:$0xf]
      %v2441 = vld [vmem:[%s4 + $0x14] sm:$0xff]
      %v2442 = vld [vmem:[%s4 + $0x1c] sm:$0xff]
      %v2443 = vld [vmem:[%s4 + $0x24] sm:$0xf]
      %v2444 = vld [vmem:[%s4 + $0x28] sm:$0xff]
      %v2445 = vld [vmem:[%s4 + $0x30] sm:$0xff]
      %v2446 = vld [vmem:[%s4 + $0x38] sm:$0xf]
      %v2447 = vld [vmem:[%s4 + $0x3c] sm:$0xff]
      %v2448 = vld [vmem:[%s4 + $0x44] sm:$0xff]
      %v2449 = vld [vmem:[%s4 + $0x4c] sm:$0xf]
      %v2450 = vld [vmem:[%s4 + $0x50] sm:$0xff]
      %v2451 = vld [vmem:[%s4 + $0x58] sm:$0xff]
      %v2452 = vld [vmem:[%s4 + $0x60] sm:$0xf]
      %v2453 = vld [vmem:[%s4 + $0x64] sm:$0xff]
      %v2454 = vld [vmem:[%s4 + $0x6c] sm:$0xff]
      %v2455 = vld [vmem:[%s4 + $0x74] sm:$0xf]
      %v2456 = vld [vmem:[%s4 + $0x78] sm:$0xff]
      %v2457 = vld [vmem:[%s4 + $0x80] sm:$0xff]
      %v2458 = vld [vmem:[%s4 + $0x88] sm:$0xf]
      %v2459 = vld [vmem:[%s4 + $0x8c] sm:$0xff]
      %v2460 = vld [vmem:[%s4 + $0x94] sm:$0xff]
      %v2461 = vld [vmem:[%s4 + $0x9c] sm:$0xf]
      %v2462 = vld [vmem:[%s5] sm:$0xff]
      %v2463 = vld [vmem:[%s5 + $0x8] sm:$0xff]
      %v2464 = vld [vmem:[%s5 + $0x10] sm:$0xff]
      %v2465 = vld [vmem:[%s5 + $0x18] sm:$0xff]
      %v2466 = vld [vmem:[%s5 + $0x20] sm:$0xff]
      %v2467 = vld [vmem:[%s5 + $0x28] sm:$0xff]
      %v2468 = vld [vmem:[%s5 + $0x30] sm:$0xff]
      %v2469 = vld [vmem:[%s5 + $0x38] sm:$0xff]
      %2471 = vset.pattern.permute.xlu0 0
      %2472 = vperm.xlu0 %2471, %v2462
      %v2473 = vpop.permute.xlu0 %2472
      %2476 = vset.pattern.permute.xlu0 0
      %2477 = vperm.xlu0 %2476, %v2463
      %v2478 = vpop.permute.xlu0 %2477
      %2481 = vset.pattern.permute.xlu0 0
      %2482 = vperm.xlu0 %2481, %v2464
      %v2483 = vpop.permute.xlu0 %2482
      %2486 = vset.pattern.permute.xlu0 0
      %2487 = vperm.xlu0 %2486, %v2465
      %v2488 = vpop.permute.xlu0 %2487
      %2491 = vset.pattern.permute.xlu0 0
      %2492 = vperm.xlu0 %2491, %v2466
      %v2493 = vpop.permute.xlu0 %2492
      %2496 = vset.pattern.permute.xlu0 0
      %2497 = vperm.xlu0 %2496, %v2467
      %v2498 = vpop.permute.xlu0 %2497
      %2501 = vset.pattern.permute.xlu0 0
      %2502 = vperm.xlu0 %2501, %v2468
      %v2503 = vpop.permute.xlu0 %2502
      %2506 = vset.pattern.permute.xlu0 0
      %2507 = vperm.xlu0 %2506, %v2469
      %v2508 = vpop.permute.xlu0 %2507
      %v2534 = vunpack.c.l.b16 %v2438
      %v2535 = vunpack.c.h.b16 %v2438
      %v2536 = vunpack.c.l.b16 %v2439
      %v2537 = vunpack.c.h.b16 %v2439
      %v2538 = vunpack.c.l.b16 %v2440
      %v2539 = vunpack.c.l.b16 %v2441
      %v2540 = vunpack.c.h.b16 %v2441
      %v2541 = vunpack.c.l.b16 %v2442
      %v2542 = vunpack.c.h.b16 %v2442
      %v2543 = vunpack.c.l.b16 %v2443
      %v2544 = vunpack.c.l.b16 %v2444
      %v2545 = vunpack.c.h.b16 %v2444
      %v2546 = vunpack.c.l.b16 %v2445
      %v2547 = vunpack.c.h.b16 %v2445
      %v2548 = vunpack.c.l.b16 %v2446
      %v2549 = vunpack.c.l.b16 %v2447
      %v2550 = vunpack.c.h.b16 %v2447
      %v2551 = vunpack.c.l.b16 %v2448
      %v2552 = vunpack.c.h.b16 %v2448
      %v2553 = vunpack.c.l.b16 %v2449
      %v2554 = vunpack.c.l.b16 %v2450
      %v2555 = vunpack.c.h.b16 %v2450
      %v2556 = vunpack.c.l.b16 %v2451
      %v2557 = vunpack.c.h.b16 %v2451
      %v2558 = vunpack.c.l.b16 %v2452
      %v2559 = vunpack.c.l.b16 %v2453
      %v2560 = vunpack.c.h.b16 %v2453
      %v2561 = vunpack.c.l.b16 %v2454
      %v2562 = vunpack.c.h.b16 %v2454
      %v2563 = vunpack.c.l.b16 %v2455
      %v2564 = vunpack.c.l.b16 %v2456
      %v2565 = vunpack.c.h.b16 %v2456
      %v2566 = vunpack.c.l.b16 %v2457
      %v2567 = vunpack.c.h.b16 %v2457
      %v2568 = vunpack.c.l.b16 %v2458
      %v2569 = vunpack.c.l.b16 %v2459
      %v2570 = vunpack.c.h.b16 %v2459
      %v2571 = vunpack.c.l.b16 %v2460
      %v2572 = vunpack.c.h.b16 %v2460
      %v2573 = vunpack.c.l.b16 %v2461
      %v2574 = vpack.c.b16 %v2539, %v2534
      %v2575 = vpack.c.b16 %v2540, %v2535
      %v2576 = vpack.c.b16 %v2541, %v2536
      %v2577 = vpack.c.b16 %v2542, %v2537
      %v2578 = vpack.c.b16 %v2543, %v2538
      %v2579 = vpack.c.b16 %v2549, %v2544
      %v2580 = vpack.c.b16 %v2550, %v2545
      %v2581 = vpack.c.b16 %v2551, %v2546
      %v2582 = vpack.c.b16 %v2552, %v2547
      %v2583 = vpack.c.b16 %v2553, %v2548
      %v2584 = vpack.c.b16 %v2559, %v2554
      %v2585 = vpack.c.b16 %v2560, %v2555
      %v2586 = vpack.c.b16 %v2561, %v2556
      %v2587 = vpack.c.b16 %v2562, %v2557
      %v2588 = vpack.c.b16 %v2563, %v2558
      %v2589 = vpack.c.b16 %v2569, %v2564
      %v2590 = vpack.c.b16 %v2570, %v2565
      %v2591 = vpack.c.b16 %v2571, %v2566
      %v2592 = vpack.c.b16 %v2572, %v2567
      %v2593 = vpack.c.b16 %v2573, %v2568
      %vm2610 = vcmask 523264
      %v2612 = vsel %vm2610, %v2578, 0
      %v2615 = vsel %vm2610, %v2583, 0
      %v2618 = vsel %vm2610, %v2588, 0
      %v2621 = vsel %vm2610, %v2593, 0
      %2623 = vmatprep.subr.bf16.mxu0 %v2381
      %2624 = vmatpush1.bf16.msra.mxu0 %v2380
      %2625 = vmatprep.subr.bf16.mxu0 %v2379
      %2626 = vmatpush1.bf16.msra.mxu0 %v2378
      %2627 = vmatprep.subr.bf16.mxu0 %v2377
      %2628 = vmatpush1.bf16.msra.mxu0 %v2376
      %2629 = vmatprep.subr.bf16.mxu0 %v2375
      %2630 = vmatpush1.bf16.msra.mxu0 %v2374
      %2631 = vmatprep.subr.bf16.mxu0 %v2373
      %2632 = vmatpush1.bf16.msra.mxu0 %v2372
      %2633 = vmatprep.subr.bf16.mxu0 %v2371
      %2634 = vmatpush1.bf16.msra.mxu0 %v2370
      %2635 = vmatprep.subr.bf16.mxu0 %v2369
      %2636 = vmatpush1.bf16.msra.mxu0 %v2368
      %2637 = vmatprep.subr.bf16.mxu0 %v2367
      %2638 = vmatpush1.bf16.msra.mxu0 %v2366
      %2639 = vmatprep.subr.bf16.mxu0 %v2397
      %2640 = vmatpush2.bf16.msra.mxu0 %v2396
      %2641 = vmatprep.subr.bf16.mxu0 %v2395
      %2642 = vmatpush2.bf16.msra.mxu0 %v2394
      %2643 = vmatprep.subr.bf16.mxu0 %v2393
      %2644 = vmatpush2.bf16.msra.mxu0 %v2392
      %2645 = vmatprep.subr.bf16.mxu0 %v2391
      %2646 = vmatpush2.bf16.msra.mxu0 %v2390
      %2647 = vmatprep.subr.bf16.mxu0 %v2389
      %2648 = vmatpush2.bf16.msra.mxu0 %v2388
      %2649 = vmatprep.subr.bf16.mxu0 %v2387
      %2650 = vmatpush2.bf16.msra.mxu0 %v2386
      %2651 = vmatprep.subr.bf16.mxu0 %v2385
      %2652 = vmatpush2.bf16.msra.mxu0 %v2384
      %2653 = vmatprep.subr.bf16.mxu0 %v2383
      %2654 = vmatpush2.bf16.msra.mxu0 %v2382
      %2655 = vmatprep.mubr.bf16.mxu0 %v2575
      %2656 = vmatmul.mubr.bf16.gmra.mxu0 %v2574
      %v2657 = vpop.f32.mrf.mxu0
      %v2658 = vadd.f32 %v2473, %v2657
      %v2659 = vpop.f32.mrf.mxu0
      %v2660 = vadd.f32 %v2473, %v2659
      %v2661 = vpop.f32.mrf.mxu0
      %v2662 = vadd.f32 %v2478, %v2661
      %v2663 = vpop.f32.mrf.mxu0
      %v2664 = vadd.f32 %v2478, %v2663
      %2665 = vmatprep.mubr.bf16.mxu0 %v2580
      %2666 = vmatmul.mubr.bf16.gmra.mxu0 %v2579
      %v2667 = vpop.f32.mrf.mxu0
      %v2668 = vadd.f32 %v2483, %v2667
      %v2669 = vpop.f32.mrf.mxu0
      %v2670 = vadd.f32 %v2483, %v2669
      %v2671 = vpop.f32.mrf.mxu0
      %v2672 = vadd.f32 %v2488, %v2671
      %v2673 = vpop.f32.mrf.mxu0
      %v2674 = vadd.f32 %v2488, %v2673
      %2675 = vmatprep.mubr.bf16.mxu0 %v2585
      %2676 = vmatmul.mubr.bf16.gmra.mxu0 %v2584
      %v2677 = vpop.f32.mrf.mxu0
      %v2678 = vadd.f32 %v2493, %v2677
      %v2679 = vpop.f32.mrf.mxu0
      %v2680 = vadd.f32 %v2493, %v2679
      %v2681 = vpop.f32.mrf.mxu0
      %v2682 = vadd.f32 %v2498, %v2681
      %v2683 = vpop.f32.mrf.mxu0
      %v2684 = vadd.f32 %v2498, %v2683
      %2685 = vmatprep.mubr.bf16.mxu0 %v2590
      %2686 = vmatmul.mubr.bf16.gmra.mxu0 %v2589
      %v2687 = vpop.f32.mrf.mxu0
      %v2688 = vadd.f32 %v2503, %v2687
      %v2689 = vpop.f32.mrf.mxu0
      %v2690 = vadd.f32 %v2503, %v2689
      %v2691 = vpop.f32.mrf.mxu0
      %v2692 = vadd.f32 %v2508, %v2691
      %v2693 = vpop.f32.mrf.mxu0
      %v2694 = vadd.f32 %v2508, %v2693
      %2695 = vdwg.mxu0
      %2696 = vmatprep.subr.bf16.mxu0 %v2413
      %2697 = vmatpush1.bf16.msra.mxu0 %v2412
      %2698 = vmatprep.subr.bf16.mxu0 %v2411
      %2699 = vmatpush1.bf16.msra.mxu0 %v2410
      %2700 = vmatprep.subr.bf16.mxu0 %v2409
      %2701 = vmatpush1.bf16.msra.mxu0 %v2408
      %2702 = vmatprep.subr.bf16.mxu0 %v2407
      %2703 = vmatpush1.bf16.msra.mxu0 %v2406
      %2704 = vmatprep.subr.bf16.mxu0 %v2405
      %2705 = vmatpush1.bf16.msra.mxu0 %v2404
      %2706 = vmatprep.subr.bf16.mxu0 %v2403
      %2707 = vmatpush1.bf16.msra.mxu0 %v2402
      %2708 = vmatprep.subr.bf16.mxu0 %v2401
      %2709 = vmatpush1.bf16.msra.mxu0 %v2400
      %2710 = vmatprep.subr.bf16.mxu0 %v2399
      %2711 = vmatpush1.bf16.msra.mxu0 %v2398
      %2712 = vmatprep.subr.bf16.mxu0 %v2429
      %2713 = vmatpush2.bf16.msra.mxu0 %v2428
      %2714 = vmatprep.subr.bf16.mxu0 %v2427
      %2715 = vmatpush2.bf16.msra.mxu0 %v2426
      %2716 = vmatprep.subr.bf16.mxu0 %v2425
      %2717 = vmatpush2.bf16.msra.mxu0 %v2424
      %2718 = vmatprep.subr.bf16.mxu0 %v2423
      %2719 = vmatpush2.bf16.msra.mxu0 %v2422
      %2720 = vmatprep.subr.bf16.mxu0 %v2421
      %2721 = vmatpush2.bf16.msra.mxu0 %v2420
      %2722 = vmatprep.subr.bf16.mxu0 %v2419
      %2723 = vmatpush2.bf16.msra.mxu0 %v2418
      %2724 = vmatprep.subr.bf16.mxu0 %v2417
      %2725 = vmatpush2.bf16.msra.mxu0 %v2416
      %2726 = vmatprep.subr.bf16.mxu0 %v2415
      %2727 = vmatpush2.bf16.msra.mxu0 %v2414
      %2728 = vmatprep.mubr.bf16.mxu0 %v2577
      %2729 = vmatmul.mubr.bf16.gmra.mxu0 %v2576
      %v2730 = vpop.f32.mrf.mxu0
      %v2731 = vadd.f32 %v2658, %v2730
      %v2732 = vpop.f32.mrf.mxu0
      %v2733 = vadd.f32 %v2660, %v2732
      %v2734 = vpop.f32.mrf.mxu0
      %v2735 = vadd.f32 %v2662, %v2734
      %v2736 = vpop.f32.mrf.mxu0
      %v2737 = vadd.f32 %v2664, %v2736
      %2738 = vmatprep.mubr.bf16.mxu0 %v2582
      %2739 = vmatmul.mubr.bf16.gmra.mxu0 %v2581
      %v2740 = vpop.f32.mrf.mxu0
      %v2741 = vadd.f32 %v2668, %v2740
      %v2742 = vpop.f32.mrf.mxu0
      %v2743 = vadd.f32 %v2670, %v2742
      %v2744 = vpop.f32.mrf.mxu0
      %v2745 = vadd.f32 %v2672, %v2744
      %v2746 = vpop.f32.mrf.mxu0
      %v2747 = vadd.f32 %v2674, %v2746
      %2748 = vmatprep.mubr.bf16.mxu0 %v2587
      %2749 = vmatmul.mubr.bf16.gmra.mxu0 %v2586
      %v2750 = vpop.f32.mrf.mxu0
      %v2751 = vadd.f32 %v2678, %v2750
      %v2752 = vpop.f32.mrf.mxu0
      %v2753 = vadd.f32 %v2680, %v2752
      %v2754 = vpop.f32.mrf.mxu0
      %v2755 = vadd.f32 %v2682, %v2754
      %v2756 = vpop.f32.mrf.mxu0
      %v2757 = vadd.f32 %v2684, %v2756
      %2758 = vmatprep.mubr.bf16.mxu0 %v2592
      %2759 = vmatmul.mubr.bf16.gmra.mxu0 %v2591
      %v2760 = vpop.f32.mrf.mxu0
      %v2761 = vadd.f32 %v2688, %v2760
      %v2762 = vpop.f32.mrf.mxu0
      %v2763 = vadd.f32 %v2690, %v2762
      %v2764 = vpop.f32.mrf.mxu0
      %v2765 = vadd.f32 %v2692, %v2764
      %v2766 = vpop.f32.mrf.mxu0
      %v2767 = vadd.f32 %v2694, %v2766
      %2768 = vdwg.mxu0
      %2769 = vmatprep.subr.bf16.mxu0 0
      %2770 = vmatpush1.bf16.msra.mxu0 0
      %2771 = vmatprep.subr.bf16.mxu0 0
      %2772 = vmatpush1.bf16.msra.mxu0 0
      %2773 = vmatprep.subr.bf16.mxu0 0
      %2774 = vmatpush1.bf16.msra.mxu0 0
      %2775 = vmatprep.subr.bf16.mxu0 0
      %2776 = vmatpush1.bf16.msra.mxu0 0
      %2777 = vmatprep.subr.bf16.mxu0 %v2437
      %2778 = vmatpush1.bf16.msra.mxu0 %v2436
      %2779 = vmatprep.subr.bf16.mxu0 %v2435
      %2780 = vmatpush1.bf16.msra.mxu0 %v2434
      %2781 = vmatprep.subr.bf16.mxu0 %v2433
      %2782 = vmatpush1.bf16.msra.mxu0 %v2432
      %2783 = vmatprep.subr.bf16.mxu0 %v2431
      %2784 = vmatpush1.bf16.msra.mxu0 %v2430
      %2785 = vmatprep.subr.bf16.mxu0 0
      %2786 = vmatpush2.bf16.msra.mxu0 0
      %2787 = vmatprep.subr.bf16.mxu0 0
      %2788 = vmatpush2.bf16.msra.mxu0 0
      %2789 = vmatprep.subr.bf16.mxu0 0
      %2790 = vmatpush2.bf16.msra.mxu0 0
      %2791 = vmatprep.subr.bf16.mxu0 0
      %2792 = vmatpush2.bf16.msra.mxu0 0
      %2793 = vmatprep.subr.bf16.mxu0 0
      %2794 = vmatpush2.bf16.msra.mxu0 0
      %2795 = vmatprep.subr.bf16.mxu0 0
      %2796 = vmatpush2.bf16.msra.mxu0 0
      %2797 = vmatprep.subr.bf16.mxu0 0
      %2798 = vmatpush2.bf16.msra.mxu0 0
      %2799 = vmatprep.subr.bf16.mxu0 0
      %2800 = vmatpush2.bf16.msra.mxu0 0
      %2801 = vmatprep.mubr.bf16.mxu0 0
      %2802 = vmatmul.mubr.bf16.gmra.mxu0 %v2612
      %v2803 = vpop.f32.mrf.mxu0
      %v2804 = vadd.f32 %v2731, %v2803
      %v2805 = vpop.f32.mrf.mxu0
      %v2806 = vadd.f32 %v2733, %v2805
      %v2807 = vpop.f32.mrf.mxu0
      %v2808 = vadd.f32 %v2735, %v2807
      %v2809 = vpop.f32.mrf.mxu0
      %v2810 = vadd.f32 %v2737, %v2809
      %2811 = vmatprep.mubr.bf16.mxu0 0
      %2812 = vmatmul.mubr.bf16.gmra.mxu0 %v2615
      %v2813 = vpop.f32.mrf.mxu0
      %v2814 = vadd.f32 %v2741, %v2813
      %v2815 = vpop.f32.mrf.mxu0
      %v2816 = vadd.f32 %v2743, %v2815
      %v2817 = vpop.f32.mrf.mxu0
      %v2818 = vadd.f32 %v2745, %v2817
      %v2819 = vpop.f32.mrf.mxu0
      %v2820 = vadd.f32 %v2747, %v2819
      %2821 = vmatprep.mubr.bf16.mxu0 0
      %2822 = vmatmul.mubr.bf16.gmra.mxu0 %v2618
      %v2823 = vpop.f32.mrf.mxu0
      %v2824 = vadd.f32 %v2751, %v2823
      %v2825 = vpop.f32.mrf.mxu0
      %v2826 = vadd.f32 %v2753, %v2825
      %v2827 = vpop.f32.mrf.mxu0
      %v2828 = vadd.f32 %v2755, %v2827
      %v2829 = vpop.f32.mrf.mxu0
      %v2830 = vadd.f32 %v2757, %v2829
      %2831 = vmatprep.mubr.bf16.mxu0 0
      %2832 = vmatmul.mubr.bf16.gmra.mxu0 %v2621
      %v2833 = vpop.f32.mrf.mxu0
      %v2834 = vadd.f32 %v2761, %v2833
      %v2835 = vpop.f32.mrf.mxu0
      %v2836 = vadd.f32 %v2763, %v2835
      %v2837 = vpop.f32.mrf.mxu0
      %v2838 = vadd.f32 %v2765, %v2837
      %v2839 = vpop.f32.mrf.mxu0
      %v2840 = vadd.f32 %v2767, %v2839
      %2841 = vdwg.mxu0
      %v2842 = vmax.f32 %v2804, 0.0
      %v2843 = vmax.f32 %v2806, 0.0
      %v2844 = vmax.f32 %v2808, 0.0
      %v2845 = vmax.f32 %v2810, 0.0
      %v2846 = vmax.f32 %v2814, 0.0
      %v2847 = vmax.f32 %v2816, 0.0
      %v2848 = vmax.f32 %v2818, 0.0
      %v2849 = vmax.f32 %v2820, 0.0
      %v2850 = vmax.f32 %v2824, 0.0
      %v2851 = vmax.f32 %v2826, 0.0
      %v2852 = vmax.f32 %v2828, 0.0
      %v2853 = vmax.f32 %v2830, 0.0
      %v2854 = vmax.f32 %v2834, 0.0
      %v2855 = vmax.f32 %v2836, 0.0
      %v2856 = vmax.f32 %v2838, 0.0
      %v2857 = vmax.f32 %v2840, 0.0
      %v2858 = vld [vmem:[%s6] sm:$0x1]
      %v2859 = vld [vmem:[#allocation2] sm:$0x1]
      %2861 = vset.pattern.permute.xlu0 0
      %2862 = vperm.xlu0 %2861, %v2859
      %v2863 = vpop.permute.xlu0 %2862
      %v2865 = vlaneseq
      %v2866 = vshrl.u32 %v2865, 7
      %v2867 = vsub.s32 0, %v2866
      %v2868 = vrot.slane %v2863, %v2867
      %v2870 = vsel %vm2610, %v2858, 0
      %2872 = vmatprep.subr.mxu0 0.0
      %2873 = vmatpush1.msra.mxu0 0.0
      %2874 = vmatprep.subr.mxu0 0.0
      %2875 = vmatpush1.msra.mxu0 0.0
      %2876 = vmatprep.subr.mxu0 0.0
      %2877 = vmatpush1.msra.mxu0 0.0
      %2878 = vmatprep.subr.mxu0 0.0
      %2879 = vmatpush1.msra.mxu0 0.0
      %2880 = vmatprep.subr.mxu0 0.0
      %2881 = vmatpush1.msra.mxu0 0.0
      %2882 = vmatprep.subr.mxu0 0.0
      %2883 = vmatpush1.msra.mxu0 0.0
      %2884 = vmatprep.subr.mxu0 0.0
      %2885 = vmatpush1.msra.mxu0 0.0
      %2886 = vmatprep.subr.mxu0 0.0
      %2887 = vmatpush1.msra.mxu0 0.0
      %2888 = vmatprep.subr.mxu0 %v2857
      %2889 = vmatpush1.msra.mxu0 %v2856
      %2890 = vmatprep.subr.mxu0 %v2855
      %2891 = vmatpush1.msra.mxu0 %v2854
      %2892 = vmatprep.subr.mxu0 %v2853
      %2893 = vmatpush1.msra.mxu0 %v2852
      %2894 = vmatprep.subr.mxu0 %v2851
      %2895 = vmatpush1.msra.mxu0 %v2850
      %2896 = vmatprep.subr.mxu0 %v2849
      %2897 = vmatpush1.msra.mxu0 %v2848
      %2898 = vmatprep.subr.mxu0 %v2847
      %2899 = vmatpush1.msra.mxu0 %v2846
      %2900 = vmatprep.subr.mxu0 %v2845
      %2901 = vmatpush1.msra.mxu0 %v2844
      %2902 = vmatprep.subr.mxu0 %v2843
      %2903 = vmatpush1.msra.mxu0 %v2842
      %2904 = vmatprep.subr.mxu0 0.0
      %2905 = vmatpush2.msra.mxu0 0.0
      %2906 = vmatprep.subr.mxu0 0.0
      %2907 = vmatpush2.msra.mxu0 0.0
      %2908 = vmatprep.subr.mxu0 0.0
      %2909 = vmatpush2.msra.mxu0 0.0
      %2910 = vmatprep.subr.mxu0 0.0
      %2911 = vmatpush2.msra.mxu0 0.0
      %2912 = vmatprep.subr.mxu0 0.0
      %2913 = vmatpush2.msra.mxu0 0.0
      %2914 = vmatprep.subr.mxu0 0.0
      %2915 = vmatpush2.msra.mxu0 0.0
      %2916 = vmatprep.subr.mxu0 0.0
      %2917 = vmatpush2.msra.mxu0 0.0
      %2918 = vmatprep.subr.mxu0 0.0
      %2919 = vmatpush2.msra.mxu0 0.0
      %2920 = vmatprep.subr.mxu0 0.0
      %2921 = vmatpush2.msra.mxu0 0.0
      %2922 = vmatprep.subr.mxu0 0.0
      %2923 = vmatpush2.msra.mxu0 0.0
      %2924 = vmatprep.subr.mxu0 0.0
      %2925 = vmatpush2.msra.mxu0 0.0
      %2926 = vmatprep.subr.mxu0 0.0
      %2927 = vmatpush2.msra.mxu0 0.0
      %2928 = vmatprep.subr.mxu0 0.0
      %2929 = vmatpush2.msra.mxu0 0.0
      %2930 = vmatprep.subr.mxu0 0.0
      %2931 = vmatpush2.msra.mxu0 0.0
      %2932 = vmatprep.subr.mxu0 0.0
      %2933 = vmatpush2.msra.mxu0 0.0
      %2934 = vmatprep.subr.mxu0 0.0
      %2935 = vmatpush2.msra.mxu0 0.0
      %2936 = vmatprep.mubr.f32.mxu0 0.0
      %2937 = vmatmul.mubr.f32.gmra.mxu0 %v2870
      %v2938 = vpop.f32.mrf.mxu0
      %v2939 = vadd.f32 %v2868, %v2938
      %v2940 = vpop.f32.mrf.mxu0
      %v2941 = vadd.f32 %v2868, %v2940
      %2942 = vdwg.mxu0
      %v2943 = vand.u32 %v342, 1
      %v2944 = vand.u32 %v343, 1
      %vm2945 = vcmp.eq.s32.totalorder %v2943, 0
      %vm2946 = vcmp.eq.s32.totalorder %v2944, 0
      %2949 = vrot.lane.b32.xlu0 %v2939, 127
      %v2950 = vpop.permute.xlu0 %2949
      %2951 = vrot.lane.b32.xlu0 %v2941, 127
      %v2952 = vpop.permute.xlu0 %2951
      %v2953 = vsel %vm1081, %v2950, %v2952
      %v2956 = vsel %vm1081, %v2952, 0.0
      %2957 = vrot.lane.b32.xlu0 %v2939, 1
      %v2958 = vpop.permute.xlu0 %2957
      %2959 = vrot.lane.b32.xlu0 %v2941, 1
      %v2960 = vpop.permute.xlu0 %2959
      %v2961 = vsel %vm792, %v2958, %v2960
      %v2964 = vsel %vm792, 0.0, %v2958
      %v2965 = vsel %vm2945, %v2953, %v2964
      %v2966 = vsel %vm2946, %v2956, %v2961
      %v2967 = vmax.f32 %v2939, %v2965
      %v2968 = vmax.f32 %v2941, %v2966
      %v2969 = vand.u32 %v342, 2
      %v2970 = vand.u32 %v343, 2
      %vm2971 = vcmp.eq.s32.totalorder %v2969, 0
      %vm2972 = vcmp.eq.s32.totalorder %v2970, 0
      %2975 = vrot.lane.b32.xlu0 %v2967, 126
      %v2976 = vpop.permute.xlu0 %2975
      %2977 = vrot.lane.b32.xlu0 %v2968, 126
      %v2978 = vpop.permute.xlu0 %2977
      %vm2979 = vcmask 1031168
      %v2980 = vsel %vm2979, %v2976, %v2978
      %v2983 = vsel %vm2979, %v2978, 0.0
      %2984 = vrot.lane.b32.xlu0 %v2967, 2
      %v2985 = vpop.permute.xlu0 %2984
      %2986 = vrot.lane.b32.xlu0 %v2968, 2
      %v2987 = vpop.permute.xlu0 %2986
      %v2988 = vsel %vm422, %v2985, %v2987
      %v2991 = vsel %vm422, 0.0, %v2985
      %v2992 = vsel %vm2971, %v2980, %v2991
      %v2993 = vsel %vm2972, %v2983, %v2988
      %v2994 = vmax.f32 %v2967, %v2992
      %v2995 = vmax.f32 %v2968, %v2993
      %v2996 = vand.u32 %v342, 4
      %v2997 = vand.u32 %v343, 4
      %vm2998 = vcmp.eq.s32.totalorder %v2996, 0
      %vm2999 = vcmp.eq.s32.totalorder %v2997, 0
      %3002 = vrot.lane.b32.xlu0 %v2994, 124
      %v3003 = vpop.permute.xlu0 %3002
      %3004 = vrot.lane.b32.xlu0 %v2995, 124
      %v3005 = vpop.permute.xlu0 %3004
      %vm3006 = vcmask 1014784
      %v3007 = vsel %vm3006, %v3003, %v3005
      %v3010 = vsel %vm3006, %v3005, 0.0
      %3011 = vrot.lane.b32.xlu0 %v2994, 4
      %v3012 = vpop.permute.xlu0 %3011
      %3013 = vrot.lane.b32.xlu0 %v2995, 4
      %v3014 = vpop.permute.xlu0 %3013
      %vm3015 = vcmask 31744
      %v3016 = vsel %vm3015, %v3012, %v3014
      %v3019 = vsel %vm3015, 0.0, %v3012
      %v3020 = vsel %vm2998, %v3007, %v3019
      %v3021 = vsel %vm2999, %v3010, %v3016
      %v3022 = vmax.f32 %v2994, %v3020
      %v3023 = vmax.f32 %v2995, %v3021
      %v3024 = vand.u32 %v342, 8
      %v3025 = vand.u32 %v343, 8
      %vm3026 = vcmp.eq.s32.totalorder %v3024, 0
      %vm3027 = vcmp.eq.s32.totalorder %v3025, 0
      %3030 = vrot.lane.b32.xlu0 %v3022, 120
      %v3031 = vpop.permute.xlu0 %3030
      %3032 = vrot.lane.b32.xlu0 %v3023, 120
      %v3033 = vpop.permute.xlu0 %3032
      %vm3034 = vcmask 982016
      %v3035 = vsel %vm3034, %v3031, %v3033
      %v3038 = vsel %vm3034, %v3033, 0.0
      %3039 = vrot.lane.b32.xlu0 %v3022, 8
      %v3040 = vpop.permute.xlu0 %3039
      %3041 = vrot.lane.b32.xlu0 %v3023, 8
      %v3042 = vpop.permute.xlu0 %3041
      %vm3043 = vcmask 64512
      %v3044 = vsel %vm3043, %v3040, %v3042
      %v3047 = vsel %vm3043, 0.0, %v3040
      %v3048 = vsel %vm3026, %v3035, %v3047
      %v3049 = vsel %vm3027, %v3038, %v3044
      %v3050 = vmax.f32 %v3022, %v3048
      %v3051 = vmax.f32 %v3023, %v3049
      %v3052 = vsub.f32 %v2939, %v3050
      %v3053 = vsub.f32 %v2941, %v3051
      %v3054 = vmul.f32 %v3052, 1.442695
      %v3055 = vpow.pop %v3054
      %v3056 = vmul.f32 %v3053, 1.442695
      %v3057 = vpow.pop %v3056
      %3060 = vrot.lane.b32.xlu0 %v3055, 127
      %v3061 = vpop.permute.xlu0 %3060
      %3062 = vrot.lane.b32.xlu0 %v3057, 127
      %v3063 = vpop.permute.xlu0 %3062
      %v3064 = vsel %vm1081, %v3061, %v3063
      %v3067 = vsel %vm1081, %v3063, 0.0
      %3068 = vrot.lane.b32.xlu0 %v3055, 1
      %v3069 = vpop.permute.xlu0 %3068
      %3070 = vrot.lane.b32.xlu0 %v3057, 1
      %v3071 = vpop.permute.xlu0 %3070
      %v3072 = vsel %vm792, %v3069, %v3071
      %v3075 = vsel %vm792, 0.0, %v3069
      %v3076 = vsel %vm2945, %v3064, %v3075
      %v3077 = vsel %vm2946, %v3067, %v3072
      %v3078 = vadd.f32 %v3055, %v3076
      %v3079 = vadd.f32 %v3057, %v3077
      %3082 = vrot.lane.b32.xlu0 %v3078, 126
      %v3083 = vpop.permute.xlu0 %3082
      %3084 = vrot.lane.b32.xlu0 %v3079, 126
      %v3085 = vpop.permute.xlu0 %3084
      %v3086 = vsel %vm2979, %v3083, %v3085
      %v3089 = vsel %vm2979, %v3085, 0.0
      %3090 = vrot.lane.b32.xlu0 %v3078, 2
      %v3091 = vpop.permute.xlu0 %3090
      %3092 = vrot.lane.b32.xlu0 %v3079, 2
      %v3093 = vpop.permute.xlu0 %3092
      %v3094 = vsel %vm422, %v3091, %v3093
      %v3097 = vsel %vm422, 0.0, %v3091
      %v3098 = vsel %vm2971, %v3086, %v3097
      %v3099 = vsel %vm2972, %v3089, %v3094
      %v3100 = vadd.f32 %v3078, %v3098
      %v3101 = vadd.f32 %v3079, %v3099
      %3104 = vrot.lane.b32.xlu0 %v3100, 124
      %v3105 = vpop.permute.xlu0 %3104
      %3106 = vrot.lane.b32.xlu0 %v3101, 124
      %v3107 = vpop.permute.xlu0 %3106
      %v3108 = vsel %vm3006, %v3105, %v3107
      %v3111 = vsel %vm3006, %v3107, 0.0
      %3112 = vrot.lane.b32.xlu0 %v3100, 4
      %v3113 = vpop.permute.xlu0 %3112
      %3114 = vrot.lane.b32.xlu0 %v3101, 4
      %v3115 = vpop.permute.xlu0 %3114
      %v3116 = vsel %vm3015, %v3113, %v3115
      %v3119 = vsel %vm3015, 0.0, %v3113
      %v3120 = vsel %vm2998, %v3108, %v3119
      %v3121 = vsel %vm2999, %v3111, %v3116
      %v3122 = vadd.f32 %v3100, %v3120
      %v3123 = vadd.f32 %v3101, %v3121
      %3126 = vrot.lane.b32.xlu0 %v3122, 120
      %v3127 = vpop.permute.xlu0 %3126
      %3128 = vrot.lane.b32.xlu0 %v3123, 120
      %v3129 = vpop.permute.xlu0 %3128
      %v3130 = vsel %vm3034, %v3127, %v3129
      %v3133 = vsel %vm3034, %v3129, 0.0
      %3134 = vrot.lane.b32.xlu0 %v3122, 8
      %v3135 = vpop.permute.xlu0 %3134
      %3136 = vrot.lane.b32.xlu0 %v3123, 8
      %v3137 = vpop.permute.xlu0 %3136
      %v3138 = vsel %vm3043, %v3135, %v3137
      %v3141 = vsel %vm3043, 0.0, %v3135
      %v3142 = vsel %vm3026, %v3130, %v3141
      %v3143 = vsel %vm3027, %v3133, %v3138
      %v3144 = vadd.f32 %v3122, %v3142
      %v3145 = vadd.f32 %v3123, %v3143
      %v3146 = vrcp.pop %v3144
      %v3147 = vrcp.pop %v3145
      %v3148 = vmul.f32 %v3055, %v3146
      %v3149 = vmul.f32 %v3057, %v3147
      %v3152 = vcombine.low %v3148, %v3149
      %v3154 = vunpack.c.l.s4 1966171168
      %v3155 = vunpack.c.0.s8 %v3154
      %v3156 = vlaneseq
      %v3157 = vshrl.u32 %v3156, 7
      %v3158 = vsub.s32 %v3155, %v3157
      %v3159 = vrot.slane %v3152, %v3158
      %v3161 = vunpack.c.l.s4 1966171168
      %v3162 = vunpack.c.0.s8 %v3161
      %v3163 = vlaneseq
      %v3164 = vshrl.u32 %v3163, 7
      %v3165 = vsub.s32 %v3162, %v3164
      %v3166 = vrot.slane %v3159, %v3165
      %v3168 = vlaneseq
      %vm3169 = vcmp.ge.s32.totalorder %v3168, 0
      %vm3170 = vcmp.lt.s32.totalorder %v3168, 256
      %vm3171 = vmand %vm3169, %vm3170
      %3172 = vst.msk [vmem:[%s325] sm:$0x3] %vm3171, %v3166
      %p3173 = scmp.lt.s32.totalorder %s21, 1
      %s3174 = scalar_select %p3173, %s21, 1
      %s3175 = smul.addr %s3174, 2
      %s3176 = scalar_lea.vmem %s8, %s3175
      // Predicated region
      $region53: #{frequency_filter_forward.2} parent=51 // pred_check
        %p3177 = pneg %p217
      $region54: #{frequency_filter_forward.2} parent=51 // pred_check_branch
        %3179 = sbr.rel (%p3177) target = $region56
      $region55: #{frequency_filter_forward.2} parent=51 // pred_region
        _
      $region56: #{frequency_filter_forward.2} parent=51 // pred_fallthru
        _
    $region52: #{frequency_filter_forward.2} parent=5 // pred_fallthru
      _
    %p3180 = scmp.le.s32.totalorder 2, %s16
    // Predicated region
    $region57: #{frequency_filter_forward.2} parent=5 // pred_check
      %p3181 = pneg %p3180
    $region58: #{frequency_filter_forward.2} parent=5 // pred_check_branch
      %3183 = sbr.rel (%p3181) target = $region60
    $region59: #{frequency_filter_forward.2} parent=5 // pred_region
      %s3184 = ssub.s32 %s16, 2
      // Predicated region
      $region61: #{frequency_filter_forward.2} parent=59 // pred_check
        %p3185 = pneg %p223
      $region62: #{frequency_filter_forward.2} parent=59 // pred_check_branch
        %3187 = sbr.rel (%p3185) target = $region64
      $region63: #{frequency_filter_forward.2} parent=59 // pred_region
        %p3188 = scmp.lt.s32.totalorder %s22, 1
        %s3189 = scalar_select %p3188, %s22, 1
        %s3190 = smul.addr %s3189, 2
        %s3191 = scalar_lea.vmem %s8, %s3190
      $region64: #{frequency_filter_forward.2} parent=59 // pred_fallthru
        _
    $region60: #{frequency_filter_forward.2} parent=5 // pred_fallthru
      _
  $region6: #{frequency_filter_forward.2} parent=0 // loop_footer
    %s20 = sadd.s32 1, %s16
  $region7: #{frequency_filter_forward.2} parent=0 // loop_footer_branch
    %15 = sbr.rel target = $region3
  $region8: #{frequency_filter_forward.2} parent=0 // loop_exit
    _

</llo_original>
